<compile_context>
chip_gen: v6e
topology: v6e:2x2x1
jax: 0.10.0
libtpu: 0.0.40
codegen_flags: <defaults>
</compile_context>

<pallas_src>
from functools import partial
from math import sqrt

import jax
import jax.numpy as jnp
from jax.experimental import pallas as pl
from jax.experimental.pallas import tpu as pltpu


_VMEM = pl.BlockSpec(memory_space=pltpu.MemorySpace.VMEM)


def _bytes(*arrays):
    return int(sum(a.size * a.dtype.itemsize for a in arrays))


# ------------------------------ Pallas kernels ------------------------------ #

def _conv_kernel(p_ref, w_ref, b_ref, o_ref):
    """o = relu(p @ w + b).  p, w bf16; f32 accumulate + epilogue; bf16 store."""
    acc = jnp.dot(p_ref[...], w_ref[...], preferred_element_type=jnp.float32)
    o_ref[...] = jnp.maximum(acc + b_ref[...], 0.0).astype(o_ref.dtype)


def _tail_kernel(p_ref, w3_ref, b3_ref, w1_ref, b1_ref, w2_ref, b2_ref,
                 wf_ref, bf_ref, o_ref, *, batch, spatial):
    """conv3 (as matmul) + ReLU + flatten + fc1 + fc2 + fc3, fully in VMEM.

    Patch rows arrive (spatial-major, batch-minor): row = s * batch + n.
    """
    z = jnp.dot(p_ref[...], w3_ref[...], preferred_element_type=jnp.float32)
    z = jnp.maximum(z + b3_ref[...], 0.0)              # [spatial*batch, C3] f32
    zb = z.astype(jnp.bfloat16)                        # native MXU path for fc1

    # fc1: h[n] = sum_s z[s*batch + n, :] @ w1[s].  The torch NCHW .view()
    # flatten order is folded into w1's [spatial, C3, 64] layout at init, so
    # this is a straight accumulation of `spatial` batched matmuls over
    # contiguous (bf16-pair-aligned) [batch, C3] row blocks -- no per-sample
    # loop, no row gathers, tiny live set (one [batch, 64] accumulator).
    # TODO(synk): collapse to a single [batch, spatial*C3] @ [spatial*C3, 64]
    # matmul once the [spatial*batch, C3] -> [batch, spatial*C3] minor-dim
    # reshape is guaranteed to lower in Mosaic.
    acc = jnp.zeros((batch, w1_ref.shape[-1]), jnp.float32)
    for s in range(spatial):
        acc = acc + jnp.dot(zb[s * batch:(s + 1) * batch, :], w1_ref[s],
                            preferred_element_type=jnp.float32)
    h = jnp.maximum(acc + b1_ref[...], 0.0).astype(jnp.bfloat16)

    h = jnp.dot(h, w2_ref[...], preferred_element_type=jnp.float32)
    h = jnp.maximum(h + b2_ref[...], 0.0).astype(jnp.bfloat16)

    out = jnp.dot(h, wf_ref[...], preferred_element_type=jnp.float32)
    o_ref[...] = out + bf_ref[...]                     # single [batch, 5] store


# ----------------------------- kernel wrappers ------------------------------ #

def conv_matmul(patches, w, b):
    """relu(patches @ w + b) on the MXU, whole operands resident in VMEM.

    At batch=2 everything fits in a small fraction of VMEM on every generation,
    so a single whole-array block (no grid) avoids per-step pipeline overhead.
    TODO(synk): for large batch, tile M with grid=(pl.cdiv(M, 256),) and
    dimension_semantics=("parallel",) so both v7x TensorCores are used, and
    re-budget tiles for v7x's 64 MiB VMEM / v5e's 16 MiB default scoped limit.
    """
    m, k = patches.shape
    cout = w.shape[1]
    cost = pl.CostEstimate(
        flops=2 * m * k * cout,
        transcendentals=0,
        bytes_accessed=_bytes(patches, w, b) + m * cout * 2)
    return pl.pallas_call(
        _conv_kernel,
        out_shape=jax.ShapeDtypeStruct((m, cout), jnp.bfloat16),
        in_specs=[_VMEM, _VMEM, _VMEM],
        out_specs=_VMEM,
        cost_estimate=cost,
    )(patches, w, b)


def conv3_fc_tail(patches_sn, params, batch, spatial):
    args = (patches_sn, params["conv3_w"], params["conv3_b"],
            params["fc1_w"], params["fc1_b"],
            params["fc2_w"], params["fc2_b"],
            params["fc3_w"], params["fc3_b"])
    m, k = patches_sn.shape
    c3 = params["conv3_w"].shape[1]
    flops = (2 * m * k * c3 + 2 * batch * spatial * c3 * 64
             + 2 * batch * 64 * 32 + 2 * batch * 32 * 5)
    cost = pl.CostEstimate(flops=flops, transcendentals=0,
                           bytes_accessed=_bytes(*args) + batch * 5 * 4)
    return pl.pallas_call(
        partial(_tail_kernel, batch=batch, spatial=spatial),
        out_shape=jax.ShapeDtypeStruct((batch, 5), jnp.float32),
        in_specs=[_VMEM] * 9,
        out_specs=_VMEM,
        cost_estimate=cost,
    )(*args)


# ------------------------------ im2col (XLA glue) --------------------------- #

def _im2col_nhwc(x, k, stride, pad, k_align=128):
    """x: [N, H, W, C] -> bf16 patches [N, Ho, Wo, Kp].

    Columns are tap-major ((ki, kj) outer, channel inner); K is zero-padded to
    a multiple of `k_align` via an extra zero slab in the concat so the MXU
    contraction is lane-aligned (matching zero rows are baked into the weights
    at init).  No transposes; XLA fuses the slices+concat into one op.  For
    bf16 inputs (conv1/conv2 kernel outputs) the astype is a no-op.
    """
    n, h, w, c = x.shape
    ho = (h + 2 * pad - k) // stride + 1
    wo = (w + 2 * pad - k) // stride + 1
    xb = jnp.pad(x.astype(jnp.bfloat16),
                 ((0, 0), (pad, pad), (pad, pad), (0, 0)))
    cols = []
    for ki in range(k):
        for kj in range(k):
            cols.append(xb[:, ki:ki + stride * ho:stride,
                           kj:kj + stride * wo:stride, :])
    kk = k * k * c
    kp = -(-kk // k_align) * k_align
    if kp > kk:
        cols.append(jnp.zeros((n, ho, wo, kp - kk), jnp.bfloat16))
    patches = jnp.concatenate(cols, axis=-1)
    return patches, ho, wo


# ------------------------------- parameters --------------------------------- #

def init_params(key):
    """Weights stored MXU-ready: im2col layout, K-padded, bf16 everywhere."""
    ks = jax.random.split(key, 6)
    p = {}
    conv_defs = [(16, 3), (64, 16), (32, 64)]
    for i, ((cout, cin), k) in enumerate(zip(conv_defs, ks[:3]), start=1):
        w = jax.random.normal(k, (cout, cin, 5, 5), jnp.float32) / sqrt(25 * cin)
        # tap-major / channel-inner rows, matching _im2col_nhwc's columns.
        w2d = w.transpose(2, 3, 1, 0).reshape(25 * cin, cout)
        kp = -(-w2d.shape[0] // 128) * 128
        w2d = jnp.pad(w2d, ((0, kp - w2d.shape[0]), (0, 0)))
        p[f"conv{i}_w"] = w2d.astype(jnp.bfloat16)
        p[f"conv{i}_b"] = jnp.zeros((1, cout), jnp.float32)
    # fc1: torch weight [64, 512] over NCHW-flattened inputs (idx = c*16 + s).
    # Store as [s, c, 64] so the kernel consumes the NHWC conv3 output
    # (rows = spatial position s, cols = channel c) with no transpose.
    w1 = jax.random.normal(ks[3], (64, 512), jnp.float32) / sqrt(512)
    p["fc1_w"] = (w1.reshape(64, 32, 16).transpose(2, 1, 0)       # [16, 32, 64]
                  .astype(jnp.bfloat16))
    p["fc1_b"] = jnp.zeros((1, 64), jnp.float32)
    w2 = jax.random.normal(ks[4], (32, 64), jnp.float32) / sqrt(64)
    p["fc2_w"] = w2.T.astype(jnp.bfloat16)                        # [64, 32]
    p["fc2_b"] = jnp.zeros((1, 32), jnp.float32)
    w3 = jax.random.normal(ks[5], (5, 32), jnp.float32) / sqrt(32)
    p["fc3_w"] = w3.T.astype(jnp.bfloat16)                        # [32, 5]
    p["fc3_b"] = jnp.zeros((1, 5), jnp.float32)
    return p


# --------------------------------- forward ---------------------------------- #

def cnn_forward(params, x):
    n = x.shape[0]
    x = jnp.transpose(x, (0, 2, 3, 1))                  # NCHW -> NHWC, once
    p1, ho, wo = _im2col_nhwc(x, 5, 2, 2)
    z1 = conv_matmul(p1.reshape(n * ho * wo, -1),
                     params["conv1_w"], params["conv1_b"])
    z1 = z1.reshape(n, ho, wo, -1)                      # NHWC bf16, no transpose
    p2, ho, wo = _im2col_nhwc(z1, 5, 2, 2)
    z2 = conv_matmul(p2.reshape(n * ho * wo, -1),
                     params["conv2_w"], params["conv2_b"])
    z2 = z2.reshape(n, ho, wo, -1)
    p3, ho, wo = _im2col_nhwc(z2, 5, 2, 2)
    spatial = ho * wo
    # Reorder conv3 patch rows (spatial-major, batch-minor) so the tail
    # kernel's fc1 accumulation reads contiguous [batch, C3] row blocks per
    # spatial position (cheap XLA-side transpose of a ~100 KiB tensor).
    p3 = jnp.transpose(p3, (1, 2, 0, 3)).reshape(spatial * n, -1)
    # conv3 + flatten + fc1 + fc2 + fc3 fused in one kernel.
    return conv3_fc_tail(p3, params, n, spatial)


if __name__ == "__main__":
    key = jax.random.PRNGKey(0)
    pkey, xkey = jax.random.split(key)
    params = init_params(pkey)
    # fc1 in_features = 512 = 32ch * 4 * 4  ->  input spatial must be 32x32.
    x = jax.random.normal(xkey, (2, 3, 32, 32), jnp.float32)

    out = jax.block_until_ready(jax.jit(cnn_forward)(params, x))
    assert out.shape == (2, 5), out.shape
    print("KERNEL_OK")
</pallas_src>

<mosaic_0001>
module attributes {stable_mosaic.version = 11 : i64} {
  func.func @_conv_kernel(%arg0: memref<512x128xbf16, #tpu.memory_space<vmem>>, %arg1: memref<128x16xbf16, #tpu.memory_space<vmem>>, %arg2: memref<1x16xf32, #tpu.memory_space<vmem>>, %arg3: memref<512x16xbf16, #tpu.memory_space<vmem>>) attributes {dimension_semantics = [], scalar_prefetch = 0 : i64, scratch_operands = 0 : i64, tpu.core_type = #tpu.core_type<tc>} {
    %c0 = arith.constant 0 : index
    %c0_0 = arith.constant 0 : index
    %0 = vector.load %arg0[%c0, %c0_0] : memref<512x128xbf16, #tpu.memory_space<vmem>>, vector<512x128xbf16>
    %c0_1 = arith.constant 0 : index
    %c0_2 = arith.constant 0 : index
    %1 = vector.load %arg1[%c0_1, %c0_2] : memref<128x16xbf16, #tpu.memory_space<vmem>>, vector<128x16xbf16>
    %cst = arith.constant dense<0.000000e+00> : vector<512x16xf32>
    %2 = tpu.matmul %0, %1, %cst {dimension_numbers = #tpu.dot_dimension_numbers<[1], [0], [0], [1], [0, 0, 1, 1], [], []>} : vector<512x128xbf16>, vector<128x16xbf16>, vector<512x16xf32> -> vector<512x16xf32>
    %c0_3 = arith.constant 0 : index
    %c0_4 = arith.constant 0 : index
    %3 = vector.load %arg2[%c0_3, %c0_4] : memref<1x16xf32, #tpu.memory_space<vmem>>, vector<1x16xf32>
    %4 = vector.broadcast %3 : vector<1x16xf32> to vector<512x16xf32>
    %5 = arith.addf %2, %4 : vector<512x16xf32>
    %cst_5 = arith.constant 0.000000e+00 : f32
    %6 = vector.broadcast %cst_5 : f32 to vector<512x16xf32>
    %7 = arith.maximumf %5, %6 : vector<512x16xf32>
    %8 = arith.truncf %7 : vector<512x16xf32> to vector<512x16xbf16>
    %c0_6 = arith.constant 0 : index
    %c0_7 = arith.constant 0 : index
    %9 = vector.load %arg3[%c0_6, %c0_7] : memref<512x16xbf16, #tpu.memory_space<vmem>>, vector<512x16xbf16>
    tpu.vector_store %arg3[%c0_6, %c0_7], %8 {strides = array<i32>} : memref<512x16xbf16, #tpu.memory_space<vmem>>, vector<512x16xbf16>,
    return
  }
}

module attributes {stable_mosaic.version = 11 : i64} {
  func.func @_conv_kernel(%arg0: memref<128x512xbf16, #tpu.memory_space<vmem>>, %arg1: memref<512x64xbf16, #tpu.memory_space<vmem>>, %arg2: memref<1x64xf32, #tpu.memory_space<vmem>>, %arg3: memref<128x64xbf16, #tpu.memory_space<vmem>>) attributes {dimension_semantics = [], scalar_prefetch = 0 : i64, scratch_operands = 0 : i64, tpu.core_type = #tpu.core_type<tc>} {
    %c0 = arith.constant 0 : index
    %c0_0 = arith.constant 0 : index
    %0 = vector.load %arg0[%c0, %c0_0] : memref<128x512xbf16, #tpu.memory_space<vmem>>, vector<128x512xbf16>
    %c0_1 = arith.constant 0 : index
    %c0_2 = arith.constant 0 : index
    %1 = vector.load %arg1[%c0_1, %c0_2] : memref<512x64xbf16, #tpu.memory_space<vmem>>, vector<512x64xbf16>
    %cst = arith.constant dense<0.000000e+00> : vector<128x64xf32>
    %2 = tpu.matmul %0, %1, %cst {dimension_numbers = #tpu.dot_dimension_numbers<[1], [0], [0], [1], [0, 0, 1, 1], [], []>} : vector<128x512xbf16>, vector<512x64xbf16>, vector<128x64xf32> -> vector<128x64xf32>
    %c0_3 = arith.constant 0 : index
    %c0_4 = arith.constant 0 : index
    %3 = vector.load %arg2[%c0_3, %c0_4] : memref<1x64xf32, #tpu.memory_space<vmem>>, vector<1x64xf32>
    %4 = vector.broadcast %3 : vector<1x64xf32> to vector<128x64xf32>
    %5 = arith.addf %2, %4 : vector<128x64xf32>
    %cst_5 = arith.constant 0.000000e+00 : f32
    %6 = vector.broadcast %cst_5 : f32 to vector<128x64xf32>
    %7 = arith.maximumf %5, %6 : vector<128x64xf32>
    %8 = arith.truncf %7 : vector<128x64xf32> to vector<128x64xbf16>
    %c0_6 = arith.constant 0 : index
    %c0_7 = arith.constant 0 : index
    %9 = vector.load %arg3[%c0_6, %c0_7] : memref<128x64xbf16, #tpu.memory_space<vmem>>, vector<128x64xbf16>
    tpu.vector_store %arg3[%c0_6, %c0_7], %8 {strides = array<i32>} : memref<128x64xbf16, #tpu.memory_space<vmem>>, vector<128x64xbf16>,
    return
  }
}

module attributes {stable_mosaic.version = 11 : i64} {
  func.func @_tail_kernel(%arg0: memref<32x1664xbf16, #tpu.memory_space<vmem>>, %arg1: memref<1664x32xbf16, #tpu.memory_space<vmem>>, %arg2: memref<1x32xf32, #tpu.memory_space<vmem>>, %arg3: memref<16x32x64xbf16, #tpu.memory_space<vmem>>, %arg4: memref<1x64xf32, #tpu.memory_space<vmem>>, %arg5: memref<64x32xbf16, #tpu.memory_space<vmem>>, %arg6: memref<1x32xf32, #tpu.memory_space<vmem>>, %arg7: memref<32x5xbf16, #tpu.memory_space<vmem>>, %arg8: memref<1x5xf32, #tpu.memory_space<vmem>>, %arg9: memref<2x5xf32, #tpu.memory_space<vmem>>) attributes {dimension_semantics = [], scalar_prefetch = 0 : i64, scratch_operands = 0 : i64, tpu.core_type = #tpu.core_type<tc>} {
    %c0 = arith.constant 0 : index
    %c0_0 = arith.constant 0 : index
    %0 = vector.load %arg0[%c0, %c0_0] : memref<32x1664xbf16, #tpu.memory_space<vmem>>, vector<32x1664xbf16>
    %c0_1 = arith.constant 0 : index
    %c0_2 = arith.constant 0 : index
    %1 = vector.load %arg1[%c0_1, %c0_2] : memref<1664x32xbf16, #tpu.memory_space<vmem>>, vector<1664x32xbf16>
    %cst = arith.constant dense<0.000000e+00> : vector<32x32xf32>
    %2 = tpu.matmul %0, %1, %cst {dimension_numbers = #tpu.dot_dimension_numbers<[1], [0], [0], [1], [0, 0, 1, 1], [], []>} : vector<32x1664xbf16>, vector<1664x32xbf16>, vector<32x32xf32> -> vector<32x32xf32>
    %c0_3 = arith.constant 0 : index
    %c0_4 = arith.constant 0 : index
    %3 = vector.load %arg2[%c0_3, %c0_4] : memref<1x32xf32, #tpu.memory_space<vmem>>, vector<1x32xf32>
    %4 = vector.broadcast %3 : vector<1x32xf32> to vector<32x32xf32>
    %5 = arith.addf %2, %4 : vector<32x32xf32>
    %cst_5 = arith.constant 0.000000e+00 : f32
    %6 = vector.broadcast %cst_5 : f32 to vector<32x32xf32>
    %7 = arith.maximumf %5, %6 : vector<32x32xf32>
    %8 = arith.truncf %7 : vector<32x32xf32> to vector<32x32xbf16>
    %cst_6 = arith.constant 0.000000e+00 : f32
    %9 = vector.broadcast %cst_6 : f32 to vector<2x64xf32>
    %10 = vector.extract_strided_slice %8 {offsets = [0, 0], sizes = [2, 32], strides = [1, 1]} : vector<32x32xbf16> to vector<2x32xbf16>
    %c0_7 = arith.constant 0 : index
    %c0_8 = arith.constant 0 : index
    %c0_9 = arith.constant 0 : index
    %11 = vector.load %arg3[%c0_7, %c0_8, %c0_9] : memref<16x32x64xbf16, #tpu.memory_space<vmem>>, vector<1x32x64xbf16>
    %12 = vector.shape_cast %11 : vector<1x32x64xbf16> to vector<32x64xbf16>
    %cst_10 = arith.constant dense<0.000000e+00> : vector<2x64xf32>
    %13 = tpu.matmul %10, %12, %cst_10 {dimension_numbers = #tpu.dot_dimension_numbers<[1], [0], [0], [1], [0, 0, 1, 1], [], []>} : vector<2x32xbf16>, vector<32x64xbf16>, vector<2x64xf32> -> vector<2x64xf32>
    %14 = arith.addf %9, %13 : vector<2x64xf32>
    %15 = vector.extract_strided_slice %8 {offsets = [2, 0], sizes = [2, 32], strides = [1, 1]} : vector<32x32xbf16> to vector<2x32xbf16>
    %c1 = arith.constant 1 : index
    %c0_11 = arith.constant 0 : index
    %c0_12 = arith.constant 0 : index
    %16 = vector.load %arg3[%c1, %c0_11, %c0_12] : memref<16x32x64xbf16, #tpu.memory_space<vmem>>, vector<1x32x64xbf16>
    %17 = vector.shape_cast %16 : vector<1x32x64xbf16> to vector<32x64xbf16>
    %cst_13 = arith.constant dense<0.000000e+00> : vector<2x64xf32>
    %18 = tpu.matmul %15, %17, %cst_13 {dimension_numbers = #tpu.dot_dimension_numbers<[1], [0], [0], [1], [0, 0, 1, 1], [], []>} : vector<2x32xbf16>, vector<32x64xbf16>, vector<2x64xf32> -> vector<2x64xf32>
    %19 = arith.addf %14, %18 : vector<2x64xf32>
    %20 = vector.extract_strided_slice %8 {offsets = [4, 0], sizes = [2, 32], strides = [1, 1]} : vector<32x32xbf16> to vector<2x32xbf16>
    %c2 = arith.constant 2 : index
    %c0_14 = arith.constant 0 : index
    %c0_15 = arith.constant 0 : index
    %21 = vector.load %arg3[%c2, %c0_14, %c0_15] : memref<16x32x64xbf16, #tpu.memory_space<vmem>>, vector<1x32x64xbf16>
    %22 = vector.shape_cast %21 : vector<1x32x64xbf16> to vector<32x64xbf16>
    %cst_16 = arith.constant dense<0.000000e+00> : vector<2x64xf32>
    %23 = tpu.matmul %20, %22, %cst_16 {dimension_numbers = #tpu.dot_dimension_numbers<[1], [0], [0], [1], [0, 0, 1, 1], [], []>} : vector<2x32xbf16>, vector<32x64xbf16>, vector<2x64xf32> -> vector<2x64xf32>
    %24 = arith.addf %19, %23 : vector<2x64xf32>
    %25 = vector.extract_strided_slice %8 {offsets = [6, 0], sizes = [2, 32], strides = [1, 1]} : vector<32x32xbf16> to vector<2x32xbf16>
    %c3 = arith.constant 3 : index
    %c0_17 = arith.constant 0 : index
    %c0_18 = arith.constant 0 : index
    %26 = vector.load %arg3[%c3, %c0_17, %c0_18] : memref<16x32x64xbf16, #tpu.memory_space<vmem>>, vector<1x32x64xbf16>
    %27 = vector.shape_cast %26 : vector<1x32x64xbf16> to vector<32x64xbf16>
    %cst_19 = arith.constant dense<0.000000e+00> : vector<2x64xf32>
    %28 = tpu.matmul %25, %27, %cst_19 {dimension_numbers = #tpu.dot_dimension_numbers<[1], [0], [0], [1], [0, 0, 1, 1], [], []>} : vector<2x32xbf16>, vector<32x64xbf16>, vector<2x64xf32> -> vector<2x64xf32>
    %29 = arith.addf %24, %28 : vector<2x64xf32>
    %30 = vector.extract_strided_slice %8 {offsets = [8, 0], sizes = [2, 32], strides = [1, 1]} : vector<32x32xbf16> to vector<2x32xbf16>
    %c4 = arith.constant 4 : index
    %c0_20 = arith.constant 0 : index
    %c0_21 = arith.constant 0 : index
    %31 = vector.load %arg3[%c4, %c0_20, %c0_21] : memref<16x32x64xbf16, #tpu.memory_space<vmem>>, vector<1x32x64xbf16>
    %32 = vector.shape_cast %31 : vector<1x32x64xbf16> to vector<32x64xbf16>
    %cst_22 = arith.constant dense<0.000000e+00> : vector<2x64xf32>
    %33 = tpu.matmul %30, %32, %cst_22 {dimension_numbers = #tpu.dot_dimension_numbers<[1], [0], [0], [1], [0, 0, 1, 1], [], []>} : vector<2x32xbf16>, vector<32x64xbf16>, vector<2x64xf32> -> vector<2x64xf32>
    %34 = arith.addf %29, %33 : vector<2x64xf32>
    %35 = vector.extract_strided_slice %8 {offsets = [10, 0], sizes = [2, 32], strides = [1, 1]} : vector<32x32xbf16> to vector<2x32xbf16>
    %c5 = arith.constant 5 : index
    %c0_23 = arith.constant 0 : index
    %c0_24 = arith.constant 0 : index
    %36 = vector.load %arg3[%c5, %c0_23, %c0_24] : memref<16x32x64xbf16, #tpu.memory_space<vmem>>, vector<1x32x64xbf16>
    %37 = vector.shape_cast %36 : vector<1x32x64xbf16> to vector<32x64xbf16>
    %cst_25 = arith.constant dense<0.000000e+00> : vector<2x64xf32>
    %38 = tpu.matmul %35, %37, %cst_25 {dimension_numbers = #tpu.dot_dimension_numbers<[1], [0], [0], [1], [0, 0, 1, 1], [], []>} : vector<2x32xbf16>, vector<32x64xbf16>, vector<2x64xf32> -> vector<2x64xf32>
    %39 = arith.addf %34, %38 : vector<2x64xf32>
    %40 = vector.extract_strided_slice %8 {offsets = [12, 0], sizes = [2, 32], strides = [1, 1]} : vector<32x32xbf16> to vector<2x32xbf16>
    %c6 = arith.constant 6 : index
    %c0_26 = arith.constant 0 : index
    %c0_27 = arith.constant 0 : index
    %41 = vector.load %arg3[%c6, %c0_26, %c0_27] : memref<16x32x64xbf16, #tpu.memory_space<vmem>>, vector<1x32x64xbf16>
    %42 = vector.shape_cast %41 : vector<1x32x64xbf16> to vector<32x64xbf16>
    %cst_28 = arith.constant dense<0.000000e+00> : vector<2x64xf32>
    %43 = tpu.matmul %40, %42, %cst_28 {dimension_numbers = #tpu.dot_dimension_numbers<[1], [0], [0], [1], [0, 0, 1, 1], [], []>} : vector<2x32xbf16>, vector<32x64xbf16>, vector<2x64xf32> -> vector<2x64xf32>
    %44 = arith.addf %39, %43 : vector<2x64xf32>
    %45 = vector.extract_strided_slice %8 {offsets = [14, 0], sizes = [2, 32], strides = [1, 1]} : vector<32x32xbf16> to vector<2x32xbf16>
    %c7 = arith.constant 7 : index
    %c0_29 = arith.constant 0 : index
    %c0_30 = arith.constant 0 : index
    %46 = vector.load %arg3[%c7, %c0_29, %c0_30] : memref<16x32x64xbf16, #tpu.memory_space<vmem>>, vector<1x32x64xbf16>
    %47 = vector.shape_cast %46 : vector<1x32x64xbf16> to vector<32x64xbf16>
    %cst_31 = arith.constant dense<0.000000e+00> : vector<2x64xf32>
    %48 = tpu.matmul %45, %47, %cst_31 {dimension_numbers = #tpu.dot_dimension_numbers<[1], [0], [0], [1], [0, 0, 1, 1], [], []>} : vector<2x32xbf16>, vector<32x64xbf16>, vector<2x64xf32> -> vector<2x64xf32>
    %49 = arith.addf %44, %48 : vector<2x64xf32>
    %50 = vector.extract_strided_slice %8 {offsets = [16, 0], sizes = [2, 32], strides = [1, 1]} : vector<32x32xbf16> to vector<2x32xbf16>
    %c8 = arith.constant 8 : index
    %c0_32 = arith.constant 0 : index
    %c0_33 = arith.constant 0 : index
    %51 = vector.load %arg3[%c8, %c0_32, %c0_33] : memref<16x32x64xbf16, #tpu.memory_space<vmem>>, vector<1x32x64xbf16>
    %52 = vector.shape_cast %51 : vector<1x32x64xbf16> to vector<32x64xbf16>
    %cst_34 = arith.constant dense<0.000000e+00> : vector<2x64xf32>
    %53 = tpu.matmul %50, %52, %cst_34 {dimension_numbers = #tpu.dot_dimension_numbers<[1], [0], [0], [1], [0, 0, 1, 1], [], []>} : vector<2x32xbf16>, vector<32x64xbf16>, vector<2x64xf32> -> vector<2x64xf32>
    %54 = arith.addf %49, %53 : vector<2x64xf32>
    %55 = vector.extract_strided_slice %8 {offsets = [18, 0], sizes = [2, 32], strides = [1, 1]} : vector<32x32xbf16> to vector<2x32xbf16>
    %c9 = arith.constant 9 : index
    %c0_35 = arith.constant 0 : index
    %c0_36 = arith.constant 0 : index
    %56 = vector.load %arg3[%c9, %c0_35, %c0_36] : memref<16x32x64xbf16, #tpu.memory_space<vmem>>, vector<1x32x64xbf16>
    %57 = vector.shape_cast %56 : vector<1x32x64xbf16> to vector<32x64xbf16>
    %cst_37 = arith.constant dense<0.000000e+00> : vector<2x64xf32>
    %58 = tpu.matmul %55, %57, %cst_37 {dimension_numbers = #tpu.dot_dimension_numbers<[1], [0], [0], [1], [0, 0, 1, 1], [], []>} : vector<2x32xbf16>, vector<32x64xbf16>, vector<2x64xf32> -> vector<2x64xf32>
    %59 = arith.addf %54, %58 : vector<2x64xf32>
    %60 = vector.extract_strided_slice %8 {offsets = [20, 0], sizes = [2, 32], strides = [1, 1]} : vector<32x32xbf16> to vector<2x32xbf16>
    %c10 = arith.constant 10 : index
    %c0_38 = arith.constant 0 : index
    %c0_39 = arith.constant 0 : index
    %61 = vector.load %arg3[%c10, %c0_38, %c0_39] : memref<16x32x64xbf16, #tpu.memory_space<vmem>>, vector<1x32x64xbf16>
    %62 = vector.shape_cast %61 : vector<1x32x64xbf16> to vector<32x64xbf16>
    %cst_40 = arith.constant dense<0.000000e+00> : vector<2x64xf32>
    %63 = tpu.matmul %60, %62, %cst_40 {dimension_numbers = #tpu.dot_dimension_numbers<[1], [0], [0], [1], [0, 0, 1, 1], [], []>} : vector<2x32xbf16>, vector<32x64xbf16>, vector<2x64xf32> -> vector<2x64xf32>
    %64 = arith.addf %59, %63 : vector<2x64xf32>
    %65 = vector.extract_strided_slice %8 {offsets = [22, 0], sizes = [2, 32], strides = [1, 1]} : vector<32x32xbf16> to vector<2x32xbf16>
    %c11 = arith.constant 11 : index
    %c0_41 = arith.constant 0 : index
    %c0_42 = arith.constant 0 : index
    %66 = vector.load %arg3[%c11, %c0_41, %c0_42] : memref<16x32x64xbf16, #tpu.memory_space<vmem>>, vector<1x32x64xbf16>
    %67 = vector.shape_cast %66 : vector<1x32x64xbf16> to vector<32x64xbf16>
    %cst_43 = arith.constant dense<0.000000e+00> : vector<2x64xf32>
    %68 = tpu.matmul %65, %67, %cst_43 {dimension_numbers = #tpu.dot_dimension_numbers<[1], [0], [0], [1], [0, 0, 1, 1], [], []>} : vector<2x32xbf16>, vector<32x64xbf16>, vector<2x64xf32> -> vector<2x64xf32>
    %69 = arith.addf %64, %68 : vector<2x64xf32>
    %70 = vector.extract_strided_slice %8 {offsets = [24, 0], sizes = [2, 32], strides = [1, 1]} : vector<32x32xbf16> to vector<2x32xbf16>
    %c12 = arith.constant 12 : index
    %c0_44 = arith.constant 0 : index
    %c0_45 = arith.constant 0 : index
    %71 = vector.load %arg3[%c12, %c0_44, %c0_45] : memref<16x32x64xbf16, #tpu.memory_space<vmem>>, vector<1x32x64xbf16>
    %72 = vector.shape_cast %71 : vector<1x32x64xbf16> to vector<32x64xbf16>
    %cst_46 = arith.constant dense<0.000000e+00> : vector<2x64xf32>
    %73 = tpu.matmul %70, %72, %cst_46 {dimension_numbers = #tpu.dot_dimension_numbers<[1], [0], [0], [1], [0, 0, 1, 1], [], []>} : vector<2x32xbf16>, vector<32x64xbf16>, vector<2x64xf32> -> vector<2x64xf32>
    %74 = arith.addf %69, %73 : vector<2x64xf32>
    %75 = vector.extract_strided_slice %8 {offsets = [26, 0], sizes = [2, 32], strides = [1, 1]} : vector<32x32xbf16> to vector<2x32xbf16>
    %c13 = arith.constant 13 : index
    %c0_47 = arith.constant 0 : index
    %c0_48 = arith.constant 0 : index
    %76 = vector.load %arg3[%c13, %c0_47, %c0_48] : memref<16x32x64xbf16, #tpu.memory_space<vmem>>, vector<1x32x64xbf16>
    %77 = vector.shape_cast %76 : vector<1x32x64xbf16> to vector<32x64xbf16>
    %cst_49 = arith.constant dense<0.000000e+00> : vector<2x64xf32>
    %78 = tpu.matmul %75, %77, %cst_49 {dimension_numbers = #tpu.dot_dimension_numbers<[1], [0], [0], [1], [0, 0, 1, 1], [], []>} : vector<2x32xbf16>, vector<32x64xbf16>, vector<2x64xf32> -> vector<2x64xf32>
    %79 = arith.addf %74, %78 : vector<2x64xf32>
    %80 = vector.extract_strided_slice %8 {offsets = [28, 0], sizes = [2, 32], strides = [1, 1]} : vector<32x32xbf16> to vector<2x32xbf16>
    %c14 = arith.constant 14 : index
    %c0_50 = arith.constant 0 : index
    %c0_51 = arith.constant 0 : index
    %81 = vector.load %arg3[%c14, %c0_50, %c0_51] : memref<16x32x64xbf16, #tpu.memory_space<vmem>>, vector<1x32x64xbf16>
    %82 = vector.shape_cast %81 : vector<1x32x64xbf16> to vector<32x64xbf16>
    %cst_52 = arith.constant dense<0.000000e+00> : vector<2x64xf32>
    %83 = tpu.matmul %80, %82, %cst_52 {dimension_numbers = #tpu.dot_dimension_numbers<[1], [0], [0], [1], [0, 0, 1, 1], [], []>} : vector<2x32xbf16>, vector<32x64xbf16>, vector<2x64xf32> -> vector<2x64xf32>
    %84 = arith.addf %79, %83 : vector<2x64xf32>
    %85 = vector.extract_strided_slice %8 {offsets = [30, 0], sizes = [2, 32], strides = [1, 1]} : vector<32x32xbf16> to vector<2x32xbf16>
    %c15 = arith.constant 15 : index
    %c0_53 = arith.constant 0 : index
    %c0_54 = arith.constant 0 : index
    %86 = vector.load %arg3[%c15, %c0_53, %c0_54] : memref<16x32x64xbf16, #tpu.memory_space<vmem>>, vector<1x32x64xbf16>
    %87 = vector.shape_cast %86 : vector<1x32x64xbf16> to vector<32x64xbf16>
    %cst_55 = arith.constant dense<0.000000e+00> : vector<2x64xf32>
    %88 = tpu.matmul %85, %87, %cst_55 {dimension_numbers = #tpu.dot_dimension_numbers<[1], [0], [0], [1], [0, 0, 1, 1], [], []>} : vector<2x32xbf16>, vector<32x64xbf16>, vector<2x64xf32> -> vector<2x64xf32>
    %89 = arith.addf %84, %88 : vector<2x64xf32>
    %c0_56 = arith.constant 0 : index
    %c0_57 = arith.constant 0 : index
    %90 = vector.load %arg4[%c0_56, %c0_57] : memref<1x64xf32, #tpu.memory_space<vmem>>, vector<1x64xf32>
    %91 = vector.broadcast %90 : vector<1x64xf32> to vector<2x64xf32>
    %92 = arith.addf %89, %91 : vector<2x64xf32>
    %cst_58 = arith.constant 0.000000e+00 : f32
    %93 = vector.broadcast %cst_58 : f32 to vector<2x64xf32>
    %94 = arith.maximumf %92, %93 : vector<2x64xf32>
    %95 = arith.truncf %94 : vector<2x64xf32> to vector<2x64xbf16>
    %c0_59 = arith.constant 0 : index
    %c0_60 = arith.constant 0 : index
    %96 = vector.load %arg5[%c0_59, %c0_60] : memref<64x32xbf16, #tpu.memory_space<vmem>>, vector<64x32xbf16>
    %cst_61 = arith.constant dense<0.000000e+00> : vector<2x32xf32>
    %97 = tpu.matmul %95, %96, %cst_61 {dimension_numbers = #tpu.dot_dimension_numbers<[1], [0], [0], [1], [0, 0, 1, 1], [], []>} : vector<2x64xbf16>, vector<64x32xbf16>, vector<2x32xf32> -> vector<2x32xf32>
    %c0_62 = arith.constant 0 : index
    %c0_63 = arith.constant 0 : index
    %98 = vector.load %arg6[%c0_62, %c0_63] : memref<1x32xf32, #tpu.memory_space<vmem>>, vector<1x32xf32>
    %99 = vector.broadcast %98 : vector<1x32xf32> to vector<2x32xf32>
    %100 = arith.addf %97, %99 : vector<2x32xf32>
    %cst_64 = arith.constant 0.000000e+00 : f32
    %101 = vector.broadcast %cst_64 : f32 to vector<2x32xf32>
    %102 = arith.maximumf %100, %101 : vector<2x32xf32>
    %103 = arith.truncf %102 : vector<2x32xf32> to vector<2x32xbf16>
    %c0_65 = arith.constant 0 : index
    %c0_66 = arith.constant 0 : index
    %104 = vector.load %arg7[%c0_65, %c0_66] : memref<32x5xbf16, #tpu.memory_space<vmem>>, vector<32x5xbf16>
    %cst_67 = arith.constant dense<0.000000e+00> : vector<2x5xf32>
    %105 = tpu.matmul %103, %104, %cst_67 {dimension_numbers = #tpu.dot_dimension_numbers<[1], [0], [0], [1], [0, 0, 1, 1], [], []>} : vector<2x32xbf16>, vector<32x5xbf16>, vector<2x5xf32> -> vector<2x5xf32>
    %c0_68 = arith.constant 0 : index
    %c0_69 = arith.constant 0 : index
    %106 = vector.load %arg8[%c0_68, %c0_69] : memref<1x5xf32, #tpu.memory_space<vmem>>, vector<1x5xf32>
    %107 = vector.broadcast %106 : vector<1x5xf32> to vector<2x5xf32>
    %108 = arith.addf %105, %107 : vector<2x5xf32>
    %c0_70 = arith.constant 0 : index
    %c0_71 = arith.constant 0 : index
    %109 = vector.load %arg9[%c0_70, %c0_71] : memref<2x5xf32, #tpu.memory_space<vmem>>, vector<2x5xf32>
    tpu.vector_store %arg9[%c0_70, %c0_71], %108 {strides = array<i32>} : memref<2x5xf32, #tpu.memory_space<vmem>>, vector<2x5xf32>,
    return
  }
}

</mosaic_0001>

<llo_original>
// kernel: cnn_forward.3
$region0: #{cnn_forward.3}
  #allocation0 [shape = 'u32[]', space=smem, size = 0x4, offset = 0x4, fixed_abs, tag = 'smem constant byte address 0x4 - core index']
  #allocation1 [shape = 'u32[144,128]{1,0:T(1,128)}', space=vmem, size = 0x12000, scoped, tag = 'internal scratch']
  %s0 = inlined_call_operand.vmem [shape: bf16[512,128], index: 0, kind: input, shape index: {}]
  %s1 = inlined_call_operand.vmem [shape: bf16[128,16], index: 1, kind: input, shape index: {}]
  %s2 = inlined_call_operand.vmem [shape: f32[1,16], index: 2, kind: input, shape index: {}]
  %s3 = inlined_call_operand.vmem [shape: bf16[512,16], index: 3, kind: output, shape index: {}]
  %s4 = sld [smem:[#allocation0]]
  $region22: #{cnn_forward.3} parent=0
    _
  %s6 = ssub.s32 1, %s4
  %s7 = scalar_select 0, %s6, %s4
  // Predicated region
  $region2: #{cnn_forward.3} parent=0 // pred_check
    _
  $region3: #{cnn_forward.3} parent=0 // pred_check_branch
    %9 = sbr.rel (0) target = $region5
  $region4: #{cnn_forward.3} parent=0 // pred_region
    _
  $region5: #{cnn_forward.3} parent=0 // pred_fallthru
    _
  // Predicated region
  $region6: #{cnn_forward.3} parent=0 // pred_check
    _
  $region7: #{cnn_forward.3} parent=0 // pred_check_branch
    %11 = sbr.rel (0) target = $region9
  $region8: #{cnn_forward.3} parent=0 // pred_region
    _
  $region9: #{cnn_forward.3} parent=0 // pred_fallthru
    _
  // Predicated region
  $region10: #{cnn_forward.3} parent=0 // pred_check
    _
  $region11: #{cnn_forward.3} parent=0 // pred_check_branch
    %13 = sbr.rel (0) target = $region13
  $region12: #{cnn_forward.3} parent=0 // pred_region
    _
  $region13: #{cnn_forward.3} parent=0 // pred_fallthru
    _
  %v15 = vld [vmem:[%s0] sm:$0xf]
  %v16 = vld [vmem:[%s0 + $0x4] sm:$0xf]
  %v17 = vld [vmem:[%s0 + $0x8] sm:$0xf]
  %v18 = vld [vmem:[%s0 + $0xc] sm:$0xf]
  %v19 = vld [vmem:[%s0 + $0x10] sm:$0xf]
  %v20 = vld [vmem:[%s0 + $0x14] sm:$0xf]
  %v21 = vld [vmem:[%s0 + $0x18] sm:$0xf]
  %v22 = vld [vmem:[%s0 + $0x1c] sm:$0xf]
  %v23 = vld [vmem:[%s0 + $0x20] sm:$0xf]
  %v24 = vld [vmem:[%s0 + $0x24] sm:$0xf]
  %v25 = vld [vmem:[%s0 + $0x28] sm:$0xf]
  %v26 = vld [vmem:[%s0 + $0x2c] sm:$0xf]
  %v27 = vld [vmem:[%s0 + $0x30] sm:$0xf]
  %v28 = vld [vmem:[%s0 + $0x34] sm:$0xf]
  %v29 = vld [vmem:[%s0 + $0x38] sm:$0xf]
  %v30 = vld [vmem:[%s0 + $0x3c] sm:$0xf]
  %v31 = vld [vmem:[%s0 + $0x40] sm:$0xf]
  %v32 = vld [vmem:[%s0 + $0x44] sm:$0xf]
  %v33 = vld [vmem:[%s0 + $0x48] sm:$0xf]
  %v34 = vld [vmem:[%s0 + $0x4c] sm:$0xf]
  %v35 = vld [vmem:[%s0 + $0x50] sm:$0xf]
  %v36 = vld [vmem:[%s0 + $0x54] sm:$0xf]
  %v37 = vld [vmem:[%s0 + $0x58] sm:$0xf]
  %v38 = vld [vmem:[%s0 + $0x5c] sm:$0xf]
  %v39 = vld [vmem:[%s0 + $0x60] sm:$0xf]
  %v40 = vld [vmem:[%s0 + $0x64] sm:$0xf]
  %v41 = vld [vmem:[%s0 + $0x68] sm:$0xf]
  %v42 = vld [vmem:[%s0 + $0x6c] sm:$0xf]
  %v43 = vld [vmem:[%s0 + $0x70] sm:$0xf]
  %v44 = vld [vmem:[%s0 + $0x74] sm:$0xf]
  %v45 = vld [vmem:[%s0 + $0x78] sm:$0xf]
  %v46 = vld [vmem:[%s0 + $0x7c] sm:$0xf]
  %v47 = vld [vmem:[%s0 + $0x80] sm:$0xf]
  %v48 = vld [vmem:[%s0 + $0x84] sm:$0xf]
  %v49 = vld [vmem:[%s0 + $0x88] sm:$0xf]
  %v50 = vld [vmem:[%s0 + $0x8c] sm:$0xf]
  %v51 = vld [vmem:[%s0 + $0x90] sm:$0xf]
  %v52 = vld [vmem:[%s0 + $0x94] sm:$0xf]
  %v53 = vld [vmem:[%s0 + $0x98] sm:$0xf]
  %v54 = vld [vmem:[%s0 + $0x9c] sm:$0xf]
  %v55 = vld [vmem:[%s0 + $0xa0] sm:$0xf]
  %v56 = vld [vmem:[%s0 + $0xa4] sm:$0xf]
  %v57 = vld [vmem:[%s0 + $0xa8] sm:$0xf]
  %v58 = vld [vmem:[%s0 + $0xac] sm:$0xf]
  %v59 = vld [vmem:[%s0 + $0xb0] sm:$0xf]
  %v60 = vld [vmem:[%s0 + $0xb4] sm:$0xf]
  %v61 = vld [vmem:[%s0 + $0xb8] sm:$0xf]
  %v62 = vld [vmem:[%s0 + $0xbc] sm:$0xf]
  %v63 = vld [vmem:[%s0 + $0xc0] sm:$0xf]
  %v64 = vld [vmem:[%s0 + $0xc4] sm:$0xf]
  %v65 = vld [vmem:[%s0 + $0xc8] sm:$0xf]
  %v66 = vld [vmem:[%s0 + $0xcc] sm:$0xf]
  %v67 = vld [vmem:[%s0 + $0xd0] sm:$0xf]
  %v68 = vld [vmem:[%s0 + $0xd4] sm:$0xf]
  %v69 = vld [vmem:[%s0 + $0xd8] sm:$0xf]
  %v70 = vld [vmem:[%s0 + $0xdc] sm:$0xf]
  %v71 = vld [vmem:[%s0 + $0xe0] sm:$0xf]
  %v72 = vld [vmem:[%s0 + $0xe4] sm:$0xf]
  %v73 = vld [vmem:[%s0 + $0xe8] sm:$0xf]
  %v74 = vld [vmem:[%s0 + $0xec] sm:$0xf]
  %v75 = vld [vmem:[%s0 + $0xf0] sm:$0xf]
  %v76 = vld [vmem:[%s0 + $0xf4] sm:$0xf]
  %v77 = vld [vmem:[%s0 + $0xf8] sm:$0xf]
  %v78 = vld [vmem:[%s0 + $0xfc] sm:$0xf]
  %v79 = vld [vmem:[%s1] sm:$0xf]
  %v80 = vld [vmem:[%s1 + $0x4] sm:$0xf]
  %v81 = vld [vmem:[%s1 + $0x8] sm:$0xf]
  %v82 = vld [vmem:[%s1 + $0xc] sm:$0xf]
  %v83 = vld [vmem:[%s1 + $0x10] sm:$0xf]
  %v84 = vld [vmem:[%s1 + $0x14] sm:$0xf]
  %v85 = vld [vmem:[%s1 + $0x18] sm:$0xf]
  %v86 = vld [vmem:[%s1 + $0x1c] sm:$0xf]
  %v87 = vld [vmem:[%s1 + $0x20] sm:$0xf]
  %v88 = vld [vmem:[%s1 + $0x24] sm:$0xf]
  %v89 = vld [vmem:[%s1 + $0x28] sm:$0xf]
  %v90 = vld [vmem:[%s1 + $0x2c] sm:$0xf]
  %v91 = vld [vmem:[%s1 + $0x30] sm:$0xf]
  %v92 = vld [vmem:[%s1 + $0x34] sm:$0xf]
  %v93 = vld [vmem:[%s1 + $0x38] sm:$0xf]
  %v94 = vld [vmem:[%s1 + $0x3c] sm:$0xf]
  %v95 = vld [vmem:[%s2] sm:$0x1]
  %v97 = vlaneseq
  %v98 = vshrl.u32 %v97, 7
  %v99 = vsub.s32 0, %v98
  %v100 = vrot.slane %v95, %v99
  %v166 = vunpack.c.l.b16 %v15
  %v167 = vunpack.c.l.b16 %v16
  %v168 = vunpack.c.l.b16 %v17
  %v169 = vunpack.c.l.b16 %v18
  %v170 = vunpack.c.l.b16 %v19
  %v171 = vunpack.c.l.b16 %v20
  %v172 = vunpack.c.l.b16 %v21
  %v173 = vunpack.c.l.b16 %v22
  %v174 = vunpack.c.l.b16 %v23
  %v175 = vunpack.c.l.b16 %v24
  %v176 = vunpack.c.l.b16 %v25
  %v177 = vunpack.c.l.b16 %v26
  %v178 = vunpack.c.l.b16 %v27
  %v179 = vunpack.c.l.b16 %v28
  %v180 = vunpack.c.l.b16 %v29
  %v181 = vunpack.c.l.b16 %v30
  %v182 = vunpack.c.l.b16 %v31
  %v183 = vunpack.c.l.b16 %v32
  %v184 = vunpack.c.l.b16 %v33
  %v185 = vunpack.c.l.b16 %v34
  %v186 = vunpack.c.l.b16 %v35
  %v187 = vunpack.c.l.b16 %v36
  %v188 = vunpack.c.l.b16 %v37
  %v189 = vunpack.c.l.b16 %v38
  %v190 = vunpack.c.l.b16 %v39
  %v191 = vunpack.c.l.b16 %v40
  %v192 = vunpack.c.l.b16 %v41
  %v193 = vunpack.c.l.b16 %v42
  %v194 = vunpack.c.l.b16 %v43
  %v195 = vunpack.c.l.b16 %v44
  %v196 = vunpack.c.l.b16 %v45
  %v197 = vunpack.c.l.b16 %v46
  %v198 = vunpack.c.l.b16 %v47
  %v199 = vunpack.c.l.b16 %v48
  %v200 = vunpack.c.l.b16 %v49
  %v201 = vunpack.c.l.b16 %v50
  %v202 = vunpack.c.l.b16 %v51
  %v203 = vunpack.c.l.b16 %v52
  %v204 = vunpack.c.l.b16 %v53
  %v205 = vunpack.c.l.b16 %v54
  %v206 = vunpack.c.l.b16 %v55
  %v207 = vunpack.c.l.b16 %v56
  %v208 = vunpack.c.l.b16 %v57
  %v209 = vunpack.c.l.b16 %v58
  %v210 = vunpack.c.l.b16 %v59
  %v211 = vunpack.c.l.b16 %v60
  %v212 = vunpack.c.l.b16 %v61
  %v213 = vunpack.c.l.b16 %v62
  %v214 = vunpack.c.l.b16 %v63
  %v215 = vunpack.c.l.b16 %v64
  %v216 = vunpack.c.l.b16 %v65
  %v217 = vunpack.c.l.b16 %v66
  %v218 = vunpack.c.l.b16 %v67
  %v219 = vunpack.c.l.b16 %v68
  %v220 = vunpack.c.l.b16 %v69
  %v221 = vunpack.c.l.b16 %v70
  %v222 = vunpack.c.l.b16 %v71
  %v223 = vunpack.c.l.b16 %v72
  %v224 = vunpack.c.l.b16 %v73
  %v225 = vunpack.c.l.b16 %v74
  %v226 = vunpack.c.l.b16 %v75
  %v227 = vunpack.c.l.b16 %v76
  %v228 = vunpack.c.l.b16 %v77
  %v229 = vunpack.c.l.b16 %v78
  %v230 = vpack.c.b16 %v167, %v166
  %v231 = vpack.c.b16 %v169, %v168
  %v232 = vpack.c.b16 %v171, %v170
  %v233 = vpack.c.b16 %v173, %v172
  %v234 = vpack.c.b16 %v175, %v174
  %v235 = vpack.c.b16 %v177, %v176
  %v236 = vpack.c.b16 %v179, %v178
  %v237 = vpack.c.b16 %v181, %v180
  %v238 = vpack.c.b16 %v183, %v182
  %v239 = vpack.c.b16 %v185, %v184
  %v240 = vpack.c.b16 %v187, %v186
  %v241 = vpack.c.b16 %v189, %v188
  %v242 = vpack.c.b16 %v191, %v190
  %v243 = vpack.c.b16 %v193, %v192
  %v244 = vpack.c.b16 %v195, %v194
  %v245 = vpack.c.b16 %v197, %v196
  %v246 = vpack.c.b16 %v199, %v198
  %v247 = vpack.c.b16 %v201, %v200
  %v248 = vpack.c.b16 %v203, %v202
  %v249 = vpack.c.b16 %v205, %v204
  %v250 = vpack.c.b16 %v207, %v206
  %v251 = vpack.c.b16 %v209, %v208
  %v252 = vpack.c.b16 %v211, %v210
  %v253 = vpack.c.b16 %v213, %v212
  %v254 = vpack.c.b16 %v215, %v214
  %v255 = vpack.c.b16 %v217, %v216
  %v256 = vpack.c.b16 %v219, %v218
  %v257 = vpack.c.b16 %v221, %v220
  %v258 = vpack.c.b16 %v223, %v222
  %v259 = vpack.c.b16 %v225, %v224
  %v260 = vpack.c.b16 %v227, %v226
  %v261 = vpack.c.b16 %v229, %v228
  %v310 = vunpack.c.l.b16 %v79
  %v311 = vunpack.c.l.b16 %v80
  %v312 = vunpack.c.l.b16 %v81
  %v313 = vunpack.c.l.b16 %v82
  %v314 = vunpack.c.l.b16 %v83
  %v315 = vunpack.c.l.b16 %v84
  %v316 = vunpack.c.l.b16 %v85
  %v317 = vunpack.c.l.b16 %v86
  %v318 = vunpack.c.l.b16 %v87
  %v319 = vunpack.c.l.b16 %v88
  %v320 = vunpack.c.l.b16 %v89
  %v321 = vunpack.c.l.b16 %v90
  %v322 = vunpack.c.l.b16 %v91
  %v323 = vunpack.c.l.b16 %v92
  %v324 = vunpack.c.l.b16 %v93
  %v325 = vunpack.c.l.b16 %v94
  %v326 = vpack.c.b16 %v311, %v310
  %v327 = vpack.c.b16 %v313, %v312
  %v328 = vpack.c.b16 %v315, %v314
  %v329 = vpack.c.b16 %v317, %v316
  %v330 = vpack.c.b16 %v319, %v318
  %v331 = vpack.c.b16 %v321, %v320
  %v332 = vpack.c.b16 %v323, %v322
  %v333 = vpack.c.b16 %v325, %v324
  %342 = vmatprep.subr.bf16.mxu0 0
  %343 = vmatpush1.bf16.msra.mxu0 %v333
  %344 = vmatprep.subr.bf16.mxu0 0
  %345 = vmatpush1.bf16.msra.mxu0 %v332
  %346 = vmatprep.subr.bf16.mxu0 0
  %347 = vmatpush1.bf16.msra.mxu0 %v331
  %348 = vmatprep.subr.bf16.mxu0 0
  %349 = vmatpush1.bf16.msra.mxu0 %v330
  %350 = vmatprep.subr.bf16.mxu0 0
  %351 = vmatpush1.bf16.msra.mxu0 %v329
  %352 = vmatprep.subr.bf16.mxu0 0
  %353 = vmatpush1.bf16.msra.mxu0 %v328
  %354 = vmatprep.subr.bf16.mxu0 0
  %355 = vmatpush1.bf16.msra.mxu0 %v327
  %356 = vmatprep.subr.bf16.mxu0 0
  %357 = vmatpush1.bf16.msra.mxu0 %v326
  %358 = vmatprep.subr.bf16.mxu0 0
  %359 = vmatpush2.bf16.msra.mxu0 0
  %360 = vmatprep.subr.bf16.mxu0 0
  %361 = vmatpush2.bf16.msra.mxu0 0
  %362 = vmatprep.subr.bf16.mxu0 0
  %363 = vmatpush2.bf16.msra.mxu0 0
  %364 = vmatprep.subr.bf16.mxu0 0
  %365 = vmatpush2.bf16.msra.mxu0 0
  %366 = vmatprep.subr.bf16.mxu0 0
  %367 = vmatpush2.bf16.msra.mxu0 0
  %368 = vmatprep.subr.bf16.mxu0 0
  %369 = vmatpush2.bf16.msra.mxu0 0
  %370 = vmatprep.subr.bf16.mxu0 0
  %371 = vmatpush2.bf16.msra.mxu0 0
  %372 = vmatprep.subr.bf16.mxu0 0
  %373 = vmatpush2.bf16.msra.mxu0 0
  %374 = vmatprep.mubr.bf16.mxu0 0
  %375 = vmatmul.mubr.bf16.gmra.mxu0 %v230
  %v376 = vpop.f32.mrf.mxu0
  %v377 = vadd.f32 %v100, %v376
  %v378 = vpop.f32.mrf.mxu0
  %v379 = vpop.f32.mrf.mxu0
  %v380 = vadd.f32 %v100, %v379
  %v381 = vpop.f32.mrf.mxu0
  %382 = vmatprep.mubr.bf16.mxu0 0
  %383 = vmatmul.mubr.bf16.gmra.mxu0 %v231
  %v384 = vpop.f32.mrf.mxu0
  %v385 = vadd.f32 %v100, %v384
  %v386 = vpop.f32.mrf.mxu0
  %v387 = vpop.f32.mrf.mxu0
  %v388 = vadd.f32 %v100, %v387
  %v389 = vpop.f32.mrf.mxu0
  %390 = vmatprep.mubr.bf16.mxu0 0
  %391 = vmatmul.mubr.bf16.gmra.mxu0 %v232
  %v392 = vpop.f32.mrf.mxu0
  %v393 = vadd.f32 %v100, %v392
  %v394 = vpop.f32.mrf.mxu0
  %v395 = vpop.f32.mrf.mxu0
  %v396 = vadd.f32 %v100, %v395
  %v397 = vpop.f32.mrf.mxu0
  %398 = vmatprep.mubr.bf16.mxu0 0
  %399 = vmatmul.mubr.bf16.gmra.mxu0 %v233
  %v400 = vpop.f32.mrf.mxu0
  %v401 = vadd.f32 %v100, %v400
  %v402 = vpop.f32.mrf.mxu0
  %v403 = vpop.f32.mrf.mxu0
  %v404 = vadd.f32 %v100, %v403
  %v405 = vpop.f32.mrf.mxu0
  %406 = vmatprep.mubr.bf16.mxu0 0
  %407 = vmatmul.mubr.bf16.gmra.mxu0 %v234
  %v408 = vpop.f32.mrf.mxu0
  %v409 = vadd.f32 %v100, %v408
  %v410 = vpop.f32.mrf.mxu0
  %v411 = vpop.f32.mrf.mxu0
  %v412 = vadd.f32 %v100, %v411
  %v413 = vpop.f32.mrf.mxu0
  %414 = vmatprep.mubr.bf16.mxu0 0
  %415 = vmatmul.mubr.bf16.gmra.mxu0 %v235
  %v416 = vpop.f32.mrf.mxu0
  %v417 = vadd.f32 %v100, %v416
  %v418 = vpop.f32.mrf.mxu0
  %v419 = vpop.f32.mrf.mxu0
  %v420 = vadd.f32 %v100, %v419
  %v421 = vpop.f32.mrf.mxu0
  %422 = vmatprep.mubr.bf16.mxu0 0
  %423 = vmatmul.mubr.bf16.gmra.mxu0 %v236
  %v424 = vpop.f32.mrf.mxu0
  %v425 = vadd.f32 %v100, %v424
  %v426 = vpop.f32.mrf.mxu0
  %v427 = vpop.f32.mrf.mxu0
  %v428 = vadd.f32 %v100, %v427
  %v429 = vpop.f32.mrf.mxu0
  %430 = vmatprep.mubr.bf16.mxu0 0
  %431 = vmatmul.mubr.bf16.gmra.mxu0 %v237
  %v432 = vpop.f32.mrf.mxu0
  %v433 = vadd.f32 %v100, %v432
  %v434 = vpop.f32.mrf.mxu0
  %v435 = vpop.f32.mrf.mxu0
  %v436 = vadd.f32 %v100, %v435
  %v437 = vpop.f32.mrf.mxu0
  %438 = vmatprep.mubr.bf16.mxu0 0
  %439 = vmatmul.mubr.bf16.gmra.mxu0 %v238
  %v440 = vpop.f32.mrf.mxu0
  %v441 = vadd.f32 %v100, %v440
  %v442 = vpop.f32.mrf.mxu0
  %v443 = vpop.f32.mrf.mxu0
  %v444 = vadd.f32 %v100, %v443
  %v445 = vpop.f32.mrf.mxu0
  %446 = vmatprep.mubr.bf16.mxu0 0
  %447 = vmatmul.mubr.bf16.gmra.mxu0 %v239
  %v448 = vpop.f32.mrf.mxu0
  %v449 = vadd.f32 %v100, %v448
  %v450 = vpop.f32.mrf.mxu0
  %v451 = vpop.f32.mrf.mxu0
  %v452 = vadd.f32 %v100, %v451
  %v453 = vpop.f32.mrf.mxu0
  %454 = vmatprep.mubr.bf16.mxu0 0
  %455 = vmatmul.mubr.bf16.gmra.mxu0 %v240
  %v456 = vpop.f32.mrf.mxu0
  %v457 = vadd.f32 %v100, %v456
  %v458 = vpop.f32.mrf.mxu0
  %v459 = vpop.f32.mrf.mxu0
  %v460 = vadd.f32 %v100, %v459
  %v461 = vpop.f32.mrf.mxu0
  %462 = vmatprep.mubr.bf16.mxu0 0
  %463 = vmatmul.mubr.bf16.gmra.mxu0 %v241
  %v464 = vpop.f32.mrf.mxu0
  %v465 = vadd.f32 %v100, %v464
  %v466 = vpop.f32.mrf.mxu0
  %v467 = vpop.f32.mrf.mxu0
  %v468 = vadd.f32 %v100, %v467
  %v469 = vpop.f32.mrf.mxu0
  %470 = vmatprep.mubr.bf16.mxu0 0
  %471 = vmatmul.mubr.bf16.gmra.mxu0 %v242
  %v472 = vpop.f32.mrf.mxu0
  %v473 = vadd.f32 %v100, %v472
  %v474 = vpop.f32.mrf.mxu0
  %v475 = vpop.f32.mrf.mxu0
  %v476 = vadd.f32 %v100, %v475
  %v477 = vpop.f32.mrf.mxu0
  %478 = vmatprep.mubr.bf16.mxu0 0
  %479 = vmatmul.mubr.bf16.gmra.mxu0 %v243
  %v480 = vpop.f32.mrf.mxu0
  %v481 = vadd.f32 %v100, %v480
  %v482 = vpop.f32.mrf.mxu0
  %v483 = vpop.f32.mrf.mxu0
  %v484 = vadd.f32 %v100, %v483
  %v485 = vpop.f32.mrf.mxu0
  %486 = vmatprep.mubr.bf16.mxu0 0
  %487 = vmatmul.mubr.bf16.gmra.mxu0 %v244
  %v488 = vpop.f32.mrf.mxu0
  %v489 = vadd.f32 %v100, %v488
  %v490 = vpop.f32.mrf.mxu0
  %v491 = vpop.f32.mrf.mxu0
  %v492 = vadd.f32 %v100, %v491
  %v493 = vpop.f32.mrf.mxu0
  %494 = vmatprep.mubr.bf16.mxu0 0
  %495 = vmatmul.mubr.bf16.gmra.mxu0 %v245
  %v496 = vpop.f32.mrf.mxu0
  %v497 = vadd.f32 %v100, %v496
  %v498 = vpop.f32.mrf.mxu0
  %v499 = vpop.f32.mrf.mxu0
  %v500 = vadd.f32 %v100, %v499
  %v501 = vpop.f32.mrf.mxu0
  %502 = vmatprep.mubr.bf16.mxu0 0
  %503 = vmatmul.mubr.bf16.gmra.mxu0 %v246
  %v504 = vpop.f32.mrf.mxu0
  %v505 = vadd.f32 %v100, %v504
  %v506 = vpop.f32.mrf.mxu0
  %v507 = vpop.f32.mrf.mxu0
  %v508 = vadd.f32 %v100, %v507
  %v509 = vpop.f32.mrf.mxu0
  %510 = vmatprep.mubr.bf16.mxu0 0
  %511 = vmatmul.mubr.bf16.gmra.mxu0 %v247
  %v512 = vpop.f32.mrf.mxu0
  %v513 = vadd.f32 %v100, %v512
  %v514 = vpop.f32.mrf.mxu0
  %v515 = vpop.f32.mrf.mxu0
  %v516 = vadd.f32 %v100, %v515
  %v517 = vpop.f32.mrf.mxu0
  %518 = vmatprep.mubr.bf16.mxu0 0
  %519 = vmatmul.mubr.bf16.gmra.mxu0 %v248
  %v520 = vpop.f32.mrf.mxu0
  %v521 = vadd.f32 %v100, %v520
  %v522 = vpop.f32.mrf.mxu0
  %v523 = vpop.f32.mrf.mxu0
  %v524 = vadd.f32 %v100, %v523
  %v525 = vpop.f32.mrf.mxu0
  %526 = vmatprep.mubr.bf16.mxu0 0
  %527 = vmatmul.mubr.bf16.gmra.mxu0 %v249
  %v528 = vpop.f32.mrf.mxu0
  %v529 = vadd.f32 %v100, %v528
  %v530 = vpop.f32.mrf.mxu0
  %v531 = vpop.f32.mrf.mxu0
  %v532 = vadd.f32 %v100, %v531
  %v533 = vpop.f32.mrf.mxu0
  %534 = vmatprep.mubr.bf16.mxu0 0
  %535 = vmatmul.mubr.bf16.gmra.mxu0 %v250
  %v536 = vpop.f32.mrf.mxu0
  %v537 = vadd.f32 %v100, %v536
  %v538 = vpop.f32.mrf.mxu0
  %v539 = vpop.f32.mrf.mxu0
  %v540 = vadd.f32 %v100, %v539
  %v541 = vpop.f32.mrf.mxu0
  %542 = vmatprep.mubr.bf16.mxu0 0
  %543 = vmatmul.mubr.bf16.gmra.mxu0 %v251
  %v544 = vpop.f32.mrf.mxu0
  %v545 = vadd.f32 %v100, %v544
  %v546 = vpop.f32.mrf.mxu0
  %v547 = vpop.f32.mrf.mxu0
  %v548 = vadd.f32 %v100, %v547
  %v549 = vpop.f32.mrf.mxu0
  %550 = vmatprep.mubr.bf16.mxu0 0
  %551 = vmatmul.mubr.bf16.gmra.mxu0 %v252
  %v552 = vpop.f32.mrf.mxu0
  %v553 = vadd.f32 %v100, %v552
  %v554 = vpop.f32.mrf.mxu0
  %v555 = vpop.f32.mrf.mxu0
  %v556 = vadd.f32 %v100, %v555
  %v557 = vpop.f32.mrf.mxu0
  %558 = vmatprep.mubr.bf16.mxu0 0
  %559 = vmatmul.mubr.bf16.gmra.mxu0 %v253
  %v560 = vpop.f32.mrf.mxu0
  %v561 = vadd.f32 %v100, %v560
  %v562 = vpop.f32.mrf.mxu0
  %v563 = vpop.f32.mrf.mxu0
  %v564 = vadd.f32 %v100, %v563
  %v565 = vpop.f32.mrf.mxu0
  %566 = vmatprep.mubr.bf16.mxu0 0
  %567 = vmatmul.mubr.bf16.gmra.mxu0 %v254
  %v568 = vpop.f32.mrf.mxu0
  %v569 = vadd.f32 %v100, %v568
  %v570 = vpop.f32.mrf.mxu0
  %v571 = vpop.f32.mrf.mxu0
  %v572 = vadd.f32 %v100, %v571
  %v573 = vpop.f32.mrf.mxu0
  %574 = vmatprep.mubr.bf16.mxu0 0
  %575 = vmatmul.mubr.bf16.gmra.mxu0 %v255
  %v576 = vpop.f32.mrf.mxu0
  %v577 = vadd.f32 %v100, %v576
  %v578 = vpop.f32.mrf.mxu0
  %v579 = vpop.f32.mrf.mxu0
  %v580 = vadd.f32 %v100, %v579
  %v581 = vpop.f32.mrf.mxu0
  %582 = vmatprep.mubr.bf16.mxu0 0
  %583 = vmatmul.mubr.bf16.gmra.mxu0 %v256
  %v584 = vpop.f32.mrf.mxu0
  %v585 = vadd.f32 %v100, %v584
  %v586 = vpop.f32.mrf.mxu0
  %v587 = vpop.f32.mrf.mxu0
  %v588 = vadd.f32 %v100, %v587
  %v589 = vpop.f32.mrf.mxu0
  %590 = vmatprep.mubr.bf16.mxu0 0
  %591 = vmatmul.mubr.bf16.gmra.mxu0 %v257
  %v592 = vpop.f32.mrf.mxu0
  %v593 = vadd.f32 %v100, %v592
  %v594 = vpop.f32.mrf.mxu0
  %v595 = vpop.f32.mrf.mxu0
  %v596 = vadd.f32 %v100, %v595
  %v597 = vpop.f32.mrf.mxu0
  %598 = vmatprep.mubr.bf16.mxu0 0
  %599 = vmatmul.mubr.bf16.gmra.mxu0 %v258
  %v600 = vpop.f32.mrf.mxu0
  %v601 = vadd.f32 %v100, %v600
  %v602 = vpop.f32.mrf.mxu0
  %v603 = vpop.f32.mrf.mxu0
  %v604 = vadd.f32 %v100, %v603
  %v605 = vpop.f32.mrf.mxu0
  %606 = vmatprep.mubr.bf16.mxu0 0
  %607 = vmatmul.mubr.bf16.gmra.mxu0 %v259
  %v608 = vpop.f32.mrf.mxu0
  %v609 = vadd.f32 %v100, %v608
  %v610 = vpop.f32.mrf.mxu0
  %v611 = vpop.f32.mrf.mxu0
  %v612 = vadd.f32 %v100, %v611
  %v613 = vpop.f32.mrf.mxu0
  %614 = vmatprep.mubr.bf16.mxu0 0
  %615 = vmatmul.mubr.bf16.gmra.mxu0 %v260
  %v616 = vpop.f32.mrf.mxu0
  %v617 = vadd.f32 %v100, %v616
  %v618 = vpop.f32.mrf.mxu0
  %v619 = vpop.f32.mrf.mxu0
  %v620 = vadd.f32 %v100, %v619
  %v621 = vpop.f32.mrf.mxu0
  %622 = vmatprep.mubr.bf16.mxu0 0
  %623 = vmatmul.mubr.bf16.gmra.mxu0 %v261
  %v624 = vpop.f32.mrf.mxu0
  %v625 = vadd.f32 %v100, %v624
  %v626 = vpop.f32.mrf.mxu0
  %v627 = vpop.f32.mrf.mxu0
  %v628 = vadd.f32 %v100, %v627
  %v629 = vpop.f32.mrf.mxu0
  %630 = vdwg.mxu0
  %v631 = vmax.f32 %v377, 0.0
  %v632 = vmax.f32 %v380, 0.0
  %v633 = vmax.f32 %v385, 0.0
  %v634 = vmax.f32 %v388, 0.0
  %v635 = vmax.f32 %v393, 0.0
  %v636 = vmax.f32 %v396, 0.0
  %v637 = vmax.f32 %v401, 0.0
  %v638 = vmax.f32 %v404, 0.0
  %v639 = vmax.f32 %v409, 0.0
  %v640 = vmax.f32 %v412, 0.0
  %v641 = vmax.f32 %v417, 0.0
  %v642 = vmax.f32 %v420, 0.0
  %v643 = vmax.f32 %v425, 0.0
  %v644 = vmax.f32 %v428, 0.0
  %v645 = vmax.f32 %v433, 0.0
  %v646 = vmax.f32 %v436, 0.0
  %v647 = vmax.f32 %v441, 0.0
  %v648 = vmax.f32 %v444, 0.0
  %v649 = vmax.f32 %v449, 0.0
  %v650 = vmax.f32 %v452, 0.0
  %v651 = vmax.f32 %v457, 0.0
  %v652 = vmax.f32 %v460, 0.0
  %v653 = vmax.f32 %v465, 0.0
  %v654 = vmax.f32 %v468, 0.0
  %v655 = vmax.f32 %v473, 0.0
  %v656 = vmax.f32 %v476, 0.0
  %v657 = vmax.f32 %v481, 0.0
  %v658 = vmax.f32 %v484, 0.0
  %v659 = vmax.f32 %v489, 0.0
  %v660 = vmax.f32 %v492, 0.0
  %v661 = vmax.f32 %v497, 0.0
  %v662 = vmax.f32 %v500, 0.0
  %v663 = vmax.f32 %v505, 0.0
  %v664 = vmax.f32 %v508, 0.0
  %v665 = vmax.f32 %v513, 0.0
  %v666 = vmax.f32 %v516, 0.0
  %v667 = vmax.f32 %v521, 0.0
  %v668 = vmax.f32 %v524, 0.0
  %v669 = vmax.f32 %v529, 0.0
  %v670 = vmax.f32 %v532, 0.0
  %v671 = vmax.f32 %v537, 0.0
  %v672 = vmax.f32 %v540, 0.0
  %v673 = vmax.f32 %v545, 0.0
  %v674 = vmax.f32 %v548, 0.0
  %v675 = vmax.f32 %v553, 0.0
  %v676 = vmax.f32 %v556, 0.0
  %v677 = vmax.f32 %v561, 0.0
  %v678 = vmax.f32 %v564, 0.0
  %v679 = vmax.f32 %v569, 0.0
  %v680 = vmax.f32 %v572, 0.0
  %v681 = vmax.f32 %v577, 0.0
  %v682 = vmax.f32 %v580, 0.0
  %v683 = vmax.f32 %v585, 0.0
  %v684 = vmax.f32 %v588, 0.0
  %v685 = vmax.f32 %v593, 0.0
  %v686 = vmax.f32 %v596, 0.0
  %v687 = vmax.f32 %v601, 0.0
  %v688 = vmax.f32 %v604, 0.0
  %v689 = vmax.f32 %v609, 0.0
  %v690 = vmax.f32 %v612, 0.0
  %v691 = vmax.f32 %v617, 0.0
  %v692 = vmax.f32 %v620, 0.0
  %v693 = vmax.f32 %v625, 0.0
  %v694 = vmax.f32 %v628, 0.0
  %v695 = vpack.c.bf16 %v632, %v631
  %v696 = vpack.c.bf16 %v634, %v633
  %v697 = vpack.c.bf16 %v636, %v635
  %v698 = vpack.c.bf16 %v638, %v637
  %v699 = vpack.c.bf16 %v640, %v639
  %v700 = vpack.c.bf16 %v642, %v641
  %v701 = vpack.c.bf16 %v644, %v643
  %v702 = vpack.c.bf16 %v646, %v645
  %v703 = vpack.c.bf16 %v648, %v647
  %v704 = vpack.c.bf16 %v650, %v649
  %v705 = vpack.c.bf16 %v652, %v651
  %v706 = vpack.c.bf16 %v654, %v653
  %v707 = vpack.c.bf16 %v656, %v655
  %v708 = vpack.c.bf16 %v658, %v657
  %v709 = vpack.c.bf16 %v660, %v659
  %v710 = vpack.c.bf16 %v662, %v661
  %v711 = vpack.c.bf16 %v664, %v663
  %v712 = vpack.c.bf16 %v666, %v665
  %v713 = vpack.c.bf16 %v668, %v667
  %v714 = vpack.c.bf16 %v670, %v669
  %v715 = vpack.c.bf16 %v672, %v671
  %v716 = vpack.c.bf16 %v674, %v673
  %v717 = vpack.c.bf16 %v676, %v675
  %v718 = vpack.c.bf16 %v678, %v677
  %v719 = vpack.c.bf16 %v680, %v679
  %v720 = vpack.c.bf16 %v682, %v681
  %v721 = vpack.c.bf16 %v684, %v683
  %v722 = vpack.c.bf16 %v686, %v685
  %v723 = vpack.c.bf16 %v688, %v687
  %v724 = vpack.c.bf16 %v690, %v689
  %v725 = vpack.c.bf16 %v692, %v691
  %v726 = vpack.c.bf16 %v694, %v693
  %v759 = vunpack.c.l.b16 %v695
  %v760 = vunpack.c.h.b16 %v695
  %v761 = vunpack.c.l.b16 %v696
  %v762 = vunpack.c.h.b16 %v696
  %v763 = vunpack.c.l.b16 %v697
  %v764 = vunpack.c.h.b16 %v697
  %v765 = vunpack.c.l.b16 %v698
  %v766 = vunpack.c.h.b16 %v698
  %v767 = vunpack.c.l.b16 %v699
  %v768 = vunpack.c.h.b16 %v699
  %v769 = vunpack.c.l.b16 %v700
  %v770 = vunpack.c.h.b16 %v700
  %v771 = vunpack.c.l.b16 %v701
  %v772 = vunpack.c.h.b16 %v701
  %v773 = vunpack.c.l.b16 %v702
  %v774 = vunpack.c.h.b16 %v702
  %v775 = vunpack.c.l.b16 %v703
  %v776 = vunpack.c.h.b16 %v703
  %v777 = vunpack.c.l.b16 %v704
  %v778 = vunpack.c.h.b16 %v704
  %v779 = vunpack.c.l.b16 %v705
  %v780 = vunpack.c.h.b16 %v705
  %v781 = vunpack.c.l.b16 %v706
  %v782 = vunpack.c.h.b16 %v706
  %v783 = vunpack.c.l.b16 %v707
  %v784 = vunpack.c.h.b16 %v707
  %v785 = vunpack.c.l.b16 %v708
  %v786 = vunpack.c.h.b16 %v708
  %v787 = vunpack.c.l.b16 %v709
  %v788 = vunpack.c.h.b16 %v709
  %v789 = vunpack.c.l.b16 %v710
  %v790 = vunpack.c.h.b16 %v710
  %v791 = vunpack.c.l.b16 %v711
  %v792 = vunpack.c.h.b16 %v711
  %v793 = vunpack.c.l.b16 %v712
  %v794 = vunpack.c.h.b16 %v712
  %v795 = vunpack.c.l.b16 %v713
  %v796 = vunpack.c.h.b16 %v713
  %v797 = vunpack.c.l.b16 %v714
  %v798 = vunpack.c.h.b16 %v714
  %v799 = vunpack.c.l.b16 %v715
  %v800 = vunpack.c.h.b16 %v715
  %v801 = vunpack.c.l.b16 %v716
  %v802 = vunpack.c.h.b16 %v716
  %v803 = vunpack.c.l.b16 %v717
  %v804 = vunpack.c.h.b16 %v717
  %v805 = vunpack.c.l.b16 %v718
  %v806 = vunpack.c.h.b16 %v718
  %v807 = vunpack.c.l.b16 %v719
  %v808 = vunpack.c.h.b16 %v719
  %v809 = vunpack.c.l.b16 %v720
  %v810 = vunpack.c.h.b16 %v720
  %v811 = vunpack.c.l.b16 %v721
  %v812 = vunpack.c.h.b16 %v721
  %v813 = vunpack.c.l.b16 %v722
  %v814 = vunpack.c.h.b16 %v722
  %v815 = vunpack.c.l.b16 %v723
  %v816 = vunpack.c.h.b16 %v723
  %v817 = vunpack.c.l.b16 %v724
  %v818 = vunpack.c.h.b16 %v724
  %v819 = vunpack.c.l.b16 %v725
  %v820 = vunpack.c.h.b16 %v725
  %v821 = vunpack.c.l.b16 %v726
  %v822 = vunpack.c.h.b16 %v726
  %v823 = vpack.c.b16 %v759, %v759
  %v824 = vpack.c.b16 %v760, %v760
  %v825 = vpack.c.b16 %v761, %v761
  %v826 = vpack.c.b16 %v762, %v762
  %v827 = vpack.c.b16 %v763, %v763
  %v828 = vpack.c.b16 %v764, %v764
  %v829 = vpack.c.b16 %v765, %v765
  %v830 = vpack.c.b16 %v766, %v766
  %v831 = vpack.c.b16 %v767, %v767
  %v832 = vpack.c.b16 %v768, %v768
  %v833 = vpack.c.b16 %v769, %v769
  %v834 = vpack.c.b16 %v770, %v770
  %v835 = vpack.c.b16 %v771, %v771
  %v836 = vpack.c.b16 %v772, %v772
  %v837 = vpack.c.b16 %v773, %v773
  %v838 = vpack.c.b16 %v774, %v774
  %v839 = vpack.c.b16 %v775, %v775
  %v840 = vpack.c.b16 %v776, %v776
  %v841 = vpack.c.b16 %v777, %v777
  %v842 = vpack.c.b16 %v778, %v778
  %v843 = vpack.c.b16 %v779, %v779
  %v844 = vpack.c.b16 %v780, %v780
  %v845 = vpack.c.b16 %v781, %v781
  %v846 = vpack.c.b16 %v782, %v782
  %v847 = vpack.c.b16 %v783, %v783
  %v848 = vpack.c.b16 %v784, %v784
  %v849 = vpack.c.b16 %v785, %v785
  %v850 = vpack.c.b16 %v786, %v786
  %v851 = vpack.c.b16 %v787, %v787
  %v852 = vpack.c.b16 %v788, %v788
  %v853 = vpack.c.b16 %v789, %v789
  %v854 = vpack.c.b16 %v790, %v790
  %v855 = vpack.c.b16 %v791, %v791
  %v856 = vpack.c.b16 %v792, %v792
  %v857 = vpack.c.b16 %v793, %v793
  %v858 = vpack.c.b16 %v794, %v794
  %v859 = vpack.c.b16 %v795, %v795
  %v860 = vpack.c.b16 %v796, %v796
  %v861 = vpack.c.b16 %v797, %v797
  %v862 = vpack.c.b16 %v798, %v798
  %v863 = vpack.c.b16 %v799, %v799
  %v864 = vpack.c.b16 %v800, %v800
  %v865 = vpack.c.b16 %v801, %v801
  %v866 = vpack.c.b16 %v802, %v802
  %v867 = vpack.c.b16 %v803, %v803
  %v868 = vpack.c.b16 %v804, %v804
  %v869 = vpack.c.b16 %v805, %v805
  %v870 = vpack.c.b16 %v806, %v806
  %v871 = vpack.c.b16 %v807, %v807
  %v872 = vpack.c.b16 %v808, %v808
  %v873 = vpack.c.b16 %v809, %v809
  %v874 = vpack.c.b16 %v810, %v810
  %v875 = vpack.c.b16 %v811, %v811
  %v876 = vpack.c.b16 %v812, %v812
  %v877 = vpack.c.b16 %v813, %v813
  %v878 = vpack.c.b16 %v814, %v814
  %v879 = vpack.c.b16 %v815, %v815
  %v880 = vpack.c.b16 %v816, %v816
  %v881 = vpack.c.b16 %v817, %v817
  %v882 = vpack.c.b16 %v818, %v818
  %v883 = vpack.c.b16 %v819, %v819
  %v884 = vpack.c.b16 %v820, %v820
  %v885 = vpack.c.b16 %v821, %v821
  %v886 = vpack.c.b16 %v822, %v822
  %vm951 = vcmask 125952
  %952 = vst.msk [vmem:[%s3] sm:$0xf] %vm951, %v823
  %953 = vst.msk [vmem:[%s3 + $0x4] sm:$0xf] %vm951, %v824
  %954 = vst.msk [vmem:[%s3 + $0x8] sm:$0xf] %vm951, %v825
  %955 = vst.msk [vmem:[%s3 + $0xc] sm:$0xf] %vm951, %v826
  %956 = vst.msk [vmem:[%s3 + $0x10] sm:$0xf] %vm951, %v827
  %957 = vst.msk [vmem:[%s3 + $0x14] sm:$0xf] %vm951, %v828
  %958 = vst.msk [vmem:[%s3 + $0x18] sm:$0xf] %vm951, %v829
  %959 = vst.msk [vmem:[%s3 + $0x1c] sm:$0xf] %vm951, %v830
  %960 = vst.msk [vmem:[%s3 + $0x20] sm:$0xf] %vm951, %v831
  %961 = vst.msk [vmem:[%s3 + $0x24] sm:$0xf] %vm951, %v832
  %962 = vst.msk [vmem:[%s3 + $0x28] sm:$0xf] %vm951, %v833
  %963 = vst.msk [vmem:[%s3 + $0x2c] sm:$0xf] %vm951, %v834
  %964 = vst.msk [vmem:[%s3 + $0x30] sm:$0xf] %vm951, %v835
  %965 = vst.msk [vmem:[%s3 + $0x34] sm:$0xf] %vm951, %v836
  %966 = vst.msk [vmem:[%s3 + $0x38] sm:$0xf] %vm951, %v837
  %967 = vst.msk [vmem:[%s3 + $0x3c] sm:$0xf] %vm951, %v838
  %968 = vst.msk [vmem:[%s3 + $0x40] sm:$0xf] %vm951, %v839
  %969 = vst.msk [vmem:[%s3 + $0x44] sm:$0xf] %vm951, %v840
  %970 = vst.msk [vmem:[%s3 + $0x48] sm:$0xf] %vm951, %v841
  %971 = vst.msk [vmem:[%s3 + $0x4c] sm:$0xf] %vm951, %v842
  %972 = vst.msk [vmem:[%s3 + $0x50] sm:$0xf] %vm951, %v843
  %973 = vst.msk [vmem:[%s3 + $0x54] sm:$0xf] %vm951, %v844
  %974 = vst.msk [vmem:[%s3 + $0x58] sm:$0xf] %vm951, %v845
  %975 = vst.msk [vmem:[%s3 + $0x5c] sm:$0xf] %vm951, %v846
  %976 = vst.msk [vmem:[%s3 + $0x60] sm:$0xf] %vm951, %v847
  %977 = vst.msk [vmem:[%s3 + $0x64] sm:$0xf] %vm951, %v848
  %978 = vst.msk [vmem:[%s3 + $0x68] sm:$0xf] %vm951, %v849
  %979 = vst.msk [vmem:[%s3 + $0x6c] sm:$0xf] %vm951, %v850
  %980 = vst.msk [vmem:[%s3 + $0x70] sm:$0xf] %vm951, %v851
  %981 = vst.msk [vmem:[%s3 + $0x74] sm:$0xf] %vm951, %v852
  %982 = vst.msk [vmem:[%s3 + $0x78] sm:$0xf] %vm951, %v853
  %983 = vst.msk [vmem:[%s3 + $0x7c] sm:$0xf] %vm951, %v854
  %984 = vst.msk [vmem:[%s3 + $0x80] sm:$0xf] %vm951, %v855
  %985 = vst.msk [vmem:[%s3 + $0x84] sm:$0xf] %vm951, %v856
  %986 = vst.msk [vmem:[%s3 + $0x88] sm:$0xf] %vm951, %v857
  %987 = vst.msk [vmem:[%s3 + $0x8c] sm:$0xf] %vm951, %v858
  %988 = vst.msk [vmem:[%s3 + $0x90] sm:$0xf] %vm951, %v859
  %989 = vst.msk [vmem:[%s3 + $0x94] sm:$0xf] %vm951, %v860
  %990 = vst.msk [vmem:[%s3 + $0x98] sm:$0xf] %vm951, %v861
  %991 = vst.msk [vmem:[%s3 + $0x9c] sm:$0xf] %vm951, %v862
  %992 = vst.msk [vmem:[%s3 + $0xa0] sm:$0xf] %vm951, %v863
  %993 = vst.msk [vmem:[%s3 + $0xa4] sm:$0xf] %vm951, %v864
  %994 = vst.msk [vmem:[%s3 + $0xa8] sm:$0xf] %vm951, %v865
  %995 = vst.msk [vmem:[%s3 + $0xac] sm:$0xf] %vm951, %v866
  %996 = vst.msk [vmem:[%s3 + $0xb0] sm:$0xf] %vm951, %v867
  %997 = vst.msk [vmem:[%s3 + $0xb4] sm:$0xf] %vm951, %v868
  %998 = vst.msk [vmem:[%s3 + $0xb8] sm:$0xf] %vm951, %v869
  %999 = vst.msk [vmem:[%s3 + $0xbc] sm:$0xf] %vm951, %v870
  %1000 = vst.msk [vmem:[%s3 + $0xc0] sm:$0xf] %vm951, %v871
  %1001 = vst.msk [vmem:[%s3 + $0xc4] sm:$0xf] %vm951, %v872
  %1002 = vst.msk [vmem:[%s3 + $0xc8] sm:$0xf] %vm951, %v873
  %1003 = vst.msk [vmem:[%s3 + $0xcc] sm:$0xf] %vm951, %v874
  %1004 = vst.msk [vmem:[%s3 + $0xd0] sm:$0xf] %vm951, %v875
  %1005 = vst.msk [vmem:[%s3 + $0xd4] sm:$0xf] %vm951, %v876
  %1006 = vst.msk [vmem:[%s3 + $0xd8] sm:$0xf] %vm951, %v877
  %1007 = vst.msk [vmem:[%s3 + $0xdc] sm:$0xf] %vm951, %v878
  %1008 = vst.msk [vmem:[%s3 + $0xe0] sm:$0xf] %vm951, %v879
  %1009 = vst.msk [vmem:[%s3 + $0xe4] sm:$0xf] %vm951, %v880
  %1010 = vst.msk [vmem:[%s3 + $0xe8] sm:$0xf] %vm951, %v881
  %1011 = vst.msk [vmem:[%s3 + $0xec] sm:$0xf] %vm951, %v882
  %1012 = vst.msk [vmem:[%s3 + $0xf0] sm:$0xf] %vm951, %v883
  %1013 = vst.msk [vmem:[%s3 + $0xf4] sm:$0xf] %vm951, %v884
  %1014 = vst.msk [vmem:[%s3 + $0xf8] sm:$0xf] %vm951, %v885
  %1015 = vst.msk [vmem:[%s3 + $0xfc] sm:$0xf] %vm951, %v886
  // Predicated region
  $region14: #{cnn_forward.3} parent=0 // pred_check
    _
  $region15: #{cnn_forward.3} parent=0 // pred_check_branch
    %1017 = sbr.rel (0) target = $region17
  $region16: #{cnn_forward.3} parent=0 // pred_region
    _
  $region17: #{cnn_forward.3} parent=0 // pred_fallthru
    _
  // Predicated region
  $region18: #{cnn_forward.3} parent=0 // pred_check
    _
  $region19: #{cnn_forward.3} parent=0 // pred_check_branch
    %1019 = sbr.rel (0) target = $region21
  $region20: #{cnn_forward.3} parent=0 // pred_region
    _
  $region21: #{cnn_forward.3} parent=0 // pred_fallthru
    _

// kernel: cnn_forward.4
$region0: #{cnn_forward.4}
  #allocation0 [shape = 'u32[]', space=smem, size = 0x4, offset = 0x4, fixed_abs, tag = 'smem constant byte address 0x4 - core index']
  #allocation1 [shape = 'u32[144,128]{1,0:T(1,128)}', space=vmem, size = 0x12000, scoped, tag = 'internal scratch']
  %s0 = inlined_call_operand.vmem [shape: bf16[128,512], index: 0, kind: input, shape index: {}]
  %s1 = inlined_call_operand.vmem [shape: bf16[512,64], index: 1, kind: input, shape index: {}]
  %s2 = inlined_call_operand.vmem [shape: f32[1,64], index: 2, kind: input, shape index: {}]
  %s3 = inlined_call_operand.vmem [shape: bf16[128,64], index: 3, kind: output, shape index: {}]
  %s4 = sld [smem:[#allocation0]]
  $region22: #{cnn_forward.4} parent=0
    _
  %s6 = ssub.s32 1, %s4
  %s7 = scalar_select 0, %s6, %s4
  // Predicated region
  $region2: #{cnn_forward.4} parent=0 // pred_check
    _
  $region3: #{cnn_forward.4} parent=0 // pred_check_branch
    %9 = sbr.rel (0) target = $region5
  $region4: #{cnn_forward.4} parent=0 // pred_region
    _
  $region5: #{cnn_forward.4} parent=0 // pred_fallthru
    _
  // Predicated region
  $region6: #{cnn_forward.4} parent=0 // pred_check
    _
  $region7: #{cnn_forward.4} parent=0 // pred_check_branch
    %11 = sbr.rel (0) target = $region9
  $region8: #{cnn_forward.4} parent=0 // pred_region
    _
  $region9: #{cnn_forward.4} parent=0 // pred_fallthru
    _
  // Predicated region
  $region10: #{cnn_forward.4} parent=0 // pred_check
    _
  $region11: #{cnn_forward.4} parent=0 // pred_check_branch
    %13 = sbr.rel (0) target = $region13
  $region12: #{cnn_forward.4} parent=0 // pred_region
    _
  $region13: #{cnn_forward.4} parent=0 // pred_fallthru
    _
  %v15 = vld [vmem:[%s0] sm:$0xff]
  %v16 = vld [vmem:[%s0 + $0x8] sm:$0xff]
  %v17 = vld [vmem:[%s0 + $0x10] sm:$0xff]
  %v18 = vld [vmem:[%s0 + $0x18] sm:$0xff]
  %v19 = vld [vmem:[%s0 + $0x20] sm:$0xff]
  %v20 = vld [vmem:[%s0 + $0x28] sm:$0xff]
  %v21 = vld [vmem:[%s0 + $0x30] sm:$0xff]
  %v22 = vld [vmem:[%s0 + $0x38] sm:$0xff]
  %v23 = vld [vmem:[%s0 + $0x40] sm:$0xff]
  %v24 = vld [vmem:[%s0 + $0x48] sm:$0xff]
  %v25 = vld [vmem:[%s0 + $0x50] sm:$0xff]
  %v26 = vld [vmem:[%s0 + $0x58] sm:$0xff]
  %v27 = vld [vmem:[%s0 + $0x60] sm:$0xff]
  %v28 = vld [vmem:[%s0 + $0x68] sm:$0xff]
  %v29 = vld [vmem:[%s0 + $0x70] sm:$0xff]
  %v30 = vld [vmem:[%s0 + $0x78] sm:$0xff]
  %v31 = vld [vmem:[%s0 + $0x80] sm:$0xff]
  %v32 = vld [vmem:[%s0 + $0x88] sm:$0xff]
  %v33 = vld [vmem:[%s0 + $0x90] sm:$0xff]
  %v34 = vld [vmem:[%s0 + $0x98] sm:$0xff]
  %v35 = vld [vmem:[%s0 + $0xa0] sm:$0xff]
  %v36 = vld [vmem:[%s0 + $0xa8] sm:$0xff]
  %v37 = vld [vmem:[%s0 + $0xb0] sm:$0xff]
  %v38 = vld [vmem:[%s0 + $0xb8] sm:$0xff]
  %v39 = vld [vmem:[%s0 + $0xc0] sm:$0xff]
  %v40 = vld [vmem:[%s0 + $0xc8] sm:$0xff]
  %v41 = vld [vmem:[%s0 + $0xd0] sm:$0xff]
  %v42 = vld [vmem:[%s0 + $0xd8] sm:$0xff]
  %v43 = vld [vmem:[%s0 + $0xe0] sm:$0xff]
  %v44 = vld [vmem:[%s0 + $0xe8] sm:$0xff]
  %v45 = vld [vmem:[%s0 + $0xf0] sm:$0xff]
  %v46 = vld [vmem:[%s0 + $0xf8] sm:$0xff]
  %v47 = vld [vmem:[%s1] sm:$0xf]
  %v48 = vld [vmem:[%s1 + $0x4] sm:$0xf]
  %v49 = vld [vmem:[%s1 + $0x8] sm:$0xf]
  %v50 = vld [vmem:[%s1 + $0xc] sm:$0xf]
  %v51 = vld [vmem:[%s1 + $0x10] sm:$0xf]
  %v52 = vld [vmem:[%s1 + $0x14] sm:$0xf]
  %v53 = vld [vmem:[%s1 + $0x18] sm:$0xf]
  %v54 = vld [vmem:[%s1 + $0x1c] sm:$0xf]
  %v55 = vld [vmem:[%s1 + $0x20] sm:$0xf]
  %v56 = vld [vmem:[%s1 + $0x24] sm:$0xf]
  %v57 = vld [vmem:[%s1 + $0x28] sm:$0xf]
  %v58 = vld [vmem:[%s1 + $0x2c] sm:$0xf]
  %v59 = vld [vmem:[%s1 + $0x30] sm:$0xf]
  %v60 = vld [vmem:[%s1 + $0x34] sm:$0xf]
  %v61 = vld [vmem:[%s1 + $0x38] sm:$0xf]
  %v62 = vld [vmem:[%s1 + $0x3c] sm:$0xf]
  %v63 = vld [vmem:[%s1 + $0x40] sm:$0xf]
  %v64 = vld [vmem:[%s1 + $0x44] sm:$0xf]
  %v65 = vld [vmem:[%s1 + $0x48] sm:$0xf]
  %v66 = vld [vmem:[%s1 + $0x4c] sm:$0xf]
  %v67 = vld [vmem:[%s1 + $0x50] sm:$0xf]
  %v68 = vld [vmem:[%s1 + $0x54] sm:$0xf]
  %v69 = vld [vmem:[%s1 + $0x58] sm:$0xf]
  %v70 = vld [vmem:[%s1 + $0x5c] sm:$0xf]
  %v71 = vld [vmem:[%s1 + $0x60] sm:$0xf]
  %v72 = vld [vmem:[%s1 + $0x64] sm:$0xf]
  %v73 = vld [vmem:[%s1 + $0x68] sm:$0xf]
  %v74 = vld [vmem:[%s1 + $0x6c] sm:$0xf]
  %v75 = vld [vmem:[%s1 + $0x70] sm:$0xf]
  %v76 = vld [vmem:[%s1 + $0x74] sm:$0xf]
  %v77 = vld [vmem:[%s1 + $0x78] sm:$0xf]
  %v78 = vld [vmem:[%s1 + $0x7c] sm:$0xf]
  %v79 = vld [vmem:[%s1 + $0x80] sm:$0xf]
  %v80 = vld [vmem:[%s1 + $0x84] sm:$0xf]
  %v81 = vld [vmem:[%s1 + $0x88] sm:$0xf]
  %v82 = vld [vmem:[%s1 + $0x8c] sm:$0xf]
  %v83 = vld [vmem:[%s1 + $0x90] sm:$0xf]
  %v84 = vld [vmem:[%s1 + $0x94] sm:$0xf]
  %v85 = vld [vmem:[%s1 + $0x98] sm:$0xf]
  %v86 = vld [vmem:[%s1 + $0x9c] sm:$0xf]
  %v87 = vld [vmem:[%s1 + $0xa0] sm:$0xf]
  %v88 = vld [vmem:[%s1 + $0xa4] sm:$0xf]
  %v89 = vld [vmem:[%s1 + $0xa8] sm:$0xf]
  %v90 = vld [vmem:[%s1 + $0xac] sm:$0xf]
  %v91 = vld [vmem:[%s1 + $0xb0] sm:$0xf]
  %v92 = vld [vmem:[%s1 + $0xb4] sm:$0xf]
  %v93 = vld [vmem:[%s1 + $0xb8] sm:$0xf]
  %v94 = vld [vmem:[%s1 + $0xbc] sm:$0xf]
  %v95 = vld [vmem:[%s1 + $0xc0] sm:$0xf]
  %v96 = vld [vmem:[%s1 + $0xc4] sm:$0xf]
  %v97 = vld [vmem:[%s1 + $0xc8] sm:$0xf]
  %v98 = vld [vmem:[%s1 + $0xcc] sm:$0xf]
  %v99 = vld [vmem:[%s1 + $0xd0] sm:$0xf]
  %v100 = vld [vmem:[%s1 + $0xd4] sm:$0xf]
  %v101 = vld [vmem:[%s1 + $0xd8] sm:$0xf]
  %v102 = vld [vmem:[%s1 + $0xdc] sm:$0xf]
  %v103 = vld [vmem:[%s1 + $0xe0] sm:$0xf]
  %v104 = vld [vmem:[%s1 + $0xe4] sm:$0xf]
  %v105 = vld [vmem:[%s1 + $0xe8] sm:$0xf]
  %v106 = vld [vmem:[%s1 + $0xec] sm:$0xf]
  %v107 = vld [vmem:[%s1 + $0xf0] sm:$0xf]
  %v108 = vld [vmem:[%s1 + $0xf4] sm:$0xf]
  %v109 = vld [vmem:[%s1 + $0xf8] sm:$0xf]
  %v110 = vld [vmem:[%s1 + $0xfc] sm:$0xf]
  %v111 = vld [vmem:[%s2] sm:$0x1]
  %v113 = vlaneseq
  %v114 = vshrl.u32 %v113, 7
  %v115 = vsub.s32 0, %v114
  %v116 = vrot.slane %v111, %v115
  %v150 = vunpack.c.l.b16 %v15
  %v151 = vunpack.c.h.b16 %v15
  %v152 = vunpack.c.l.b16 %v16
  %v153 = vunpack.c.h.b16 %v16
  %v154 = vunpack.c.l.b16 %v17
  %v155 = vunpack.c.h.b16 %v17
  %v156 = vunpack.c.l.b16 %v18
  %v157 = vunpack.c.h.b16 %v18
  %v158 = vunpack.c.l.b16 %v19
  %v159 = vunpack.c.h.b16 %v19
  %v160 = vunpack.c.l.b16 %v20
  %v161 = vunpack.c.h.b16 %v20
  %v162 = vunpack.c.l.b16 %v21
  %v163 = vunpack.c.h.b16 %v21
  %v164 = vunpack.c.l.b16 %v22
  %v165 = vunpack.c.h.b16 %v22
  %v166 = vunpack.c.l.b16 %v23
  %v167 = vunpack.c.h.b16 %v23
  %v168 = vunpack.c.l.b16 %v24
  %v169 = vunpack.c.h.b16 %v24
  %v170 = vunpack.c.l.b16 %v25
  %v171 = vunpack.c.h.b16 %v25
  %v172 = vunpack.c.l.b16 %v26
  %v173 = vunpack.c.h.b16 %v26
  %v174 = vunpack.c.l.b16 %v27
  %v175 = vunpack.c.h.b16 %v27
  %v176 = vunpack.c.l.b16 %v28
  %v177 = vunpack.c.h.b16 %v28
  %v178 = vunpack.c.l.b16 %v29
  %v179 = vunpack.c.h.b16 %v29
  %v180 = vunpack.c.l.b16 %v30
  %v181 = vunpack.c.h.b16 %v30
  %v182 = vunpack.c.l.b16 %v31
  %v183 = vunpack.c.h.b16 %v31
  %v184 = vunpack.c.l.b16 %v32
  %v185 = vunpack.c.h.b16 %v32
  %v186 = vunpack.c.l.b16 %v33
  %v187 = vunpack.c.h.b16 %v33
  %v188 = vunpack.c.l.b16 %v34
  %v189 = vunpack.c.h.b16 %v34
  %v190 = vunpack.c.l.b16 %v35
  %v191 = vunpack.c.h.b16 %v35
  %v192 = vunpack.c.l.b16 %v36
  %v193 = vunpack.c.h.b16 %v36
  %v194 = vunpack.c.l.b16 %v37
  %v195 = vunpack.c.h.b16 %v37
  %v196 = vunpack.c.l.b16 %v38
  %v197 = vunpack.c.h.b16 %v38
  %v198 = vunpack.c.l.b16 %v39
  %v199 = vunpack.c.h.b16 %v39
  %v200 = vunpack.c.l.b16 %v40
  %v201 = vunpack.c.h.b16 %v40
  %v202 = vunpack.c.l.b16 %v41
  %v203 = vunpack.c.h.b16 %v41
  %v204 = vunpack.c.l.b16 %v42
  %v205 = vunpack.c.h.b16 %v42
  %v206 = vunpack.c.l.b16 %v43
  %v207 = vunpack.c.h.b16 %v43
  %v208 = vunpack.c.l.b16 %v44
  %v209 = vunpack.c.h.b16 %v44
  %v210 = vunpack.c.l.b16 %v45
  %v211 = vunpack.c.h.b16 %v45
  %v212 = vunpack.c.l.b16 %v46
  %v213 = vunpack.c.h.b16 %v46
  %v214 = vpack.c.b16 %v154, %v150
  %v215 = vpack.c.b16 %v155, %v151
  %v216 = vpack.c.b16 %v156, %v152
  %v217 = vpack.c.b16 %v157, %v153
  %v218 = vpack.c.b16 %v162, %v158
  %v219 = vpack.c.b16 %v163, %v159
  %v220 = vpack.c.b16 %v164, %v160
  %v221 = vpack.c.b16 %v165, %v161
  %v222 = vpack.c.b16 %v170, %v166
  %v223 = vpack.c.b16 %v171, %v167
  %v224 = vpack.c.b16 %v172, %v168
  %v225 = vpack.c.b16 %v173, %v169
  %v226 = vpack.c.b16 %v178, %v174
  %v227 = vpack.c.b16 %v179, %v175
  %v228 = vpack.c.b16 %v180, %v176
  %v229 = vpack.c.b16 %v181, %v177
  %v230 = vpack.c.b16 %v186, %v182
  %v231 = vpack.c.b16 %v187, %v183
  %v232 = vpack.c.b16 %v188, %v184
  %v233 = vpack.c.b16 %v189, %v185
  %v234 = vpack.c.b16 %v194, %v190
  %v235 = vpack.c.b16 %v195, %v191
  %v236 = vpack.c.b16 %v196, %v192
  %v237 = vpack.c.b16 %v197, %v193
  %v238 = vpack.c.b16 %v202, %v198
  %v239 = vpack.c.b16 %v203, %v199
  %v240 = vpack.c.b16 %v204, %v200
  %v241 = vpack.c.b16 %v205, %v201
  %v242 = vpack.c.b16 %v210, %v206
  %v243 = vpack.c.b16 %v211, %v207
  %v244 = vpack.c.b16 %v212, %v208
  %v245 = vpack.c.b16 %v213, %v209
  %v342 = vunpack.c.l.b16 %v47
  %v343 = vunpack.c.l.b16 %v48
  %v344 = vunpack.c.l.b16 %v49
  %v345 = vunpack.c.l.b16 %v50
  %v346 = vunpack.c.l.b16 %v51
  %v347 = vunpack.c.l.b16 %v52
  %v348 = vunpack.c.l.b16 %v53
  %v349 = vunpack.c.l.b16 %v54
  %v350 = vunpack.c.l.b16 %v55
  %v351 = vunpack.c.l.b16 %v56
  %v352 = vunpack.c.l.b16 %v57
  %v353 = vunpack.c.l.b16 %v58
  %v354 = vunpack.c.l.b16 %v59
  %v355 = vunpack.c.l.b16 %v60
  %v356 = vunpack.c.l.b16 %v61
  %v357 = vunpack.c.l.b16 %v62
  %v358 = vunpack.c.l.b16 %v63
  %v359 = vunpack.c.l.b16 %v64
  %v360 = vunpack.c.l.b16 %v65
  %v361 = vunpack.c.l.b16 %v66
  %v362 = vunpack.c.l.b16 %v67
  %v363 = vunpack.c.l.b16 %v68
  %v364 = vunpack.c.l.b16 %v69
  %v365 = vunpack.c.l.b16 %v70
  %v366 = vunpack.c.l.b16 %v71
  %v367 = vunpack.c.l.b16 %v72
  %v368 = vunpack.c.l.b16 %v73
  %v369 = vunpack.c.l.b16 %v74
  %v370 = vunpack.c.l.b16 %v75
  %v371 = vunpack.c.l.b16 %v76
  %v372 = vunpack.c.l.b16 %v77
  %v373 = vunpack.c.l.b16 %v78
  %v374 = vunpack.c.l.b16 %v79
  %v375 = vunpack.c.l.b16 %v80
  %v376 = vunpack.c.l.b16 %v81
  %v377 = vunpack.c.l.b16 %v82
  %v378 = vunpack.c.l.b16 %v83
  %v379 = vunpack.c.l.b16 %v84
  %v380 = vunpack.c.l.b16 %v85
  %v381 = vunpack.c.l.b16 %v86
  %v382 = vunpack.c.l.b16 %v87
  %v383 = vunpack.c.l.b16 %v88
  %v384 = vunpack.c.l.b16 %v89
  %v385 = vunpack.c.l.b16 %v90
  %v386 = vunpack.c.l.b16 %v91
  %v387 = vunpack.c.l.b16 %v92
  %v388 = vunpack.c.l.b16 %v93
  %v389 = vunpack.c.l.b16 %v94
  %v390 = vunpack.c.l.b16 %v95
  %v391 = vunpack.c.l.b16 %v96
  %v392 = vunpack.c.l.b16 %v97
  %v393 = vunpack.c.l.b16 %v98
  %v394 = vunpack.c.l.b16 %v99
  %v395 = vunpack.c.l.b16 %v100
  %v396 = vunpack.c.l.b16 %v101
  %v397 = vunpack.c.l.b16 %v102
  %v398 = vunpack.c.l.b16 %v103
  %v399 = vunpack.c.l.b16 %v104
  %v400 = vunpack.c.l.b16 %v105
  %v401 = vunpack.c.l.b16 %v106
  %v402 = vunpack.c.l.b16 %v107
  %v403 = vunpack.c.l.b16 %v108
  %v404 = vunpack.c.l.b16 %v109
  %v405 = vunpack.c.l.b16 %v110
  %v406 = vpack.c.b16 %v343, %v342
  %v407 = vpack.c.b16 %v345, %v344
  %v408 = vpack.c.b16 %v347, %v346
  %v409 = vpack.c.b16 %v349, %v348
  %v410 = vpack.c.b16 %v351, %v350
  %v411 = vpack.c.b16 %v353, %v352
  %v412 = vpack.c.b16 %v355, %v354
  %v413 = vpack.c.b16 %v357, %v356
  %v414 = vpack.c.b16 %v359, %v358
  %v415 = vpack.c.b16 %v361, %v360
  %v416 = vpack.c.b16 %v363, %v362
  %v417 = vpack.c.b16 %v365, %v364
  %v418 = vpack.c.b16 %v367, %v366
  %v419 = vpack.c.b16 %v369, %v368
  %v420 = vpack.c.b16 %v371, %v370
  %v421 = vpack.c.b16 %v373, %v372
  %v422 = vpack.c.b16 %v375, %v374
  %v423 = vpack.c.b16 %v377, %v376
  %v424 = vpack.c.b16 %v379, %v378
  %v425 = vpack.c.b16 %v381, %v380
  %v426 = vpack.c.b16 %v383, %v382
  %v427 = vpack.c.b16 %v385, %v384
  %v428 = vpack.c.b16 %v387, %v386
  %v429 = vpack.c.b16 %v389, %v388
  %v430 = vpack.c.b16 %v391, %v390
  %v431 = vpack.c.b16 %v393, %v392
  %v432 = vpack.c.b16 %v395, %v394
  %v433 = vpack.c.b16 %v397, %v396
  %v434 = vpack.c.b16 %v399, %v398
  %v435 = vpack.c.b16 %v401, %v400
  %v436 = vpack.c.b16 %v403, %v402
  %v437 = vpack.c.b16 %v405, %v404
  %470 = vmatprep.subr.bf16.mxu0 0
  %471 = vmatpush1.bf16.msra.mxu0 %v413
  %472 = vmatprep.subr.bf16.mxu0 0
  %473 = vmatpush1.bf16.msra.mxu0 %v412
  %474 = vmatprep.subr.bf16.mxu0 0
  %475 = vmatpush1.bf16.msra.mxu0 %v411
  %476 = vmatprep.subr.bf16.mxu0 0
  %477 = vmatpush1.bf16.msra.mxu0 %v410
  %478 = vmatprep.subr.bf16.mxu0 0
  %479 = vmatpush1.bf16.msra.mxu0 %v409
  %480 = vmatprep.subr.bf16.mxu0 0
  %481 = vmatpush1.bf16.msra.mxu0 %v408
  %482 = vmatprep.subr.bf16.mxu0 0
  %483 = vmatpush1.bf16.msra.mxu0 %v407
  %484 = vmatprep.subr.bf16.mxu0 0
  %485 = vmatpush1.bf16.msra.mxu0 %v406
  %486 = vmatprep.subr.bf16.mxu0 0
  %487 = vmatpush2.bf16.msra.mxu0 %v421
  %488 = vmatprep.subr.bf16.mxu0 0
  %489 = vmatpush2.bf16.msra.mxu0 %v420
  %490 = vmatprep.subr.bf16.mxu0 0
  %491 = vmatpush2.bf16.msra.mxu0 %v419
  %492 = vmatprep.subr.bf16.mxu0 0
  %493 = vmatpush2.bf16.msra.mxu0 %v418
  %494 = vmatprep.subr.bf16.mxu0 0
  %495 = vmatpush2.bf16.msra.mxu0 %v417
  %496 = vmatprep.subr.bf16.mxu0 0
  %497 = vmatpush2.bf16.msra.mxu0 %v416
  %498 = vmatprep.subr.bf16.mxu0 0
  %499 = vmatpush2.bf16.msra.mxu0 %v415
  %500 = vmatprep.subr.bf16.mxu0 0
  %501 = vmatpush2.bf16.msra.mxu0 %v414
  %502 = vmatprep.mubr.bf16.mxu0 %v215
  %503 = vmatmul.mubr.bf16.gmra.mxu0 %v214
  %v504 = vpop.f32.mrf.mxu0
  %v505 = vadd.f32 %v116, %v504
  %v506 = vpop.f32.mrf.mxu0
  %v507 = vpop.f32.mrf.mxu0
  %v508 = vadd.f32 %v116, %v507
  %v509 = vpop.f32.mrf.mxu0
  %510 = vmatprep.mubr.bf16.mxu0 %v219
  %511 = vmatmul.mubr.bf16.gmra.mxu0 %v218
  %v512 = vpop.f32.mrf.mxu0
  %v513 = vadd.f32 %v116, %v512
  %v514 = vpop.f32.mrf.mxu0
  %v515 = vpop.f32.mrf.mxu0
  %v516 = vadd.f32 %v116, %v515
  %v517 = vpop.f32.mrf.mxu0
  %518 = vmatprep.mubr.bf16.mxu0 %v223
  %519 = vmatmul.mubr.bf16.gmra.mxu0 %v222
  %v520 = vpop.f32.mrf.mxu0
  %v521 = vadd.f32 %v116, %v520
  %v522 = vpop.f32.mrf.mxu0
  %v523 = vpop.f32.mrf.mxu0
  %v524 = vadd.f32 %v116, %v523
  %v525 = vpop.f32.mrf.mxu0
  %526 = vmatprep.mubr.bf16.mxu0 %v227
  %527 = vmatmul.mubr.bf16.gmra.mxu0 %v226
  %v528 = vpop.f32.mrf.mxu0
  %v529 = vadd.f32 %v116, %v528
  %v530 = vpop.f32.mrf.mxu0
  %v531 = vpop.f32.mrf.mxu0
  %v532 = vadd.f32 %v116, %v531
  %v533 = vpop.f32.mrf.mxu0
  %534 = vmatprep.mubr.bf16.mxu0 %v231
  %535 = vmatmul.mubr.bf16.gmra.mxu0 %v230
  %v536 = vpop.f32.mrf.mxu0
  %v537 = vadd.f32 %v116, %v536
  %v538 = vpop.f32.mrf.mxu0
  %v539 = vpop.f32.mrf.mxu0
  %v540 = vadd.f32 %v116, %v539
  %v541 = vpop.f32.mrf.mxu0
  %542 = vmatprep.mubr.bf16.mxu0 %v235
  %543 = vmatmul.mubr.bf16.gmra.mxu0 %v234
  %v544 = vpop.f32.mrf.mxu0
  %v545 = vadd.f32 %v116, %v544
  %v546 = vpop.f32.mrf.mxu0
  %v547 = vpop.f32.mrf.mxu0
  %v548 = vadd.f32 %v116, %v547
  %v549 = vpop.f32.mrf.mxu0
  %550 = vmatprep.mubr.bf16.mxu0 %v239
  %551 = vmatmul.mubr.bf16.gmra.mxu0 %v238
  %v552 = vpop.f32.mrf.mxu0
  %v553 = vadd.f32 %v116, %v552
  %v554 = vpop.f32.mrf.mxu0
  %v555 = vpop.f32.mrf.mxu0
  %v556 = vadd.f32 %v116, %v555
  %v557 = vpop.f32.mrf.mxu0
  %558 = vmatprep.mubr.bf16.mxu0 %v243
  %559 = vmatmul.mubr.bf16.gmra.mxu0 %v242
  %v560 = vpop.f32.mrf.mxu0
  %v561 = vadd.f32 %v116, %v560
  %v562 = vpop.f32.mrf.mxu0
  %v563 = vpop.f32.mrf.mxu0
  %v564 = vadd.f32 %v116, %v563
  %v565 = vpop.f32.mrf.mxu0
  %566 = vdwg.mxu0
  %567 = vmatprep.subr.bf16.mxu0 0
  %568 = vmatpush1.bf16.msra.mxu0 %v429
  %569 = vmatprep.subr.bf16.mxu0 0
  %570 = vmatpush1.bf16.msra.mxu0 %v428
  %571 = vmatprep.subr.bf16.mxu0 0
  %572 = vmatpush1.bf16.msra.mxu0 %v427
  %573 = vmatprep.subr.bf16.mxu0 0
  %574 = vmatpush1.bf16.msra.mxu0 %v426
  %575 = vmatprep.subr.bf16.mxu0 0
  %576 = vmatpush1.bf16.msra.mxu0 %v425
  %577 = vmatprep.subr.bf16.mxu0 0
  %578 = vmatpush1.bf16.msra.mxu0 %v424
  %579 = vmatprep.subr.bf16.mxu0 0
  %580 = vmatpush1.bf16.msra.mxu0 %v423
  %581 = vmatprep.subr.bf16.mxu0 0
  %582 = vmatpush1.bf16.msra.mxu0 %v422
  %583 = vmatprep.subr.bf16.mxu0 0
  %584 = vmatpush2.bf16.msra.mxu0 %v437
  %585 = vmatprep.subr.bf16.mxu0 0
  %586 = vmatpush2.bf16.msra.mxu0 %v436
  %587 = vmatprep.subr.bf16.mxu0 0
  %588 = vmatpush2.bf16.msra.mxu0 %v435
  %589 = vmatprep.subr.bf16.mxu0 0
  %590 = vmatpush2.bf16.msra.mxu0 %v434
  %591 = vmatprep.subr.bf16.mxu0 0
  %592 = vmatpush2.bf16.msra.mxu0 %v433
  %593 = vmatprep.subr.bf16.mxu0 0
  %594 = vmatpush2.bf16.msra.mxu0 %v432
  %595 = vmatprep.subr.bf16.mxu0 0
  %596 = vmatpush2.bf16.msra.mxu0 %v431
  %597 = vmatprep.subr.bf16.mxu0 0
  %598 = vmatpush2.bf16.msra.mxu0 %v430
  %599 = vmatprep.mubr.bf16.mxu0 %v217
  %600 = vmatmul.mubr.bf16.gmra.mxu0 %v216
  %v601 = vpop.f32.mrf.mxu0
  %v602 = vadd.f32 %v505, %v601
  %v603 = vpop.f32.mrf.mxu0
  %v604 = vpop.f32.mrf.mxu0
  %v605 = vadd.f32 %v508, %v604
  %v606 = vpop.f32.mrf.mxu0
  %607 = vmatprep.mubr.bf16.mxu0 %v221
  %608 = vmatmul.mubr.bf16.gmra.mxu0 %v220
  %v609 = vpop.f32.mrf.mxu0
  %v610 = vadd.f32 %v513, %v609
  %v611 = vpop.f32.mrf.mxu0
  %v612 = vpop.f32.mrf.mxu0
  %v613 = vadd.f32 %v516, %v612
  %v614 = vpop.f32.mrf.mxu0
  %615 = vmatprep.mubr.bf16.mxu0 %v225
  %616 = vmatmul.mubr.bf16.gmra.mxu0 %v224
  %v617 = vpop.f32.mrf.mxu0
  %v618 = vadd.f32 %v521, %v617
  %v619 = vpop.f32.mrf.mxu0
  %v620 = vpop.f32.mrf.mxu0
  %v621 = vadd.f32 %v524, %v620
  %v622 = vpop.f32.mrf.mxu0
  %623 = vmatprep.mubr.bf16.mxu0 %v229
  %624 = vmatmul.mubr.bf16.gmra.mxu0 %v228
  %v625 = vpop.f32.mrf.mxu0
  %v626 = vadd.f32 %v529, %v625
  %v627 = vpop.f32.mrf.mxu0
  %v628 = vpop.f32.mrf.mxu0
  %v629 = vadd.f32 %v532, %v628
  %v630 = vpop.f32.mrf.mxu0
  %631 = vmatprep.mubr.bf16.mxu0 %v233
  %632 = vmatmul.mubr.bf16.gmra.mxu0 %v232
  %v633 = vpop.f32.mrf.mxu0
  %v634 = vadd.f32 %v537, %v633
  %v635 = vpop.f32.mrf.mxu0
  %v636 = vpop.f32.mrf.mxu0
  %v637 = vadd.f32 %v540, %v636
  %v638 = vpop.f32.mrf.mxu0
  %639 = vmatprep.mubr.bf16.mxu0 %v237
  %640 = vmatmul.mubr.bf16.gmra.mxu0 %v236
  %v641 = vpop.f32.mrf.mxu0
  %v642 = vadd.f32 %v545, %v641
  %v643 = vpop.f32.mrf.mxu0
  %v644 = vpop.f32.mrf.mxu0
  %v645 = vadd.f32 %v548, %v644
  %v646 = vpop.f32.mrf.mxu0
  %647 = vmatprep.mubr.bf16.mxu0 %v241
  %648 = vmatmul.mubr.bf16.gmra.mxu0 %v240
  %v649 = vpop.f32.mrf.mxu0
  %v650 = vadd.f32 %v553, %v649
  %v651 = vpop.f32.mrf.mxu0
  %v652 = vpop.f32.mrf.mxu0
  %v653 = vadd.f32 %v556, %v652
  %v654 = vpop.f32.mrf.mxu0
  %655 = vmatprep.mubr.bf16.mxu0 %v245
  %656 = vmatmul.mubr.bf16.gmra.mxu0 %v244
  %v657 = vpop.f32.mrf.mxu0
  %v658 = vadd.f32 %v561, %v657
  %v659 = vpop.f32.mrf.mxu0
  %v660 = vpop.f32.mrf.mxu0
  %v661 = vadd.f32 %v564, %v660
  %v662 = vpop.f32.mrf.mxu0
  %663 = vdwg.mxu0
  %v664 = vmax.f32 %v602, 0.0
  %v665 = vmax.f32 %v605, 0.0
  %v666 = vmax.f32 %v610, 0.0
  %v667 = vmax.f32 %v613, 0.0
  %v668 = vmax.f32 %v618, 0.0
  %v669 = vmax.f32 %v621, 0.0
  %v670 = vmax.f32 %v626, 0.0
  %v671 = vmax.f32 %v629, 0.0
  %v672 = vmax.f32 %v634, 0.0
  %v673 = vmax.f32 %v637, 0.0
  %v674 = vmax.f32 %v642, 0.0
  %v675 = vmax.f32 %v645, 0.0
  %v676 = vmax.f32 %v650, 0.0
  %v677 = vmax.f32 %v653, 0.0
  %v678 = vmax.f32 %v658, 0.0
  %v679 = vmax.f32 %v661, 0.0
  %v680 = vpack.c.bf16 %v665, %v664
  %v681 = vpack.c.bf16 %v667, %v666
  %v682 = vpack.c.bf16 %v669, %v668
  %v683 = vpack.c.bf16 %v671, %v670
  %v684 = vpack.c.bf16 %v673, %v672
  %v685 = vpack.c.bf16 %v675, %v674
  %v686 = vpack.c.bf16 %v677, %v676
  %v687 = vpack.c.bf16 %v679, %v678
  %v696 = vunpack.c.l.b16 %v680
  %v697 = vunpack.c.h.b16 %v680
  %v698 = vunpack.c.l.b16 %v681
  %v699 = vunpack.c.h.b16 %v681
  %v700 = vunpack.c.l.b16 %v682
  %v701 = vunpack.c.h.b16 %v682
  %v702 = vunpack.c.l.b16 %v683
  %v703 = vunpack.c.h.b16 %v683
  %v704 = vunpack.c.l.b16 %v684
  %v705 = vunpack.c.h.b16 %v684
  %v706 = vunpack.c.l.b16 %v685
  %v707 = vunpack.c.h.b16 %v685
  %v708 = vunpack.c.l.b16 %v686
  %v709 = vunpack.c.h.b16 %v686
  %v710 = vunpack.c.l.b16 %v687
  %v711 = vunpack.c.h.b16 %v687
  %v712 = vpack.c.b16 %v696, %v696
  %v713 = vpack.c.b16 %v697, %v697
  %v714 = vpack.c.b16 %v698, %v698
  %v715 = vpack.c.b16 %v699, %v699
  %v716 = vpack.c.b16 %v700, %v700
  %v717 = vpack.c.b16 %v701, %v701
  %v718 = vpack.c.b16 %v702, %v702
  %v719 = vpack.c.b16 %v703, %v703
  %v720 = vpack.c.b16 %v704, %v704
  %v721 = vpack.c.b16 %v705, %v705
  %v722 = vpack.c.b16 %v706, %v706
  %v723 = vpack.c.b16 %v707, %v707
  %v724 = vpack.c.b16 %v708, %v708
  %v725 = vpack.c.b16 %v709, %v709
  %v726 = vpack.c.b16 %v710, %v710
  %v727 = vpack.c.b16 %v711, %v711
  %vm744 = vcmask 519168
  %745 = vst.msk [vmem:[%s3] sm:$0xf] %vm744, %v712
  %746 = vst.msk [vmem:[%s3 + $0x4] sm:$0xf] %vm744, %v713
  %747 = vst.msk [vmem:[%s3 + $0x8] sm:$0xf] %vm744, %v714
  %748 = vst.msk [vmem:[%s3 + $0xc] sm:$0xf] %vm744, %v715
  %749 = vst.msk [vmem:[%s3 + $0x10] sm:$0xf] %vm744, %v716
  %750 = vst.msk [vmem:[%s3 + $0x14] sm:$0xf] %vm744, %v717
  %751 = vst.msk [vmem:[%s3 + $0x18] sm:$0xf] %vm744, %v718
  %752 = vst.msk [vmem:[%s3 + $0x1c] sm:$0xf] %vm744, %v719
  %753 = vst.msk [vmem:[%s3 + $0x20] sm:$0xf] %vm744, %v720
  %754 = vst.msk [vmem:[%s3 + $0x24] sm:$0xf] %vm744, %v721
  %755 = vst.msk [vmem:[%s3 + $0x28] sm:$0xf] %vm744, %v722
  %756 = vst.msk [vmem:[%s3 + $0x2c] sm:$0xf] %vm744, %v723
  %757 = vst.msk [vmem:[%s3 + $0x30] sm:$0xf] %vm744, %v724
  %758 = vst.msk [vmem:[%s3 + $0x34] sm:$0xf] %vm744, %v725
  %759 = vst.msk [vmem:[%s3 + $0x38] sm:$0xf] %vm744, %v726
  %760 = vst.msk [vmem:[%s3 + $0x3c] sm:$0xf] %vm744, %v727
  // Predicated region
  $region14: #{cnn_forward.4} parent=0 // pred_check
    _
  $region15: #{cnn_forward.4} parent=0 // pred_check_branch
    %762 = sbr.rel (0) target = $region17
  $region16: #{cnn_forward.4} parent=0 // pred_region
    _
  $region17: #{cnn_forward.4} parent=0 // pred_fallthru
    _
  // Predicated region
  $region18: #{cnn_forward.4} parent=0 // pred_check
    _
  $region19: #{cnn_forward.4} parent=0 // pred_check_branch
    %764 = sbr.rel (0) target = $region21
  $region20: #{cnn_forward.4} parent=0 // pred_region
    _
  $region21: #{cnn_forward.4} parent=0 // pred_fallthru
    _

// kernel: cnn_forward.5
$region0: #{cnn_forward.5}
  #allocation0 [shape = 'u32[]', space=smem, size = 0x4, offset = 0x4, fixed_abs, tag = 'smem constant byte address 0x4 - core index']
  #allocation1 [shape = 'u32[144,128]{1,0:T(1,128)}', space=vmem, size = 0x12000, scoped, tag = 'internal scratch']
  %s0 = inlined_call_operand.vmem [shape: bf16[32,1664], index: 0, kind: input, shape index: {}]
  %s1 = inlined_call_operand.vmem [shape: bf16[1664,32], index: 1, kind: input, shape index: {}]
  %s2 = inlined_call_operand.vmem [shape: f32[1,32], index: 2, kind: input, shape index: {}]
  %s3 = inlined_call_operand.vmem [shape: bf16[16,32,64], index: 3, kind: input, shape index: {}]
  %s4 = inlined_call_operand.vmem [shape: f32[1,64], index: 4, kind: input, shape index: {}]
  %s5 = inlined_call_operand.vmem [shape: bf16[64,32], index: 5, kind: input, shape index: {}]
  %s6 = inlined_call_operand.vmem [shape: f32[1,32], index: 6, kind: input, shape index: {}]
  %s7 = inlined_call_operand.vmem [shape: bf16[32,5], index: 7, kind: input, shape index: {}]
  %s8 = inlined_call_operand.vmem [shape: f32[1,5], index: 8, kind: input, shape index: {}]
  %s9 = inlined_call_operand.hbm [shape: f32[2,5], index: 9, kind: output, shape index: {}]
  %s10 = sld [smem:[#allocation0]]
  $region46: #{cnn_forward.5} parent=0
    _
  %s12 = ssub.s32 1, %s10
  %s13 = scalar_select 0, %s12, %s10
  $region1: #{cnn_forward.5} parent=0
    #allocation2 [shape = 'u8[1024]{0}', space=vmem, size = 0x400, scoped, tag = 'output window, operand 0, single buffered']
    #allocation3 [shape = 's32[1]{0}', space=sflag, size = 0x4, scoped, tag = 'scoped memory for cnn_forward.5']
    %14 = vsyncpa [#allocation3], 0
    // Predicated region
    $region2: #{cnn_forward.5} parent=1 // pred_check
      _
    $region3: #{cnn_forward.5} parent=1 // pred_check_branch
      %16 = sbr.rel (0) target = $region5
    $region4: #{cnn_forward.5} parent=1 // pred_region
      _
    $region5: #{cnn_forward.5} parent=1 // pred_fallthru
      _
    // Predicated region
    $region6: #{cnn_forward.5} parent=1 // pred_check
      _
    $region7: #{cnn_forward.5} parent=1 // pred_check_branch
      %18 = sbr.rel (0) target = $region9
    $region8: #{cnn_forward.5} parent=1 // pred_region
      _
    $region9: #{cnn_forward.5} parent=1 // pred_fallthru
      _
    // Predicated region
    $region10: #{cnn_forward.5} parent=1 // pred_check
      _
    $region11: #{cnn_forward.5} parent=1 // pred_check_branch
      %20 = sbr.rel (0) target = $region13
    $region12: #{cnn_forward.5} parent=1 // pred_region
      _
    $region13: #{cnn_forward.5} parent=1 // pred_fallthru
      _
    // Predicated region
    $region14: #{cnn_forward.5} parent=1 // pred_check
      _
    $region15: #{cnn_forward.5} parent=1 // pred_check_branch
      %22 = sbr.rel (0) target = $region17
    $region16: #{cnn_forward.5} parent=1 // pred_region
      _
    $region17: #{cnn_forward.5} parent=1 // pred_fallthru
      _
    // Predicated region
    $region18: #{cnn_forward.5} parent=1 // pred_check
      _
    $region19: #{cnn_forward.5} parent=1 // pred_check_branch
      %24 = sbr.rel (0) target = $region21
    $region20: #{cnn_forward.5} parent=1 // pred_region
      _
    $region21: #{cnn_forward.5} parent=1 // pred_fallthru
      _
    // Predicated region
    $region22: #{cnn_forward.5} parent=1 // pred_check
      _
    $region23: #{cnn_forward.5} parent=1 // pred_check_branch
      %26 = sbr.rel (0) target = $region25
    $region24: #{cnn_forward.5} parent=1 // pred_region
      _
    $region25: #{cnn_forward.5} parent=1 // pred_fallthru
      _
    // Predicated region
    $region26: #{cnn_forward.5} parent=1 // pred_check
      _
    $region27: #{cnn_forward.5} parent=1 // pred_check_branch
      %28 = sbr.rel (0) target = $region29
    $region28: #{cnn_forward.5} parent=1 // pred_region
      _
    $region29: #{cnn_forward.5} parent=1 // pred_fallthru
      _
    // Predicated region
    $region30: #{cnn_forward.5} parent=1 // pred_check
      _
    $region31: #{cnn_forward.5} parent=1 // pred_check_branch
      %30 = sbr.rel (0) target = $region33
    $region32: #{cnn_forward.5} parent=1 // pred_region
      _
    $region33: #{cnn_forward.5} parent=1 // pred_fallthru
      _
    // Predicated region
    $region34: #{cnn_forward.5} parent=1 // pred_check
      _
    $region35: #{cnn_forward.5} parent=1 // pred_check_branch
      %32 = sbr.rel (0) target = $region37
    $region36: #{cnn_forward.5} parent=1 // pred_region
      _
    $region37: #{cnn_forward.5} parent=1 // pred_fallthru
      _
    %v34 = vld [vmem:[%s0] sm:$0xff]
    %v35 = vld [vmem:[%s0 + $0x8] sm:$0xff]
    %v36 = vld [vmem:[%s0 + $0x10] sm:$0xff]
    %v37 = vld [vmem:[%s0 + $0x18] sm:$0xff]
    %v38 = vld [vmem:[%s0 + $0x20] sm:$0xff]
    %v39 = vld [vmem:[%s0 + $0x28] sm:$0xff]
    %v40 = vld [vmem:[%s0 + $0x30] sm:$0xf]
    %v41 = vld [vmem:[%s0 + $0x34] sm:$0xff]
    %v42 = vld [vmem:[%s0 + $0x3c] sm:$0xff]
    %v43 = vld [vmem:[%s0 + $0x44] sm:$0xff]
    %v44 = vld [vmem:[%s0 + $0x4c] sm:$0xff]
    %v45 = vld [vmem:[%s0 + $0x54] sm:$0xff]
    %v46 = vld [vmem:[%s0 + $0x5c] sm:$0xff]
    %v47 = vld [vmem:[%s0 + $0x64] sm:$0xf]
    %v48 = vld [vmem:[%s0 + $0x68] sm:$0xff]
    %v49 = vld [vmem:[%s0 + $0x70] sm:$0xff]
    %v50 = vld [vmem:[%s0 + $0x78] sm:$0xff]
    %v51 = vld [vmem:[%s0 + $0x80] sm:$0xff]
    %v52 = vld [vmem:[%s0 + $0x88] sm:$0xff]
    %v53 = vld [vmem:[%s0 + $0x90] sm:$0xff]
    %v54 = vld [vmem:[%s0 + $0x98] sm:$0xf]
    %v55 = vld [vmem:[%s0 + $0x9c] sm:$0xff]
    %v56 = vld [vmem:[%s0 + $0xa4] sm:$0xff]
    %v57 = vld [vmem:[%s0 + $0xac] sm:$0xff]
    %v58 = vld [vmem:[%s0 + $0xb4] sm:$0xff]
    %v59 = vld [vmem:[%s0 + $0xbc] sm:$0xff]
    %v60 = vld [vmem:[%s0 + $0xc4] sm:$0xff]
    %v61 = vld [vmem:[%s0 + $0xcc] sm:$0xf]
    %v62 = vld [vmem:[%s1] sm:$0xf]
    %v63 = vld [vmem:[%s1 + $0x4] sm:$0xf]
    %v64 = vld [vmem:[%s1 + $0x8] sm:$0xf]
    %v65 = vld [vmem:[%s1 + $0xc] sm:$0xf]
    %v66 = vld [vmem:[%s1 + $0x10] sm:$0xf]
    %v67 = vld [vmem:[%s1 + $0x14] sm:$0xf]
    %v68 = vld [vmem:[%s1 + $0x18] sm:$0xf]
    %v69 = vld [vmem:[%s1 + $0x1c] sm:$0xf]
    %v70 = vld [vmem:[%s1 + $0x20] sm:$0xf]
    %v71 = vld [vmem:[%s1 + $0x24] sm:$0xf]
    %v72 = vld [vmem:[%s1 + $0x28] sm:$0xf]
    %v73 = vld [vmem:[%s1 + $0x2c] sm:$0xf]
    %v74 = vld [vmem:[%s1 + $0x30] sm:$0xf]
    %v75 = vld [vmem:[%s1 + $0x34] sm:$0xf]
    %v76 = vld [vmem:[%s1 + $0x38] sm:$0xf]
    %v77 = vld [vmem:[%s1 + $0x3c] sm:$0xf]
    %v78 = vld [vmem:[%s1 + $0x40] sm:$0xf]
    %v79 = vld [vmem:[%s1 + $0x44] sm:$0xf]
    %v80 = vld [vmem:[%s1 + $0x48] sm:$0xf]
    %v81 = vld [vmem:[%s1 + $0x4c] sm:$0xf]
    %v82 = vld [vmem:[%s1 + $0x50] sm:$0xf]
    %v83 = vld [vmem:[%s1 + $0x54] sm:$0xf]
    %v84 = vld [vmem:[%s1 + $0x58] sm:$0xf]
    %v85 = vld [vmem:[%s1 + $0x5c] sm:$0xf]
    %v86 = vld [vmem:[%s1 + $0x60] sm:$0xf]
    %v87 = vld [vmem:[%s1 + $0x64] sm:$0xf]
    %v88 = vld [vmem:[%s1 + $0x68] sm:$0xf]
    %v89 = vld [vmem:[%s1 + $0x6c] sm:$0xf]
    %v90 = vld [vmem:[%s1 + $0x70] sm:$0xf]
    %v91 = vld [vmem:[%s1 + $0x74] sm:$0xf]
    %v92 = vld [vmem:[%s1 + $0x78] sm:$0xf]
    %v93 = vld [vmem:[%s1 + $0x7c] sm:$0xf]
    %v94 = vld [vmem:[%s1 + $0x80] sm:$0xf]
    %v95 = vld [vmem:[%s1 + $0x84] sm:$0xf]
    %v96 = vld [vmem:[%s1 + $0x88] sm:$0xf]
    %v97 = vld [vmem:[%s1 + $0x8c] sm:$0xf]
    %v98 = vld [vmem:[%s1 + $0x90] sm:$0xf]
    %v99 = vld [vmem:[%s1 + $0x94] sm:$0xf]
    %v100 = vld [vmem:[%s1 + $0x98] sm:$0xf]
    %v101 = vld [vmem:[%s1 + $0x9c] sm:$0xf]
    %v102 = vld [vmem:[%s1 + $0xa0] sm:$0xf]
    %v103 = vld [vmem:[%s1 + $0xa4] sm:$0xf]
    %v104 = vld [vmem:[%s1 + $0xa8] sm:$0xf]
    %v105 = vld [vmem:[%s1 + $0xac] sm:$0xf]
    %v106 = vld [vmem:[%s1 + $0xb0] sm:$0xf]
    %v107 = vld [vmem:[%s1 + $0xb4] sm:$0xf]
    %v108 = vld [vmem:[%s1 + $0xb8] sm:$0xf]
    %v109 = vld [vmem:[%s1 + $0xbc] sm:$0xf]
    %v110 = vld [vmem:[%s1 + $0xc0] sm:$0xf]
    %v111 = vld [vmem:[%s1 + $0xc4] sm:$0xf]
    %v112 = vld [vmem:[%s1 + $0xc8] sm:$0xf]
    %v113 = vld [vmem:[%s1 + $0xcc] sm:$0xf]
    %v114 = vld [vmem:[%s1 + $0xd0] sm:$0xf]
    %v115 = vld [vmem:[%s1 + $0xd4] sm:$0xf]
    %v116 = vld [vmem:[%s1 + $0xd8] sm:$0xf]
    %v117 = vld [vmem:[%s1 + $0xdc] sm:$0xf]
    %v118 = vld [vmem:[%s1 + $0xe0] sm:$0xf]
    %v119 = vld [vmem:[%s1 + $0xe4] sm:$0xf]
    %v120 = vld [vmem:[%s1 + $0xe8] sm:$0xf]
    %v121 = vld [vmem:[%s1 + $0xec] sm:$0xf]
    %v122 = vld [vmem:[%s1 + $0xf0] sm:$0xf]
    %v123 = vld [vmem:[%s1 + $0xf4] sm:$0xf]
    %v124 = vld [vmem:[%s1 + $0xf8] sm:$0xf]
    %v125 = vld [vmem:[%s1 + $0xfc] sm:$0xf]
    %v126 = vld [vmem:[%s1 + $0x100] sm:$0xf]
    %v127 = vld [vmem:[%s1 + $0x104] sm:$0xf]
    %v128 = vld [vmem:[%s1 + $0x108] sm:$0xf]
    %v129 = vld [vmem:[%s1 + $0x10c] sm:$0xf]
    %v130 = vld [vmem:[%s1 + $0x110] sm:$0xf]
    %v131 = vld [vmem:[%s1 + $0x114] sm:$0xf]
    %v132 = vld [vmem:[%s1 + $0x118] sm:$0xf]
    %v133 = vld [vmem:[%s1 + $0x11c] sm:$0xf]
    %v134 = vld [vmem:[%s1 + $0x120] sm:$0xf]
    %v135 = vld [vmem:[%s1 + $0x124] sm:$0xf]
    %v136 = vld [vmem:[%s1 + $0x128] sm:$0xf]
    %v137 = vld [vmem:[%s1 + $0x12c] sm:$0xf]
    %v138 = vld [vmem:[%s1 + $0x130] sm:$0xf]
    %v139 = vld [vmem:[%s1 + $0x134] sm:$0xf]
    %v140 = vld [vmem:[%s1 + $0x138] sm:$0xf]
    %v141 = vld [vmem:[%s1 + $0x13c] sm:$0xf]
    %v142 = vld [vmem:[%s1 + $0x140] sm:$0xf]
    %v143 = vld [vmem:[%s1 + $0x144] sm:$0xf]
    %v144 = vld [vmem:[%s1 + $0x148] sm:$0xf]
    %v145 = vld [vmem:[%s1 + $0x14c] sm:$0xf]
    %v146 = vld [vmem:[%s1 + $0x150] sm:$0xf]
    %v147 = vld [vmem:[%s1 + $0x154] sm:$0xf]
    %v148 = vld [vmem:[%s1 + $0x158] sm:$0xf]
    %v149 = vld [vmem:[%s1 + $0x15c] sm:$0xf]
    %v150 = vld [vmem:[%s1 + $0x160] sm:$0xf]
    %v151 = vld [vmem:[%s1 + $0x164] sm:$0xf]
    %v152 = vld [vmem:[%s1 + $0x168] sm:$0xf]
    %v153 = vld [vmem:[%s1 + $0x16c] sm:$0xf]
    %v154 = vld [vmem:[%s1 + $0x170] sm:$0xf]
    %v155 = vld [vmem:[%s1 + $0x174] sm:$0xf]
    %v156 = vld [vmem:[%s1 + $0x178] sm:$0xf]
    %v157 = vld [vmem:[%s1 + $0x17c] sm:$0xf]
    %v158 = vld [vmem:[%s1 + $0x180] sm:$0xf]
    %v159 = vld [vmem:[%s1 + $0x184] sm:$0xf]
    %v160 = vld [vmem:[%s1 + $0x188] sm:$0xf]
    %v161 = vld [vmem:[%s1 + $0x18c] sm:$0xf]
    %v162 = vld [vmem:[%s1 + $0x190] sm:$0xf]
    %v163 = vld [vmem:[%s1 + $0x194] sm:$0xf]
    %v164 = vld [vmem:[%s1 + $0x198] sm:$0xf]
    %v165 = vld [vmem:[%s1 + $0x19c] sm:$0xf]
    %v166 = vld [vmem:[%s1 + $0x1a0] sm:$0xf]
    %v167 = vld [vmem:[%s1 + $0x1a4] sm:$0xf]
    %v168 = vld [vmem:[%s1 + $0x1a8] sm:$0xf]
    %v169 = vld [vmem:[%s1 + $0x1ac] sm:$0xf]
    %v170 = vld [vmem:[%s1 + $0x1b0] sm:$0xf]
    %v171 = vld [vmem:[%s1 + $0x1b4] sm:$0xf]
    %v172 = vld [vmem:[%s1 + $0x1b8] sm:$0xf]
    %v173 = vld [vmem:[%s1 + $0x1bc] sm:$0xf]
    %v174 = vld [vmem:[%s1 + $0x1c0] sm:$0xf]
    %v175 = vld [vmem:[%s1 + $0x1c4] sm:$0xf]
    %v176 = vld [vmem:[%s1 + $0x1c8] sm:$0xf]
    %v177 = vld [vmem:[%s1 + $0x1cc] sm:$0xf]
    %v178 = vld [vmem:[%s1 + $0x1d0] sm:$0xf]
    %v179 = vld [vmem:[%s1 + $0x1d4] sm:$0xf]
    %v180 = vld [vmem:[%s1 + $0x1d8] sm:$0xf]
    %v181 = vld [vmem:[%s1 + $0x1dc] sm:$0xf]
    %v182 = vld [vmem:[%s1 + $0x1e0] sm:$0xf]
    %v183 = vld [vmem:[%s1 + $0x1e4] sm:$0xf]
    %v184 = vld [vmem:[%s1 + $0x1e8] sm:$0xf]
    %v185 = vld [vmem:[%s1 + $0x1ec] sm:$0xf]
    %v186 = vld [vmem:[%s1 + $0x1f0] sm:$0xf]
    %v187 = vld [vmem:[%s1 + $0x1f4] sm:$0xf]
    %v188 = vld [vmem:[%s1 + $0x1f8] sm:$0xf]
    %v189 = vld [vmem:[%s1 + $0x1fc] sm:$0xf]
    %v190 = vld [vmem:[%s1 + $0x200] sm:$0xf]
    %v191 = vld [vmem:[%s1 + $0x204] sm:$0xf]
    %v192 = vld [vmem:[%s1 + $0x208] sm:$0xf]
    %v193 = vld [vmem:[%s1 + $0x20c] sm:$0xf]
    %v194 = vld [vmem:[%s1 + $0x210] sm:$0xf]
    %v195 = vld [vmem:[%s1 + $0x214] sm:$0xf]
    %v196 = vld [vmem:[%s1 + $0x218] sm:$0xf]
    %v197 = vld [vmem:[%s1 + $0x21c] sm:$0xf]
    %v198 = vld [vmem:[%s1 + $0x220] sm:$0xf]
    %v199 = vld [vmem:[%s1 + $0x224] sm:$0xf]
    %v200 = vld [vmem:[%s1 + $0x228] sm:$0xf]
    %v201 = vld [vmem:[%s1 + $0x22c] sm:$0xf]
    %v202 = vld [vmem:[%s1 + $0x230] sm:$0xf]
    %v203 = vld [vmem:[%s1 + $0x234] sm:$0xf]
    %v204 = vld [vmem:[%s1 + $0x238] sm:$0xf]
    %v205 = vld [vmem:[%s1 + $0x23c] sm:$0xf]
    %v206 = vld [vmem:[%s1 + $0x240] sm:$0xf]
    %v207 = vld [vmem:[%s1 + $0x244] sm:$0xf]
    %v208 = vld [vmem:[%s1 + $0x248] sm:$0xf]
    %v209 = vld [vmem:[%s1 + $0x24c] sm:$0xf]
    %v210 = vld [vmem:[%s1 + $0x250] sm:$0xf]
    %v211 = vld [vmem:[%s1 + $0x254] sm:$0xf]
    %v212 = vld [vmem:[%s1 + $0x258] sm:$0xf]
    %v213 = vld [vmem:[%s1 + $0x25c] sm:$0xf]
    %v214 = vld [vmem:[%s1 + $0x260] sm:$0xf]
    %v215 = vld [vmem:[%s1 + $0x264] sm:$0xf]
    %v216 = vld [vmem:[%s1 + $0x268] sm:$0xf]
    %v217 = vld [vmem:[%s1 + $0x26c] sm:$0xf]
    %v218 = vld [vmem:[%s1 + $0x270] sm:$0xf]
    %v219 = vld [vmem:[%s1 + $0x274] sm:$0xf]
    %v220 = vld [vmem:[%s1 + $0x278] sm:$0xf]
    %v221 = vld [vmem:[%s1 + $0x27c] sm:$0xf]
    %v222 = vld [vmem:[%s1 + $0x280] sm:$0xf]
    %v223 = vld [vmem:[%s1 + $0x284] sm:$0xf]
    %v224 = vld [vmem:[%s1 + $0x288] sm:$0xf]
    %v225 = vld [vmem:[%s1 + $0x28c] sm:$0xf]
    %v226 = vld [vmem:[%s1 + $0x290] sm:$0xf]
    %v227 = vld [vmem:[%s1 + $0x294] sm:$0xf]
    %v228 = vld [vmem:[%s1 + $0x298] sm:$0xf]
    %v229 = vld [vmem:[%s1 + $0x29c] sm:$0xf]
    %v230 = vld [vmem:[%s1 + $0x2a0] sm:$0xf]
    %v231 = vld [vmem:[%s1 + $0x2a4] sm:$0xf]
    %v232 = vld [vmem:[%s1 + $0x2a8] sm:$0xf]
    %v233 = vld [vmem:[%s1 + $0x2ac] sm:$0xf]
    %v234 = vld [vmem:[%s1 + $0x2b0] sm:$0xf]
    %v235 = vld [vmem:[%s1 + $0x2b4] sm:$0xf]
    %v236 = vld [vmem:[%s1 + $0x2b8] sm:$0xf]
    %v237 = vld [vmem:[%s1 + $0x2bc] sm:$0xf]
    %v238 = vld [vmem:[%s1 + $0x2c0] sm:$0xf]
    %v239 = vld [vmem:[%s1 + $0x2c4] sm:$0xf]
    %v240 = vld [vmem:[%s1 + $0x2c8] sm:$0xf]
    %v241 = vld [vmem:[%s1 + $0x2cc] sm:$0xf]
    %v242 = vld [vmem:[%s1 + $0x2d0] sm:$0xf]
    %v243 = vld [vmem:[%s1 + $0x2d4] sm:$0xf]
    %v244 = vld [vmem:[%s1 + $0x2d8] sm:$0xf]
    %v245 = vld [vmem:[%s1 + $0x2dc] sm:$0xf]
    %v246 = vld [vmem:[%s1 + $0x2e0] sm:$0xf]
    %v247 = vld [vmem:[%s1 + $0x2e4] sm:$0xf]
    %v248 = vld [vmem:[%s1 + $0x2e8] sm:$0xf]
    %v249 = vld [vmem:[%s1 + $0x2ec] sm:$0xf]
    %v250 = vld [vmem:[%s1 + $0x2f0] sm:$0xf]
    %v251 = vld [vmem:[%s1 + $0x2f4] sm:$0xf]
    %v252 = vld [vmem:[%s1 + $0x2f8] sm:$0xf]
    %v253 = vld [vmem:[%s1 + $0x2fc] sm:$0xf]
    %v254 = vld [vmem:[%s1 + $0x300] sm:$0xf]
    %v255 = vld [vmem:[%s1 + $0x304] sm:$0xf]
    %v256 = vld [vmem:[%s1 + $0x308] sm:$0xf]
    %v257 = vld [vmem:[%s1 + $0x30c] sm:$0xf]
    %v258 = vld [vmem:[%s1 + $0x310] sm:$0xf]
    %v259 = vld [vmem:[%s1 + $0x314] sm:$0xf]
    %v260 = vld [vmem:[%s1 + $0x318] sm:$0xf]
    %v261 = vld [vmem:[%s1 + $0x31c] sm:$0xf]
    %v262 = vld [vmem:[%s1 + $0x320] sm:$0xf]
    %v263 = vld [vmem:[%s1 + $0x324] sm:$0xf]
    %v264 = vld [vmem:[%s1 + $0x328] sm:$0xf]
    %v265 = vld [vmem:[%s1 + $0x32c] sm:$0xf]
    %v266 = vld [vmem:[%s1 + $0x330] sm:$0xf]
    %v267 = vld [vmem:[%s1 + $0x334] sm:$0xf]
    %v268 = vld [vmem:[%s1 + $0x338] sm:$0xf]
    %v269 = vld [vmem:[%s1 + $0x33c] sm:$0xf]
    %v270 = vld [vmem:[%s2] sm:$0x1]
    %v272 = vlaneseq
    %v273 = vshrl.u32 %v272, 7
    %v274 = vsub.s32 0, %v273
    %v275 = vrot.slane %v270, %v274
    %v305 = vunpack.c.l.b16 %v34
    %v306 = vunpack.c.h.b16 %v34
    %v307 = vunpack.c.l.b16 %v35
    %v308 = vunpack.c.h.b16 %v35
    %v309 = vunpack.c.l.b16 %v36
    %v310 = vunpack.c.h.b16 %v36
    %v311 = vunpack.c.l.b16 %v37
    %v312 = vunpack.c.h.b16 %v37
    %v313 = vunpack.c.l.b16 %v38
    %v314 = vunpack.c.h.b16 %v38
    %v315 = vunpack.c.l.b16 %v39
    %v316 = vunpack.c.h.b16 %v39
    %v317 = vunpack.c.l.b16 %v40
    %v318 = vunpack.c.l.b16 %v41
    %v319 = vunpack.c.h.b16 %v41
    %v320 = vunpack.c.l.b16 %v42
    %v321 = vunpack.c.h.b16 %v42
    %v322 = vunpack.c.l.b16 %v43
    %v323 = vunpack.c.h.b16 %v43
    %v324 = vunpack.c.l.b16 %v44
    %v325 = vunpack.c.h.b16 %v44
    %v326 = vunpack.c.l.b16 %v45
    %v327 = vunpack.c.h.b16 %v45
    %v328 = vunpack.c.l.b16 %v46
    %v329 = vunpack.c.h.b16 %v46
    %v330 = vunpack.c.l.b16 %v47
    %v331 = vunpack.c.l.b16 %v48
    %v332 = vunpack.c.h.b16 %v48
    %v333 = vunpack.c.l.b16 %v49
    %v334 = vunpack.c.h.b16 %v49
    %v335 = vunpack.c.l.b16 %v50
    %v336 = vunpack.c.h.b16 %v50
    %v337 = vunpack.c.l.b16 %v51
    %v338 = vunpack.c.h.b16 %v51
    %v339 = vunpack.c.l.b16 %v52
    %v340 = vunpack.c.h.b16 %v52
    %v341 = vunpack.c.l.b16 %v53
    %v342 = vunpack.c.h.b16 %v53
    %v343 = vunpack.c.l.b16 %v54
    %v344 = vunpack.c.l.b16 %v55
    %v345 = vunpack.c.h.b16 %v55
    %v346 = vunpack.c.l.b16 %v56
    %v347 = vunpack.c.h.b16 %v56
    %v348 = vunpack.c.l.b16 %v57
    %v349 = vunpack.c.h.b16 %v57
    %v350 = vunpack.c.l.b16 %v58
    %v351 = vunpack.c.h.b16 %v58
    %v352 = vunpack.c.l.b16 %v59
    %v353 = vunpack.c.h.b16 %v59
    %v354 = vunpack.c.l.b16 %v60
    %v355 = vunpack.c.h.b16 %v60
    %v356 = vunpack.c.l.b16 %v61
    %v357 = vpack.c.b16 %v318, %v305
    %v358 = vpack.c.b16 %v319, %v306
    %v359 = vpack.c.b16 %v320, %v307
    %v360 = vpack.c.b16 %v321, %v308
    %v361 = vpack.c.b16 %v322, %v309
    %v362 = vpack.c.b16 %v323, %v310
    %v363 = vpack.c.b16 %v324, %v311
    %v364 = vpack.c.b16 %v325, %v312
    %v365 = vpack.c.b16 %v326, %v313
    %v366 = vpack.c.b16 %v327, %v314
    %v367 = vpack.c.b16 %v328, %v315
    %v368 = vpack.c.b16 %v329, %v316
    %v369 = vpack.c.b16 %v330, %v317
    %v370 = vpack.c.b16 %v344, %v331
    %v371 = vpack.c.b16 %v345, %v332
    %v372 = vpack.c.b16 %v346, %v333
    %v373 = vpack.c.b16 %v347, %v334
    %v374 = vpack.c.b16 %v348, %v335
    %v375 = vpack.c.b16 %v349, %v336
    %v376 = vpack.c.b16 %v350, %v337
    %v377 = vpack.c.b16 %v351, %v338
    %v378 = vpack.c.b16 %v352, %v339
    %v379 = vpack.c.b16 %v353, %v340
    %v380 = vpack.c.b16 %v354, %v341
    %v381 = vpack.c.b16 %v355, %v342
    %v382 = vpack.c.b16 %v356, %v343
    %v617 = vunpack.c.l.b16 %v62
    %v618 = vunpack.c.l.b16 %v63
    %v619 = vunpack.c.l.b16 %v64
    %v620 = vunpack.c.l.b16 %v65
    %v621 = vunpack.c.l.b16 %v66
    %v622 = vunpack.c.l.b16 %v67
    %v623 = vunpack.c.l.b16 %v68
    %v624 = vunpack.c.l.b16 %v69
    %v625 = vunpack.c.l.b16 %v70
    %v626 = vunpack.c.l.b16 %v71
    %v627 = vunpack.c.l.b16 %v72
    %v628 = vunpack.c.l.b16 %v73
    %v629 = vunpack.c.l.b16 %v74
    %v630 = vunpack.c.l.b16 %v75
    %v631 = vunpack.c.l.b16 %v76
    %v632 = vunpack.c.l.b16 %v77
    %v633 = vunpack.c.l.b16 %v78
    %v634 = vunpack.c.l.b16 %v79
    %v635 = vunpack.c.l.b16 %v80
    %v636 = vunpack.c.l.b16 %v81
    %v637 = vunpack.c.l.b16 %v82
    %v638 = vunpack.c.l.b16 %v83
    %v639 = vunpack.c.l.b16 %v84
    %v640 = vunpack.c.l.b16 %v85
    %v641 = vunpack.c.l.b16 %v86
    %v642 = vunpack.c.l.b16 %v87
    %v643 = vunpack.c.l.b16 %v88
    %v644 = vunpack.c.l.b16 %v89
    %v645 = vunpack.c.l.b16 %v90
    %v646 = vunpack.c.l.b16 %v91
    %v647 = vunpack.c.l.b16 %v92
    %v648 = vunpack.c.l.b16 %v93
    %v649 = vunpack.c.l.b16 %v94
    %v650 = vunpack.c.l.b16 %v95
    %v651 = vunpack.c.l.b16 %v96
    %v652 = vunpack.c.l.b16 %v97
    %v653 = vunpack.c.l.b16 %v98
    %v654 = vunpack.c.l.b16 %v99
    %v655 = vunpack.c.l.b16 %v100
    %v656 = vunpack.c.l.b16 %v101
    %v657 = vunpack.c.l.b16 %v102
    %v658 = vunpack.c.l.b16 %v103
    %v659 = vunpack.c.l.b16 %v104
    %v660 = vunpack.c.l.b16 %v105
    %v661 = vunpack.c.l.b16 %v106
    %v662 = vunpack.c.l.b16 %v107
    %v663 = vunpack.c.l.b16 %v108
    %v664 = vunpack.c.l.b16 %v109
    %v665 = vunpack.c.l.b16 %v110
    %v666 = vunpack.c.l.b16 %v111
    %v667 = vunpack.c.l.b16 %v112
    %v668 = vunpack.c.l.b16 %v113
    %v669 = vunpack.c.l.b16 %v114
    %v670 = vunpack.c.l.b16 %v115
    %v671 = vunpack.c.l.b16 %v116
    %v672 = vunpack.c.l.b16 %v117
    %v673 = vunpack.c.l.b16 %v118
    %v674 = vunpack.c.l.b16 %v119
    %v675 = vunpack.c.l.b16 %v120
    %v676 = vunpack.c.l.b16 %v121
    %v677 = vunpack.c.l.b16 %v122
    %v678 = vunpack.c.l.b16 %v123
    %v679 = vunpack.c.l.b16 %v124
    %v680 = vunpack.c.l.b16 %v125
    %v681 = vunpack.c.l.b16 %v126
    %v682 = vunpack.c.l.b16 %v127
    %v683 = vunpack.c.l.b16 %v128
    %v684 = vunpack.c.l.b16 %v129
    %v685 = vunpack.c.l.b16 %v130
    %v686 = vunpack.c.l.b16 %v131
    %v687 = vunpack.c.l.b16 %v132
    %v688 = vunpack.c.l.b16 %v133
    %v689 = vunpack.c.l.b16 %v134
    %v690 = vunpack.c.l.b16 %v135
    %v691 = vunpack.c.l.b16 %v136
    %v692 = vunpack.c.l.b16 %v137
    %v693 = vunpack.c.l.b16 %v138
    %v694 = vunpack.c.l.b16 %v139
    %v695 = vunpack.c.l.b16 %v140
    %v696 = vunpack.c.l.b16 %v141
    %v697 = vunpack.c.l.b16 %v142
    %v698 = vunpack.c.l.b16 %v143
    %v699 = vunpack.c.l.b16 %v144
    %v700 = vunpack.c.l.b16 %v145
    %v701 = vunpack.c.l.b16 %v146
    %v702 = vunpack.c.l.b16 %v147
    %v703 = vunpack.c.l.b16 %v148
    %v704 = vunpack.c.l.b16 %v149
    %v705 = vunpack.c.l.b16 %v150
    %v706 = vunpack.c.l.b16 %v151
    %v707 = vunpack.c.l.b16 %v152
    %v708 = vunpack.c.l.b16 %v153
    %v709 = vunpack.c.l.b16 %v154
    %v710 = vunpack.c.l.b16 %v155
    %v711 = vunpack.c.l.b16 %v156
    %v712 = vunpack.c.l.b16 %v157
    %v713 = vunpack.c.l.b16 %v158
    %v714 = vunpack.c.l.b16 %v159
    %v715 = vunpack.c.l.b16 %v160
    %v716 = vunpack.c.l.b16 %v161
    %v717 = vunpack.c.l.b16 %v162
    %v718 = vunpack.c.l.b16 %v163
    %v719 = vunpack.c.l.b16 %v164
    %v720 = vunpack.c.l.b16 %v165
    %v721 = vunpack.c.l.b16 %v166
    %v722 = vunpack.c.l.b16 %v167
    %v723 = vunpack.c.l.b16 %v168
    %v724 = vunpack.c.l.b16 %v169
    %v725 = vunpack.c.l.b16 %v170
    %v726 = vunpack.c.l.b16 %v171
    %v727 = vunpack.c.l.b16 %v172
    %v728 = vunpack.c.l.b16 %v173
    %v729 = vunpack.c.l.b16 %v174
    %v730 = vunpack.c.l.b16 %v175
    %v731 = vunpack.c.l.b16 %v176
    %v732 = vunpack.c.l.b16 %v177
    %v733 = vunpack.c.l.b16 %v178
    %v734 = vunpack.c.l.b16 %v179
    %v735 = vunpack.c.l.b16 %v180
    %v736 = vunpack.c.l.b16 %v181
    %v737 = vunpack.c.l.b16 %v182
    %v738 = vunpack.c.l.b16 %v183
    %v739 = vunpack.c.l.b16 %v184
    %v740 = vunpack.c.l.b16 %v185
    %v741 = vunpack.c.l.b16 %v186
    %v742 = vunpack.c.l.b16 %v187
    %v743 = vunpack.c.l.b16 %v188
    %v744 = vunpack.c.l.b16 %v189
    %v745 = vunpack.c.l.b16 %v190
    %v746 = vunpack.c.l.b16 %v191
    %v747 = vunpack.c.l.b16 %v192
    %v748 = vunpack.c.l.b16 %v193
    %v749 = vunpack.c.l.b16 %v194
    %v750 = vunpack.c.l.b16 %v195
    %v751 = vunpack.c.l.b16 %v196
    %v752 = vunpack.c.l.b16 %v197
    %v753 = vunpack.c.l.b16 %v198
    %v754 = vunpack.c.l.b16 %v199
    %v755 = vunpack.c.l.b16 %v200
    %v756 = vunpack.c.l.b16 %v201
    %v757 = vunpack.c.l.b16 %v202
    %v758 = vunpack.c.l.b16 %v203
    %v759 = vunpack.c.l.b16 %v204
    %v760 = vunpack.c.l.b16 %v205
    %v761 = vunpack.c.l.b16 %v206
    %v762 = vunpack.c.l.b16 %v207
    %v763 = vunpack.c.l.b16 %v208
    %v764 = vunpack.c.l.b16 %v209
    %v765 = vunpack.c.l.b16 %v210
    %v766 = vunpack.c.l.b16 %v211
    %v767 = vunpack.c.l.b16 %v212
    %v768 = vunpack.c.l.b16 %v213
    %v769 = vunpack.c.l.b16 %v214
    %v770 = vunpack.c.l.b16 %v215
    %v771 = vunpack.c.l.b16 %v216
    %v772 = vunpack.c.l.b16 %v217
    %v773 = vunpack.c.l.b16 %v218
    %v774 = vunpack.c.l.b16 %v219
    %v775 = vunpack.c.l.b16 %v220
    %v776 = vunpack.c.l.b16 %v221
    %v777 = vunpack.c.l.b16 %v222
    %v778 = vunpack.c.l.b16 %v223
    %v779 = vunpack.c.l.b16 %v224
    %v780 = vunpack.c.l.b16 %v225
    %v781 = vunpack.c.l.b16 %v226
    %v782 = vunpack.c.l.b16 %v227
    %v783 = vunpack.c.l.b16 %v228
    %v784 = vunpack.c.l.b16 %v229
    %v785 = vunpack.c.l.b16 %v230
    %v786 = vunpack.c.l.b16 %v231
    %v787 = vunpack.c.l.b16 %v232
    %v788 = vunpack.c.l.b16 %v233
    %v789 = vunpack.c.l.b16 %v234
    %v790 = vunpack.c.l.b16 %v235
    %v791 = vunpack.c.l.b16 %v236
    %v792 = vunpack.c.l.b16 %v237
    %v793 = vunpack.c.l.b16 %v238
    %v794 = vunpack.c.l.b16 %v239
    %v795 = vunpack.c.l.b16 %v240
    %v796 = vunpack.c.l.b16 %v241
    %v797 = vunpack.c.l.b16 %v242
    %v798 = vunpack.c.l.b16 %v243
    %v799 = vunpack.c.l.b16 %v244
    %v800 = vunpack.c.l.b16 %v245
    %v801 = vunpack.c.l.b16 %v246
    %v802 = vunpack.c.l.b16 %v247
    %v803 = vunpack.c.l.b16 %v248
    %v804 = vunpack.c.l.b16 %v249
    %v805 = vunpack.c.l.b16 %v250
    %v806 = vunpack.c.l.b16 %v251
    %v807 = vunpack.c.l.b16 %v252
    %v808 = vunpack.c.l.b16 %v253
    %v809 = vunpack.c.l.b16 %v254
    %v810 = vunpack.c.l.b16 %v255
    %v811 = vunpack.c.l.b16 %v256
    %v812 = vunpack.c.l.b16 %v257
    %v813 = vunpack.c.l.b16 %v258
    %v814 = vunpack.c.l.b16 %v259
    %v815 = vunpack.c.l.b16 %v260
    %v816 = vunpack.c.l.b16 %v261
    %v817 = vunpack.c.l.b16 %v262
    %v818 = vunpack.c.l.b16 %v263
    %v819 = vunpack.c.l.b16 %v264
    %v820 = vunpack.c.l.b16 %v265
    %v821 = vunpack.c.l.b16 %v266
    %v822 = vunpack.c.l.b16 %v267
    %v823 = vunpack.c.l.b16 %v268
    %v824 = vunpack.c.l.b16 %v269
    %v825 = vpack.c.b16 %v618, %v617
    %v826 = vpack.c.b16 %v620, %v619
    %v827 = vpack.c.b16 %v622, %v621
    %v828 = vpack.c.b16 %v624, %v623
    %v829 = vpack.c.b16 %v626, %v625
    %v830 = vpack.c.b16 %v628, %v627
    %v831 = vpack.c.b16 %v630, %v629
    %v832 = vpack.c.b16 %v632, %v631
    %v833 = vpack.c.b16 %v634, %v633
    %v834 = vpack.c.b16 %v636, %v635
    %v835 = vpack.c.b16 %v638, %v637
    %v836 = vpack.c.b16 %v640, %v639
    %v837 = vpack.c.b16 %v642, %v641
    %v838 = vpack.c.b16 %v644, %v643
    %v839 = vpack.c.b16 %v646, %v645
    %v840 = vpack.c.b16 %v648, %v647
    %v841 = vpack.c.b16 %v650, %v649
    %v842 = vpack.c.b16 %v652, %v651
    %v843 = vpack.c.b16 %v654, %v653
    %v844 = vpack.c.b16 %v656, %v655
    %v845 = vpack.c.b16 %v658, %v657
    %v846 = vpack.c.b16 %v660, %v659
    %v847 = vpack.c.b16 %v662, %v661
    %v848 = vpack.c.b16 %v664, %v663
    %v849 = vpack.c.b16 %v666, %v665
    %v850 = vpack.c.b16 %v668, %v667
    %v851 = vpack.c.b16 %v670, %v669
    %v852 = vpack.c.b16 %v672, %v671
    %v853 = vpack.c.b16 %v674, %v673
    %v854 = vpack.c.b16 %v676, %v675
    %v855 = vpack.c.b16 %v678, %v677
    %v856 = vpack.c.b16 %v680, %v679
    %v857 = vpack.c.b16 %v682, %v681
    %v858 = vpack.c.b16 %v684, %v683
    %v859 = vpack.c.b16 %v686, %v685
    %v860 = vpack.c.b16 %v688, %v687
    %v861 = vpack.c.b16 %v690, %v689
    %v862 = vpack.c.b16 %v692, %v691
    %v863 = vpack.c.b16 %v694, %v693
    %v864 = vpack.c.b16 %v696, %v695
    %v865 = vpack.c.b16 %v698, %v697
    %v866 = vpack.c.b16 %v700, %v699
    %v867 = vpack.c.b16 %v702, %v701
    %v868 = vpack.c.b16 %v704, %v703
    %v869 = vpack.c.b16 %v706, %v705
    %v870 = vpack.c.b16 %v708, %v707
    %v871 = vpack.c.b16 %v710, %v709
    %v872 = vpack.c.b16 %v712, %v711
    %v873 = vpack.c.b16 %v714, %v713
    %v874 = vpack.c.b16 %v716, %v715
    %v875 = vpack.c.b16 %v718, %v717
    %v876 = vpack.c.b16 %v720, %v719
    %v877 = vpack.c.b16 %v722, %v721
    %v878 = vpack.c.b16 %v724, %v723
    %v879 = vpack.c.b16 %v726, %v725
    %v880 = vpack.c.b16 %v728, %v727
    %v881 = vpack.c.b16 %v730, %v729
    %v882 = vpack.c.b16 %v732, %v731
    %v883 = vpack.c.b16 %v734, %v733
    %v884 = vpack.c.b16 %v736, %v735
    %v885 = vpack.c.b16 %v738, %v737
    %v886 = vpack.c.b16 %v740, %v739
    %v887 = vpack.c.b16 %v742, %v741
    %v888 = vpack.c.b16 %v744, %v743
    %v889 = vpack.c.b16 %v746, %v745
    %v890 = vpack.c.b16 %v748, %v747
    %v891 = vpack.c.b16 %v750, %v749
    %v892 = vpack.c.b16 %v752, %v751
    %v893 = vpack.c.b16 %v754, %v753
    %v894 = vpack.c.b16 %v756, %v755
    %v895 = vpack.c.b16 %v758, %v757
    %v896 = vpack.c.b16 %v760, %v759
    %v897 = vpack.c.b16 %v762, %v761
    %v898 = vpack.c.b16 %v764, %v763
    %v899 = vpack.c.b16 %v766, %v765
    %v900 = vpack.c.b16 %v768, %v767
    %v901 = vpack.c.b16 %v770, %v769
    %v902 = vpack.c.b16 %v772, %v771
    %v903 = vpack.c.b16 %v774, %v773
    %v904 = vpack.c.b16 %v776, %v775
    %v905 = vpack.c.b16 %v778, %v777
    %v906 = vpack.c.b16 %v780, %v779
    %v907 = vpack.c.b16 %v782, %v781
    %v908 = vpack.c.b16 %v784, %v783
    %v909 = vpack.c.b16 %v786, %v785
    %v910 = vpack.c.b16 %v788, %v787
    %v911 = vpack.c.b16 %v790, %v789
    %v912 = vpack.c.b16 %v792, %v791
    %v913 = vpack.c.b16 %v794, %v793
    %v914 = vpack.c.b16 %v796, %v795
    %v915 = vpack.c.b16 %v798, %v797
    %v916 = vpack.c.b16 %v800, %v799
    %v917 = vpack.c.b16 %v802, %v801
    %v918 = vpack.c.b16 %v804, %v803
    %v919 = vpack.c.b16 %v806, %v805
    %v920 = vpack.c.b16 %v808, %v807
    %v921 = vpack.c.b16 %v810, %v809
    %v922 = vpack.c.b16 %v812, %v811
    %v923 = vpack.c.b16 %v814, %v813
    %v924 = vpack.c.b16 %v816, %v815
    %v925 = vpack.c.b16 %v818, %v817
    %v926 = vpack.c.b16 %v820, %v819
    %v927 = vpack.c.b16 %v822, %v821
    %v928 = vpack.c.b16 %v824, %v823
    %1033 = vmatprep.subr.bf16.mxu0 0
    %1034 = vmatpush1.bf16.msra.mxu0 %v832
    %1035 = vmatprep.subr.bf16.mxu0 0
    %1036 = vmatpush1.bf16.msra.mxu0 %v831
    %1037 = vmatprep.subr.bf16.mxu0 0
    %1038 = vmatpush1.bf16.msra.mxu0 %v830
    %1039 = vmatprep.subr.bf16.mxu0 0
    %1040 = vmatpush1.bf16.msra.mxu0 %v829
    %1041 = vmatprep.subr.bf16.mxu0 0
    %1042 = vmatpush1.bf16.msra.mxu0 %v828
    %1043 = vmatprep.subr.bf16.mxu0 0
    %1044 = vmatpush1.bf16.msra.mxu0 %v827
    %1045 = vmatprep.subr.bf16.mxu0 0
    %1046 = vmatpush1.bf16.msra.mxu0 %v826
    %1047 = vmatprep.subr.bf16.mxu0 0
    %1048 = vmatpush1.bf16.msra.mxu0 %v825
    %1049 = vmatprep.subr.bf16.mxu0 0
    %1050 = vmatpush2.bf16.msra.mxu0 %v840
    %1051 = vmatprep.subr.bf16.mxu0 0
    %1052 = vmatpush2.bf16.msra.mxu0 %v839
    %1053 = vmatprep.subr.bf16.mxu0 0
    %1054 = vmatpush2.bf16.msra.mxu0 %v838
    %1055 = vmatprep.subr.bf16.mxu0 0
    %1056 = vmatpush2.bf16.msra.mxu0 %v837
    %1057 = vmatprep.subr.bf16.mxu0 0
    %1058 = vmatpush2.bf16.msra.mxu0 %v836
    %1059 = vmatprep.subr.bf16.mxu0 0
    %1060 = vmatpush2.bf16.msra.mxu0 %v835
    %1061 = vmatprep.subr.bf16.mxu0 0
    %1062 = vmatpush2.bf16.msra.mxu0 %v834
    %1063 = vmatprep.subr.bf16.mxu0 0
    %1064 = vmatpush2.bf16.msra.mxu0 %v833
    %1065 = vmatprep.mubr.bf16.mxu0 %v358
    %1066 = vmatmul.mubr.bf16.gmra.mxu0 %v357
    %v1067 = vpop.f32.mrf.mxu0
    %v1068 = vadd.f32 %v275, %v1067
    %v1069 = vpop.f32.mrf.mxu0
    %v1070 = vpop.f32.mrf.mxu0
    %v1071 = vadd.f32 %v275, %v1070
    %v1072 = vpop.f32.mrf.mxu0
    %1073 = vmatprep.mubr.bf16.mxu0 %v371
    %1074 = vmatmul.mubr.bf16.gmra.mxu0 %v370
    %v1075 = vpop.f32.mrf.mxu0
    %v1076 = vadd.f32 %v275, %v1075
    %v1077 = vpop.f32.mrf.mxu0
    %v1078 = vpop.f32.mrf.mxu0
    %v1079 = vadd.f32 %v275, %v1078
    %v1080 = vpop.f32.mrf.mxu0
    %1081 = vdwg.mxu0
    %1082 = vmatprep.subr.bf16.mxu0 0
    %1083 = vmatpush1.bf16.msra.mxu0 %v848
    %1084 = vmatprep.subr.bf16.mxu0 0
    %1085 = vmatpush1.bf16.msra.mxu0 %v847
    %1086 = vmatprep.subr.bf16.mxu0 0
    %1087 = vmatpush1.bf16.msra.mxu0 %v846
    %1088 = vmatprep.subr.bf16.mxu0 0
    %1089 = vmatpush1.bf16.msra.mxu0 %v845
    %1090 = vmatprep.subr.bf16.mxu0 0
    %1091 = vmatpush1.bf16.msra.mxu0 %v844
    %1092 = vmatprep.subr.bf16.mxu0 0
    %1093 = vmatpush1.bf16.msra.mxu0 %v843
    %1094 = vmatprep.subr.bf16.mxu0 0
    %1095 = vmatpush1.bf16.msra.mxu0 %v842
    %1096 = vmatprep.subr.bf16.mxu0 0
    %1097 = vmatpush1.bf16.msra.mxu0 %v841
    %1098 = vmatprep.subr.bf16.mxu0 0
    %1099 = vmatpush2.bf16.msra.mxu0 %v856
    %1100 = vmatprep.subr.bf16.mxu0 0
    %1101 = vmatpush2.bf16.msra.mxu0 %v855
    %1102 = vmatprep.subr.bf16.mxu0 0
    %1103 = vmatpush2.bf16.msra.mxu0 %v854
    %1104 = vmatprep.subr.bf16.mxu0 0
    %1105 = vmatpush2.bf16.msra.mxu0 %v853
    %1106 = vmatprep.subr.bf16.mxu0 0
    %1107 = vmatpush2.bf16.msra.mxu0 %v852
    %1108 = vmatprep.subr.bf16.mxu0 0
    %1109 = vmatpush2.bf16.msra.mxu0 %v851
    %1110 = vmatprep.subr.bf16.mxu0 0
    %1111 = vmatpush2.bf16.msra.mxu0 %v850
    %1112 = vmatprep.subr.bf16.mxu0 0
    %1113 = vmatpush2.bf16.msra.mxu0 %v849
    %1114 = vmatprep.mubr.bf16.mxu0 %v360
    %1115 = vmatmul.mubr.bf16.gmra.mxu0 %v359
    %v1116 = vpop.f32.mrf.mxu0
    %v1117 = vadd.f32 %v1068, %v1116
    %v1118 = vpop.f32.mrf.mxu0
    %v1119 = vpop.f32.mrf.mxu0
    %v1120 = vadd.f32 %v1071, %v1119
    %v1121 = vpop.f32.mrf.mxu0
    %1122 = vmatprep.mubr.bf16.mxu0 %v373
    %1123 = vmatmul.mubr.bf16.gmra.mxu0 %v372
    %v1124 = vpop.f32.mrf.mxu0
    %v1125 = vadd.f32 %v1076, %v1124
    %v1126 = vpop.f32.mrf.mxu0
    %v1127 = vpop.f32.mrf.mxu0
    %v1128 = vadd.f32 %v1079, %v1127
    %v1129 = vpop.f32.mrf.mxu0
    %1130 = vdwg.mxu0
    %1131 = vmatprep.subr.bf16.mxu0 0
    %1132 = vmatpush1.bf16.msra.mxu0 %v864
    %1133 = vmatprep.subr.bf16.mxu0 0
    %1134 = vmatpush1.bf16.msra.mxu0 %v863
    %1135 = vmatprep.subr.bf16.mxu0 0
    %1136 = vmatpush1.bf16.msra.mxu0 %v862
    %1137 = vmatprep.subr.bf16.mxu0 0
    %1138 = vmatpush1.bf16.msra.mxu0 %v861
    %1139 = vmatprep.subr.bf16.mxu0 0
    %1140 = vmatpush1.bf16.msra.mxu0 %v860
    %1141 = vmatprep.subr.bf16.mxu0 0
    %1142 = vmatpush1.bf16.msra.mxu0 %v859
    %1143 = vmatprep.subr.bf16.mxu0 0
    %1144 = vmatpush1.bf16.msra.mxu0 %v858
    %1145 = vmatprep.subr.bf16.mxu0 0
    %1146 = vmatpush1.bf16.msra.mxu0 %v857
    %1147 = vmatprep.subr.bf16.mxu0 0
    %1148 = vmatpush2.bf16.msra.mxu0 %v872
    %1149 = vmatprep.subr.bf16.mxu0 0
    %1150 = vmatpush2.bf16.msra.mxu0 %v871
    %1151 = vmatprep.subr.bf16.mxu0 0
    %1152 = vmatpush2.bf16.msra.mxu0 %v870
    %1153 = vmatprep.subr.bf16.mxu0 0
    %1154 = vmatpush2.bf16.msra.mxu0 %v869
    %1155 = vmatprep.subr.bf16.mxu0 0
    %1156 = vmatpush2.bf16.msra.mxu0 %v868
    %1157 = vmatprep.subr.bf16.mxu0 0
    %1158 = vmatpush2.bf16.msra.mxu0 %v867
    %1159 = vmatprep.subr.bf16.mxu0 0
    %1160 = vmatpush2.bf16.msra.mxu0 %v866
    %1161 = vmatprep.subr.bf16.mxu0 0
    %1162 = vmatpush2.bf16.msra.mxu0 %v865
    %1163 = vmatprep.mubr.bf16.mxu0 %v362
    %1164 = vmatmul.mubr.bf16.gmra.mxu0 %v361
    %v1165 = vpop.f32.mrf.mxu0
    %v1166 = vadd.f32 %v1117, %v1165
    %v1167 = vpop.f32.mrf.mxu0
    %v1168 = vpop.f32.mrf.mxu0
    %v1169 = vadd.f32 %v1120, %v1168
    %v1170 = vpop.f32.mrf.mxu0
    %1171 = vmatprep.mubr.bf16.mxu0 %v375
    %1172 = vmatmul.mubr.bf16.gmra.mxu0 %v374
    %v1173 = vpop.f32.mrf.mxu0
    %v1174 = vadd.f32 %v1125, %v1173
    %v1175 = vpop.f32.mrf.mxu0
    %v1176 = vpop.f32.mrf.mxu0
    %v1177 = vadd.f32 %v1128, %v1176
    %v1178 = vpop.f32.mrf.mxu0
    %1179 = vdwg.mxu0
    %1180 = vmatprep.subr.bf16.mxu0 0
    %1181 = vmatpush1.bf16.msra.mxu0 %v880
    %1182 = vmatprep.subr.bf16.mxu0 0
    %1183 = vmatpush1.bf16.msra.mxu0 %v879
    %1184 = vmatprep.subr.bf16.mxu0 0
    %1185 = vmatpush1.bf16.msra.mxu0 %v878
    %1186 = vmatprep.subr.bf16.mxu0 0
    %1187 = vmatpush1.bf16.msra.mxu0 %v877
    %1188 = vmatprep.subr.bf16.mxu0 0
    %1189 = vmatpush1.bf16.msra.mxu0 %v876
    %1190 = vmatprep.subr.bf16.mxu0 0
    %1191 = vmatpush1.bf16.msra.mxu0 %v875
    %1192 = vmatprep.subr.bf16.mxu0 0
    %1193 = vmatpush1.bf16.msra.mxu0 %v874
    %1194 = vmatprep.subr.bf16.mxu0 0
    %1195 = vmatpush1.bf16.msra.mxu0 %v873
    %1196 = vmatprep.subr.bf16.mxu0 0
    %1197 = vmatpush2.bf16.msra.mxu0 %v888
    %1198 = vmatprep.subr.bf16.mxu0 0
    %1199 = vmatpush2.bf16.msra.mxu0 %v887
    %1200 = vmatprep.subr.bf16.mxu0 0
    %1201 = vmatpush2.bf16.msra.mxu0 %v886
    %1202 = vmatprep.subr.bf16.mxu0 0
    %1203 = vmatpush2.bf16.msra.mxu0 %v885
    %1204 = vmatprep.subr.bf16.mxu0 0
    %1205 = vmatpush2.bf16.msra.mxu0 %v884
    %1206 = vmatprep.subr.bf16.mxu0 0
    %1207 = vmatpush2.bf16.msra.mxu0 %v883
    %1208 = vmatprep.subr.bf16.mxu0 0
    %1209 = vmatpush2.bf16.msra.mxu0 %v882
    %1210 = vmatprep.subr.bf16.mxu0 0
    %1211 = vmatpush2.bf16.msra.mxu0 %v881
    %1212 = vmatprep.mubr.bf16.mxu0 %v364
    %1213 = vmatmul.mubr.bf16.gmra.mxu0 %v363
    %v1214 = vpop.f32.mrf.mxu0
    %v1215 = vadd.f32 %v1166, %v1214
    %v1216 = vpop.f32.mrf.mxu0
    %v1217 = vpop.f32.mrf.mxu0
    %v1218 = vadd.f32 %v1169, %v1217
    %v1219 = vpop.f32.mrf.mxu0
    %1220 = vmatprep.mubr.bf16.mxu0 %v377
    %1221 = vmatmul.mubr.bf16.gmra.mxu0 %v376
    %v1222 = vpop.f32.mrf.mxu0
    %v1223 = vadd.f32 %v1174, %v1222
    %v1224 = vpop.f32.mrf.mxu0
    %v1225 = vpop.f32.mrf.mxu0
    %v1226 = vadd.f32 %v1177, %v1225
    %v1227 = vpop.f32.mrf.mxu0
    %1228 = vdwg.mxu0
    %1229 = vmatprep.subr.bf16.mxu0 0
    %1230 = vmatpush1.bf16.msra.mxu0 %v896
    %1231 = vmatprep.subr.bf16.mxu0 0
    %1232 = vmatpush1.bf16.msra.mxu0 %v895
    %1233 = vmatprep.subr.bf16.mxu0 0
    %1234 = vmatpush1.bf16.msra.mxu0 %v894
    %1235 = vmatprep.subr.bf16.mxu0 0
    %1236 = vmatpush1.bf16.msra.mxu0 %v893
    %1237 = vmatprep.subr.bf16.mxu0 0
    %1238 = vmatpush1.bf16.msra.mxu0 %v892
    %1239 = vmatprep.subr.bf16.mxu0 0
    %1240 = vmatpush1.bf16.msra.mxu0 %v891
    %1241 = vmatprep.subr.bf16.mxu0 0
    %1242 = vmatpush1.bf16.msra.mxu0 %v890
    %1243 = vmatprep.subr.bf16.mxu0 0
    %1244 = vmatpush1.bf16.msra.mxu0 %v889
    %1245 = vmatprep.subr.bf16.mxu0 0
    %1246 = vmatpush2.bf16.msra.mxu0 %v904
    %1247 = vmatprep.subr.bf16.mxu0 0
    %1248 = vmatpush2.bf16.msra.mxu0 %v903
    %1249 = vmatprep.subr.bf16.mxu0 0
    %1250 = vmatpush2.bf16.msra.mxu0 %v902
    %1251 = vmatprep.subr.bf16.mxu0 0
    %1252 = vmatpush2.bf16.msra.mxu0 %v901
    %1253 = vmatprep.subr.bf16.mxu0 0
    %1254 = vmatpush2.bf16.msra.mxu0 %v900
    %1255 = vmatprep.subr.bf16.mxu0 0
    %1256 = vmatpush2.bf16.msra.mxu0 %v899
    %1257 = vmatprep.subr.bf16.mxu0 0
    %1258 = vmatpush2.bf16.msra.mxu0 %v898
    %1259 = vmatprep.subr.bf16.mxu0 0
    %1260 = vmatpush2.bf16.msra.mxu0 %v897
    %1261 = vmatprep.mubr.bf16.mxu0 %v366
    %1262 = vmatmul.mubr.bf16.gmra.mxu0 %v365
    %v1263 = vpop.f32.mrf.mxu0
    %v1264 = vadd.f32 %v1215, %v1263
    %v1265 = vpop.f32.mrf.mxu0
    %v1266 = vpop.f32.mrf.mxu0
    %v1267 = vadd.f32 %v1218, %v1266
    %v1268 = vpop.f32.mrf.mxu0
    %1269 = vmatprep.mubr.bf16.mxu0 %v379
    %1270 = vmatmul.mubr.bf16.gmra.mxu0 %v378
    %v1271 = vpop.f32.mrf.mxu0
    %v1272 = vadd.f32 %v1223, %v1271
    %v1273 = vpop.f32.mrf.mxu0
    %v1274 = vpop.f32.mrf.mxu0
    %v1275 = vadd.f32 %v1226, %v1274
    %v1276 = vpop.f32.mrf.mxu0
    %1277 = vdwg.mxu0
    %1278 = vmatprep.subr.bf16.mxu0 0
    %1279 = vmatpush1.bf16.msra.mxu0 %v912
    %1280 = vmatprep.subr.bf16.mxu0 0
    %1281 = vmatpush1.bf16.msra.mxu0 %v911
    %1282 = vmatprep.subr.bf16.mxu0 0
    %1283 = vmatpush1.bf16.msra.mxu0 %v910
    %1284 = vmatprep.subr.bf16.mxu0 0
    %1285 = vmatpush1.bf16.msra.mxu0 %v909
    %1286 = vmatprep.subr.bf16.mxu0 0
    %1287 = vmatpush1.bf16.msra.mxu0 %v908
    %1288 = vmatprep.subr.bf16.mxu0 0
    %1289 = vmatpush1.bf16.msra.mxu0 %v907
    %1290 = vmatprep.subr.bf16.mxu0 0
    %1291 = vmatpush1.bf16.msra.mxu0 %v906
    %1292 = vmatprep.subr.bf16.mxu0 0
    %1293 = vmatpush1.bf16.msra.mxu0 %v905
    %1294 = vmatprep.subr.bf16.mxu0 0
    %1295 = vmatpush2.bf16.msra.mxu0 %v920
    %1296 = vmatprep.subr.bf16.mxu0 0
    %1297 = vmatpush2.bf16.msra.mxu0 %v919
    %1298 = vmatprep.subr.bf16.mxu0 0
    %1299 = vmatpush2.bf16.msra.mxu0 %v918
    %1300 = vmatprep.subr.bf16.mxu0 0
    %1301 = vmatpush2.bf16.msra.mxu0 %v917
    %1302 = vmatprep.subr.bf16.mxu0 0
    %1303 = vmatpush2.bf16.msra.mxu0 %v916
    %1304 = vmatprep.subr.bf16.mxu0 0
    %1305 = vmatpush2.bf16.msra.mxu0 %v915
    %1306 = vmatprep.subr.bf16.mxu0 0
    %1307 = vmatpush2.bf16.msra.mxu0 %v914
    %1308 = vmatprep.subr.bf16.mxu0 0
    %1309 = vmatpush2.bf16.msra.mxu0 %v913
    %1310 = vmatprep.mubr.bf16.mxu0 %v368
    %1311 = vmatmul.mubr.bf16.gmra.mxu0 %v367
    %v1312 = vpop.f32.mrf.mxu0
    %v1313 = vadd.f32 %v1264, %v1312
    %v1314 = vpop.f32.mrf.mxu0
    %v1315 = vpop.f32.mrf.mxu0
    %v1316 = vadd.f32 %v1267, %v1315
    %v1317 = vpop.f32.mrf.mxu0
    %1318 = vmatprep.mubr.bf16.mxu0 %v381
    %1319 = vmatmul.mubr.bf16.gmra.mxu0 %v380
    %v1320 = vpop.f32.mrf.mxu0
    %v1321 = vadd.f32 %v1272, %v1320
    %v1322 = vpop.f32.mrf.mxu0
    %v1323 = vpop.f32.mrf.mxu0
    %v1324 = vadd.f32 %v1275, %v1323
    %v1325 = vpop.f32.mrf.mxu0
    %1326 = vdwg.mxu0
    %1327 = vmatprep.subr.bf16.mxu0 0
    %1328 = vmatpush1.bf16.msra.mxu0 %v928
    %1329 = vmatprep.subr.bf16.mxu0 0
    %1330 = vmatpush1.bf16.msra.mxu0 %v927
    %1331 = vmatprep.subr.bf16.mxu0 0
    %1332 = vmatpush1.bf16.msra.mxu0 %v926
    %1333 = vmatprep.subr.bf16.mxu0 0
    %1334 = vmatpush1.bf16.msra.mxu0 %v925
    %1335 = vmatprep.subr.bf16.mxu0 0
    %1336 = vmatpush1.bf16.msra.mxu0 %v924
    %1337 = vmatprep.subr.bf16.mxu0 0
    %1338 = vmatpush1.bf16.msra.mxu0 %v923
    %1339 = vmatprep.subr.bf16.mxu0 0
    %1340 = vmatpush1.bf16.msra.mxu0 %v922
    %1341 = vmatprep.subr.bf16.mxu0 0
    %1342 = vmatpush1.bf16.msra.mxu0 %v921
    %1343 = vmatprep.subr.bf16.mxu0 0
    %1344 = vmatpush2.bf16.msra.mxu0 0
    %1345 = vmatprep.subr.bf16.mxu0 0
    %1346 = vmatpush2.bf16.msra.mxu0 0
    %1347 = vmatprep.subr.bf16.mxu0 0
    %1348 = vmatpush2.bf16.msra.mxu0 0
    %1349 = vmatprep.subr.bf16.mxu0 0
    %1350 = vmatpush2.bf16.msra.mxu0 0
    %1351 = vmatprep.subr.bf16.mxu0 0
    %1352 = vmatpush2.bf16.msra.mxu0 0
    %1353 = vmatprep.subr.bf16.mxu0 0
    %1354 = vmatpush2.bf16.msra.mxu0 0
    %1355 = vmatprep.subr.bf16.mxu0 0
    %1356 = vmatpush2.bf16.msra.mxu0 0
    %1357 = vmatprep.subr.bf16.mxu0 0
    %1358 = vmatpush2.bf16.msra.mxu0 0
    %1359 = vmatprep.mubr.bf16.mxu0 0
    %1360 = vmatmul.mubr.bf16.gmra.mxu0 %v369
    %v1361 = vpop.f32.mrf.mxu0
    %v1362 = vadd.f32 %v1313, %v1361
    %v1363 = vpop.f32.mrf.mxu0
    %v1364 = vpop.f32.mrf.mxu0
    %v1365 = vadd.f32 %v1316, %v1364
    %v1366 = vpop.f32.mrf.mxu0
    %1367 = vmatprep.mubr.bf16.mxu0 0
    %1368 = vmatmul.mubr.bf16.gmra.mxu0 %v382
    %v1369 = vpop.f32.mrf.mxu0
    %v1370 = vadd.f32 %v1321, %v1369
    %v1371 = vpop.f32.mrf.mxu0
    %v1372 = vpop.f32.mrf.mxu0
    %v1373 = vadd.f32 %v1324, %v1372
    %v1374 = vpop.f32.mrf.mxu0
    %1375 = vdwg.mxu0
    %v1376 = vmax.f32 %v1362, 0.0
    %v1377 = vmax.f32 %v1365, 0.0
    %v1378 = vmax.f32 %v1370, 0.0
    %v1379 = vmax.f32 %v1373, 0.0
    %v1380 = vpack.c.bf16 %v1377, %v1376
    %v1381 = vpack.c.bf16 %v1379, %v1378
    %v1382 = vld [vmem:[%s3] sm:$0xf]
    %v1383 = vld [vmem:[%s3 + $0x4] sm:$0xf]
    %v1384 = vld [vmem:[%s3 + $0x8] sm:$0xf]
    %v1385 = vld [vmem:[%s3 + $0xc] sm:$0xf]
    %s1386 = scalar_lea.vmem %s3, 16
    %v1387 = vld [vmem:[%s1386] sm:$0xf]
    %v1388 = vld [vmem:[%s1386 + $0x4] sm:$0xf]
    %v1389 = vld [vmem:[%s1386 + $0x8] sm:$0xf]
    %v1390 = vld [vmem:[%s1386 + $0xc] sm:$0xf]
    %v1392 = vrot.slane %v1380, 1
    %v1397 = vunpack.c.l.b16 %v1387
    %v1398 = vunpack.c.l.b16 %v1388
    %v1399 = vunpack.c.l.b16 %v1389
    %v1400 = vunpack.c.l.b16 %v1390
    %v1401 = vpack.c.b16 %v1398, %v1397
    %v1402 = vpack.c.b16 %v1400, %v1399
    %vm1405 = vcmask 261120
    %v1407 = vsel %vm1405, %v1392, 0
    %1409 = vmatprep.subr.bf16.mxu0 0
    %1410 = vmatpush1.bf16.msra.mxu0 0
    %1411 = vmatprep.subr.bf16.mxu0 0
    %1412 = vmatpush1.bf16.msra.mxu0 0
    %1413 = vmatprep.subr.bf16.mxu0 0
    %1414 = vmatpush1.bf16.msra.mxu0 0
    %1415 = vmatprep.subr.bf16.mxu0 0
    %1416 = vmatpush1.bf16.msra.mxu0 0
    %1417 = vmatprep.subr.bf16.mxu0 0
    %1418 = vmatpush1.bf16.msra.mxu0 0
    %1419 = vmatprep.subr.bf16.mxu0 0
    %1420 = vmatpush1.bf16.msra.mxu0 0
    %1421 = vmatprep.subr.bf16.mxu0 0
    %1422 = vmatpush1.bf16.msra.mxu0 %v1402
    %1423 = vmatprep.subr.bf16.mxu0 0
    %1424 = vmatpush1.bf16.msra.mxu0 %v1401
    %1425 = vmatprep.subr.bf16.mxu0 0
    %1426 = vmatpush2.bf16.msra.mxu0 0
    %1427 = vmatprep.subr.bf16.mxu0 0
    %1428 = vmatpush2.bf16.msra.mxu0 0
    %1429 = vmatprep.subr.bf16.mxu0 0
    %1430 = vmatpush2.bf16.msra.mxu0 0
    %1431 = vmatprep.subr.bf16.mxu0 0
    %1432 = vmatpush2.bf16.msra.mxu0 0
    %1433 = vmatprep.subr.bf16.mxu0 0
    %1434 = vmatpush2.bf16.msra.mxu0 0
    %1435 = vmatprep.subr.bf16.mxu0 0
    %1436 = vmatpush2.bf16.msra.mxu0 0
    %1437 = vmatprep.subr.bf16.mxu0 0
    %1438 = vmatpush2.bf16.msra.mxu0 0
    %1439 = vmatprep.subr.bf16.mxu0 0
    %1440 = vmatpush2.bf16.msra.mxu0 0
    %1441 = vmatprep.mubr.bf16.mxu0 0
    %1442 = vmatmul.mubr.bf16.gmra.mxu0 %v1407
    %v1443 = vpop.f32.mrf.mxu0
    %v1444 = vadd.f32 0.0, %v1443
    %v1445 = vpop.f32.mrf.mxu0
    %v1446 = vpop.f32.mrf.mxu0
    %v1447 = vpop.f32.mrf.mxu0
    %1448 = vdwg.mxu0
    %v1453 = vunpack.c.l.b16 %v1382
    %v1454 = vunpack.c.l.b16 %v1383
    %v1455 = vunpack.c.l.b16 %v1384
    %v1456 = vunpack.c.l.b16 %v1385
    %v1457 = vpack.c.b16 %v1454, %v1453
    %v1458 = vpack.c.b16 %v1456, %v1455
    %v1462 = vsel %vm1405, %v1380, 0
    %1464 = vmatprep.subr.bf16.mxu0 0
    %1465 = vmatpush1.bf16.msra.mxu0 0
    %1466 = vmatprep.subr.bf16.mxu0 0
    %1467 = vmatpush1.bf16.msra.mxu0 0
    %1468 = vmatprep.subr.bf16.mxu0 0
    %1469 = vmatpush1.bf16.msra.mxu0 0
    %1470 = vmatprep.subr.bf16.mxu0 0
    %1471 = vmatpush1.bf16.msra.mxu0 0
    %1472 = vmatprep.subr.bf16.mxu0 0
    %1473 = vmatpush1.bf16.msra.mxu0 0
    %1474 = vmatprep.subr.bf16.mxu0 0
    %1475 = vmatpush1.bf16.msra.mxu0 0
    %1476 = vmatprep.subr.bf16.mxu0 0
    %1477 = vmatpush1.bf16.msra.mxu0 %v1458
    %1478 = vmatprep.subr.bf16.mxu0 0
    %1479 = vmatpush1.bf16.msra.mxu0 %v1457
    %1480 = vmatprep.subr.bf16.mxu0 0
    %1481 = vmatpush2.bf16.msra.mxu0 0
    %1482 = vmatprep.subr.bf16.mxu0 0
    %1483 = vmatpush2.bf16.msra.mxu0 0
    %1484 = vmatprep.subr.bf16.mxu0 0
    %1485 = vmatpush2.bf16.msra.mxu0 0
    %1486 = vmatprep.subr.bf16.mxu0 0
    %1487 = vmatpush2.bf16.msra.mxu0 0
    %1488 = vmatprep.subr.bf16.mxu0 0
    %1489 = vmatpush2.bf16.msra.mxu0 0
    %1490 = vmatprep.subr.bf16.mxu0 0
    %1491 = vmatpush2.bf16.msra.mxu0 0
    %1492 = vmatprep.subr.bf16.mxu0 0
    %1493 = vmatpush2.bf16.msra.mxu0 0
    %1494 = vmatprep.subr.bf16.mxu0 0
    %1495 = vmatpush2.bf16.msra.mxu0 0
    %1496 = vmatprep.mubr.bf16.mxu0 0
    %1497 = vmatmul.mubr.bf16.gmra.mxu0 %v1462
    %v1498 = vpop.f32.mrf.mxu0
    %v1499 = vadd.f32 %v1444, %v1498
    %v1500 = vpop.f32.mrf.mxu0
    %v1501 = vpop.f32.mrf.mxu0
    %v1502 = vpop.f32.mrf.mxu0
    %1503 = vdwg.mxu0
    %s1504 = scalar_lea.vmem %s3, 32
    %v1505 = vld [vmem:[%s1504] sm:$0xf]
    %v1506 = vld [vmem:[%s1504 + $0x4] sm:$0xf]
    %v1507 = vld [vmem:[%s1504 + $0x8] sm:$0xf]
    %v1508 = vld [vmem:[%s1504 + $0xc] sm:$0xf]
    %v1509 = vrot.slane %v1380, 2
    %v1514 = vunpack.c.l.b16 %v1505
    %v1515 = vunpack.c.l.b16 %v1506
    %v1516 = vunpack.c.l.b16 %v1507
    %v1517 = vunpack.c.l.b16 %v1508
    %v1518 = vpack.c.b16 %v1515, %v1514
    %v1519 = vpack.c.b16 %v1517, %v1516
    %v1523 = vsel %vm1405, %v1509, 0
    %1525 = vmatprep.subr.bf16.mxu0 0
    %1526 = vmatpush1.bf16.msra.mxu0 0
    %1527 = vmatprep.subr.bf16.mxu0 0
    %1528 = vmatpush1.bf16.msra.mxu0 0
    %1529 = vmatprep.subr.bf16.mxu0 0
    %1530 = vmatpush1.bf16.msra.mxu0 0
    %1531 = vmatprep.subr.bf16.mxu0 0
    %1532 = vmatpush1.bf16.msra.mxu0 0
    %1533 = vmatprep.subr.bf16.mxu0 0
    %1534 = vmatpush1.bf16.msra.mxu0 0
    %1535 = vmatprep.subr.bf16.mxu0 0
    %1536 = vmatpush1.bf16.msra.mxu0 0
    %1537 = vmatprep.subr.bf16.mxu0 0
    %1538 = vmatpush1.bf16.msra.mxu0 %v1519
    %1539 = vmatprep.subr.bf16.mxu0 0
    %1540 = vmatpush1.bf16.msra.mxu0 %v1518
    %1541 = vmatprep.subr.bf16.mxu0 0
    %1542 = vmatpush2.bf16.msra.mxu0 0
    %1543 = vmatprep.subr.bf16.mxu0 0
    %1544 = vmatpush2.bf16.msra.mxu0 0
    %1545 = vmatprep.subr.bf16.mxu0 0
    %1546 = vmatpush2.bf16.msra.mxu0 0
    %1547 = vmatprep.subr.bf16.mxu0 0
    %1548 = vmatpush2.bf16.msra.mxu0 0
    %1549 = vmatprep.subr.bf16.mxu0 0
    %1550 = vmatpush2.bf16.msra.mxu0 0
    %1551 = vmatprep.subr.bf16.mxu0 0
    %1552 = vmatpush2.bf16.msra.mxu0 0
    %1553 = vmatprep.subr.bf16.mxu0 0
    %1554 = vmatpush2.bf16.msra.mxu0 0
    %1555 = vmatprep.subr.bf16.mxu0 0
    %1556 = vmatpush2.bf16.msra.mxu0 0
    %1557 = vmatprep.mubr.bf16.mxu0 0
    %1558 = vmatmul.mubr.bf16.gmra.mxu0 %v1523
    %v1559 = vpop.f32.mrf.mxu0
    %v1560 = vadd.f32 0.0, %v1559
    %v1561 = vpop.f32.mrf.mxu0
    %v1562 = vpop.f32.mrf.mxu0
    %v1563 = vpop.f32.mrf.mxu0
    %1564 = vdwg.mxu0
    %v1565 = vadd.f32 %v1499, %v1560
    %s1566 = scalar_lea.vmem %s3, 48
    %v1567 = vld [vmem:[%s1566] sm:$0xf]
    %v1568 = vld [vmem:[%s1566 + $0x4] sm:$0xf]
    %v1569 = vld [vmem:[%s1566 + $0x8] sm:$0xf]
    %v1570 = vld [vmem:[%s1566 + $0xc] sm:$0xf]
    %v1571 = vrot.slane %v1380, 3
    %v1576 = vunpack.c.l.b16 %v1567
    %v1577 = vunpack.c.l.b16 %v1568
    %v1578 = vunpack.c.l.b16 %v1569
    %v1579 = vunpack.c.l.b16 %v1570
    %v1580 = vpack.c.b16 %v1577, %v1576
    %v1581 = vpack.c.b16 %v1579, %v1578
    %v1585 = vsel %vm1405, %v1571, 0
    %1587 = vmatprep.subr.bf16.mxu0 0
    %1588 = vmatpush1.bf16.msra.mxu0 0
    %1589 = vmatprep.subr.bf16.mxu0 0
    %1590 = vmatpush1.bf16.msra.mxu0 0
    %1591 = vmatprep.subr.bf16.mxu0 0
    %1592 = vmatpush1.bf16.msra.mxu0 0
    %1593 = vmatprep.subr.bf16.mxu0 0
    %1594 = vmatpush1.bf16.msra.mxu0 0
    %1595 = vmatprep.subr.bf16.mxu0 0
    %1596 = vmatpush1.bf16.msra.mxu0 0
    %1597 = vmatprep.subr.bf16.mxu0 0
    %1598 = vmatpush1.bf16.msra.mxu0 0
    %1599 = vmatprep.subr.bf16.mxu0 0
    %1600 = vmatpush1.bf16.msra.mxu0 %v1581
    %1601 = vmatprep.subr.bf16.mxu0 0
    %1602 = vmatpush1.bf16.msra.mxu0 %v1580
    %1603 = vmatprep.subr.bf16.mxu0 0
    %1604 = vmatpush2.bf16.msra.mxu0 0
    %1605 = vmatprep.subr.bf16.mxu0 0
    %1606 = vmatpush2.bf16.msra.mxu0 0
    %1607 = vmatprep.subr.bf16.mxu0 0
    %1608 = vmatpush2.bf16.msra.mxu0 0
    %1609 = vmatprep.subr.bf16.mxu0 0
    %1610 = vmatpush2.bf16.msra.mxu0 0
    %1611 = vmatprep.subr.bf16.mxu0 0
    %1612 = vmatpush2.bf16.msra.mxu0 0
    %1613 = vmatprep.subr.bf16.mxu0 0
    %1614 = vmatpush2.bf16.msra.mxu0 0
    %1615 = vmatprep.subr.bf16.mxu0 0
    %1616 = vmatpush2.bf16.msra.mxu0 0
    %1617 = vmatprep.subr.bf16.mxu0 0
    %1618 = vmatpush2.bf16.msra.mxu0 0
    %1619 = vmatprep.mubr.bf16.mxu0 0
    %1620 = vmatmul.mubr.bf16.gmra.mxu0 %v1585
    %v1621 = vpop.f32.mrf.mxu0
    %v1622 = vadd.f32 0.0, %v1621
    %v1623 = vpop.f32.mrf.mxu0
    %v1624 = vpop.f32.mrf.mxu0
    %v1625 = vpop.f32.mrf.mxu0
    %1626 = vdwg.mxu0
    %v1627 = vadd.f32 %v1565, %v1622
    %s1628 = scalar_lea.vmem %s3, 64
    %v1629 = vld [vmem:[%s1628] sm:$0xf]
    %v1630 = vld [vmem:[%s1628 + $0x4] sm:$0xf]
    %v1631 = vld [vmem:[%s1628 + $0x8] sm:$0xf]
    %v1632 = vld [vmem:[%s1628 + $0xc] sm:$0xf]
    %v1633 = vrot.slane %v1380, 4
    %v1638 = vunpack.c.l.b16 %v1629
    %v1639 = vunpack.c.l.b16 %v1630
    %v1640 = vunpack.c.l.b16 %v1631
    %v1641 = vunpack.c.l.b16 %v1632
    %v1642 = vpack.c.b16 %v1639, %v1638
    %v1643 = vpack.c.b16 %v1641, %v1640
    %v1647 = vsel %vm1405, %v1633, 0
    %1649 = vmatprep.subr.bf16.mxu0 0
    %1650 = vmatpush1.bf16.msra.mxu0 0
    %1651 = vmatprep.subr.bf16.mxu0 0
    %1652 = vmatpush1.bf16.msra.mxu0 0
    %1653 = vmatprep.subr.bf16.mxu0 0
    %1654 = vmatpush1.bf16.msra.mxu0 0
    %1655 = vmatprep.subr.bf16.mxu0 0
    %1656 = vmatpush1.bf16.msra.mxu0 0
    %1657 = vmatprep.subr.bf16.mxu0 0
    %1658 = vmatpush1.bf16.msra.mxu0 0
    %1659 = vmatprep.subr.bf16.mxu0 0
    %1660 = vmatpush1.bf16.msra.mxu0 0
    %1661 = vmatprep.subr.bf16.mxu0 0
    %1662 = vmatpush1.bf16.msra.mxu0 %v1643
    %1663 = vmatprep.subr.bf16.mxu0 0
    %1664 = vmatpush1.bf16.msra.mxu0 %v1642
    %1665 = vmatprep.subr.bf16.mxu0 0
    %1666 = vmatpush2.bf16.msra.mxu0 0
    %1667 = vmatprep.subr.bf16.mxu0 0
    %1668 = vmatpush2.bf16.msra.mxu0 0
    %1669 = vmatprep.subr.bf16.mxu0 0
    %1670 = vmatpush2.bf16.msra.mxu0 0
    %1671 = vmatprep.subr.bf16.mxu0 0
    %1672 = vmatpush2.bf16.msra.mxu0 0
    %1673 = vmatprep.subr.bf16.mxu0 0
    %1674 = vmatpush2.bf16.msra.mxu0 0
    %1675 = vmatprep.subr.bf16.mxu0 0
    %1676 = vmatpush2.bf16.msra.mxu0 0
    %1677 = vmatprep.subr.bf16.mxu0 0
    %1678 = vmatpush2.bf16.msra.mxu0 0
    %1679 = vmatprep.subr.bf16.mxu0 0
    %1680 = vmatpush2.bf16.msra.mxu0 0
    %1681 = vmatprep.mubr.bf16.mxu0 0
    %1682 = vmatmul.mubr.bf16.gmra.mxu0 %v1647
    %v1683 = vpop.f32.mrf.mxu0
    %v1684 = vadd.f32 0.0, %v1683
    %v1685 = vpop.f32.mrf.mxu0
    %v1686 = vpop.f32.mrf.mxu0
    %v1687 = vpop.f32.mrf.mxu0
    %1688 = vdwg.mxu0
    %v1689 = vadd.f32 %v1627, %v1684
    %s1690 = scalar_lea.vmem %s3, 80
    %v1691 = vld [vmem:[%s1690] sm:$0xf]
    %v1692 = vld [vmem:[%s1690 + $0x4] sm:$0xf]
    %v1693 = vld [vmem:[%s1690 + $0x8] sm:$0xf]
    %v1694 = vld [vmem:[%s1690 + $0xc] sm:$0xf]
    %v1695 = vrot.slane %v1380, 5
    %v1700 = vunpack.c.l.b16 %v1691
    %v1701 = vunpack.c.l.b16 %v1692
    %v1702 = vunpack.c.l.b16 %v1693
    %v1703 = vunpack.c.l.b16 %v1694
    %v1704 = vpack.c.b16 %v1701, %v1700
    %v1705 = vpack.c.b16 %v1703, %v1702
    %v1709 = vsel %vm1405, %v1695, 0
    %1711 = vmatprep.subr.bf16.mxu0 0
    %1712 = vmatpush1.bf16.msra.mxu0 0
    %1713 = vmatprep.subr.bf16.mxu0 0
    %1714 = vmatpush1.bf16.msra.mxu0 0
    %1715 = vmatprep.subr.bf16.mxu0 0
    %1716 = vmatpush1.bf16.msra.mxu0 0
    %1717 = vmatprep.subr.bf16.mxu0 0
    %1718 = vmatpush1.bf16.msra.mxu0 0
    %1719 = vmatprep.subr.bf16.mxu0 0
    %1720 = vmatpush1.bf16.msra.mxu0 0
    %1721 = vmatprep.subr.bf16.mxu0 0
    %1722 = vmatpush1.bf16.msra.mxu0 0
    %1723 = vmatprep.subr.bf16.mxu0 0
    %1724 = vmatpush1.bf16.msra.mxu0 %v1705
    %1725 = vmatprep.subr.bf16.mxu0 0
    %1726 = vmatpush1.bf16.msra.mxu0 %v1704
    %1727 = vmatprep.subr.bf16.mxu0 0
    %1728 = vmatpush2.bf16.msra.mxu0 0
    %1729 = vmatprep.subr.bf16.mxu0 0
    %1730 = vmatpush2.bf16.msra.mxu0 0
    %1731 = vmatprep.subr.bf16.mxu0 0
    %1732 = vmatpush2.bf16.msra.mxu0 0
    %1733 = vmatprep.subr.bf16.mxu0 0
    %1734 = vmatpush2.bf16.msra.mxu0 0
    %1735 = vmatprep.subr.bf16.mxu0 0
    %1736 = vmatpush2.bf16.msra.mxu0 0
    %1737 = vmatprep.subr.bf16.mxu0 0
    %1738 = vmatpush2.bf16.msra.mxu0 0
    %1739 = vmatprep.subr.bf16.mxu0 0
    %1740 = vmatpush2.bf16.msra.mxu0 0
    %1741 = vmatprep.subr.bf16.mxu0 0
    %1742 = vmatpush2.bf16.msra.mxu0 0
    %1743 = vmatprep.mubr.bf16.mxu0 0
    %1744 = vmatmul.mubr.bf16.gmra.mxu0 %v1709
    %v1745 = vpop.f32.mrf.mxu0
    %v1746 = vadd.f32 0.0, %v1745
    %v1747 = vpop.f32.mrf.mxu0
    %v1748 = vpop.f32.mrf.mxu0
    %v1749 = vpop.f32.mrf.mxu0
    %1750 = vdwg.mxu0
    %v1751 = vadd.f32 %v1689, %v1746
    %s1752 = scalar_lea.vmem %s3, 96
    %v1753 = vld [vmem:[%s1752] sm:$0xf]
    %v1754 = vld [vmem:[%s1752 + $0x4] sm:$0xf]
    %v1755 = vld [vmem:[%s1752 + $0x8] sm:$0xf]
    %v1756 = vld [vmem:[%s1752 + $0xc] sm:$0xf]
    %v1757 = vrot.slane %v1380, 6
    %v1762 = vunpack.c.l.b16 %v1753
    %v1763 = vunpack.c.l.b16 %v1754
    %v1764 = vunpack.c.l.b16 %v1755
    %v1765 = vunpack.c.l.b16 %v1756
    %v1766 = vpack.c.b16 %v1763, %v1762
    %v1767 = vpack.c.b16 %v1765, %v1764
    %v1771 = vsel %vm1405, %v1757, 0
    %1773 = vmatprep.subr.bf16.mxu0 0
    %1774 = vmatpush1.bf16.msra.mxu0 0
    %1775 = vmatprep.subr.bf16.mxu0 0
    %1776 = vmatpush1.bf16.msra.mxu0 0
    %1777 = vmatprep.subr.bf16.mxu0 0
    %1778 = vmatpush1.bf16.msra.mxu0 0
    %1779 = vmatprep.subr.bf16.mxu0 0
    %1780 = vmatpush1.bf16.msra.mxu0 0
    %1781 = vmatprep.subr.bf16.mxu0 0
    %1782 = vmatpush1.bf16.msra.mxu0 0
    %1783 = vmatprep.subr.bf16.mxu0 0
    %1784 = vmatpush1.bf16.msra.mxu0 0
    %1785 = vmatprep.subr.bf16.mxu0 0
    %1786 = vmatpush1.bf16.msra.mxu0 %v1767
    %1787 = vmatprep.subr.bf16.mxu0 0
    %1788 = vmatpush1.bf16.msra.mxu0 %v1766
    %1789 = vmatprep.subr.bf16.mxu0 0
    %1790 = vmatpush2.bf16.msra.mxu0 0
    %1791 = vmatprep.subr.bf16.mxu0 0
    %1792 = vmatpush2.bf16.msra.mxu0 0
    %1793 = vmatprep.subr.bf16.mxu0 0
    %1794 = vmatpush2.bf16.msra.mxu0 0
    %1795 = vmatprep.subr.bf16.mxu0 0
    %1796 = vmatpush2.bf16.msra.mxu0 0
    %1797 = vmatprep.subr.bf16.mxu0 0
    %1798 = vmatpush2.bf16.msra.mxu0 0
    %1799 = vmatprep.subr.bf16.mxu0 0
    %1800 = vmatpush2.bf16.msra.mxu0 0
    %1801 = vmatprep.subr.bf16.mxu0 0
    %1802 = vmatpush2.bf16.msra.mxu0 0
    %1803 = vmatprep.subr.bf16.mxu0 0
    %1804 = vmatpush2.bf16.msra.mxu0 0
    %1805 = vmatprep.mubr.bf16.mxu0 0
    %1806 = vmatmul.mubr.bf16.gmra.mxu0 %v1771
    %v1807 = vpop.f32.mrf.mxu0
    %v1808 = vadd.f32 0.0, %v1807
    %v1809 = vpop.f32.mrf.mxu0
    %v1810 = vpop.f32.mrf.mxu0
    %v1811 = vpop.f32.mrf.mxu0
    %1812 = vdwg.mxu0
    %v1813 = vadd.f32 %v1751, %v1808
    %s1814 = scalar_lea.vmem %s3, 112
    %v1815 = vld [vmem:[%s1814] sm:$0xf]
    %v1816 = vld [vmem:[%s1814 + $0x4] sm:$0xf]
    %v1817 = vld [vmem:[%s1814 + $0x8] sm:$0xf]
    %v1818 = vld [vmem:[%s1814 + $0xc] sm:$0xf]
    %v1819 = vrot.slane %v1380, 7
    %v1824 = vunpack.c.l.b16 %v1815
    %v1825 = vunpack.c.l.b16 %v1816
    %v1826 = vunpack.c.l.b16 %v1817
    %v1827 = vunpack.c.l.b16 %v1818
    %v1828 = vpack.c.b16 %v1825, %v1824
    %v1829 = vpack.c.b16 %v1827, %v1826
    %v1833 = vsel %vm1405, %v1819, 0
    %1835 = vmatprep.subr.bf16.mxu0 0
    %1836 = vmatpush1.bf16.msra.mxu0 0
    %1837 = vmatprep.subr.bf16.mxu0 0
    %1838 = vmatpush1.bf16.msra.mxu0 0
    %1839 = vmatprep.subr.bf16.mxu0 0
    %1840 = vmatpush1.bf16.msra.mxu0 0
    %1841 = vmatprep.subr.bf16.mxu0 0
    %1842 = vmatpush1.bf16.msra.mxu0 0
    %1843 = vmatprep.subr.bf16.mxu0 0
    %1844 = vmatpush1.bf16.msra.mxu0 0
    %1845 = vmatprep.subr.bf16.mxu0 0
    %1846 = vmatpush1.bf16.msra.mxu0 0
    %1847 = vmatprep.subr.bf16.mxu0 0
    %1848 = vmatpush1.bf16.msra.mxu0 %v1829
    %1849 = vmatprep.subr.bf16.mxu0 0
    %1850 = vmatpush1.bf16.msra.mxu0 %v1828
    %1851 = vmatprep.subr.bf16.mxu0 0
    %1852 = vmatpush2.bf16.msra.mxu0 0
    %1853 = vmatprep.subr.bf16.mxu0 0
    %1854 = vmatpush2.bf16.msra.mxu0 0
    %1855 = vmatprep.subr.bf16.mxu0 0
    %1856 = vmatpush2.bf16.msra.mxu0 0
    %1857 = vmatprep.subr.bf16.mxu0 0
    %1858 = vmatpush2.bf16.msra.mxu0 0
    %1859 = vmatprep.subr.bf16.mxu0 0
    %1860 = vmatpush2.bf16.msra.mxu0 0
    %1861 = vmatprep.subr.bf16.mxu0 0
    %1862 = vmatpush2.bf16.msra.mxu0 0
    %1863 = vmatprep.subr.bf16.mxu0 0
    %1864 = vmatpush2.bf16.msra.mxu0 0
    %1865 = vmatprep.subr.bf16.mxu0 0
    %1866 = vmatpush2.bf16.msra.mxu0 0
    %1867 = vmatprep.mubr.bf16.mxu0 0
    %1868 = vmatmul.mubr.bf16.gmra.mxu0 %v1833
    %v1869 = vpop.f32.mrf.mxu0
    %v1870 = vadd.f32 0.0, %v1869
    %v1871 = vpop.f32.mrf.mxu0
    %v1872 = vpop.f32.mrf.mxu0
    %v1873 = vpop.f32.mrf.mxu0
    %1874 = vdwg.mxu0
    %v1875 = vadd.f32 %v1813, %v1870
    %s1876 = scalar_lea.vmem %s3, 128
    %v1877 = vld [vmem:[%s1876] sm:$0xf]
    %v1878 = vld [vmem:[%s1876 + $0x4] sm:$0xf]
    %v1879 = vld [vmem:[%s1876 + $0x8] sm:$0xf]
    %v1880 = vld [vmem:[%s1876 + $0xc] sm:$0xf]
    %v1885 = vunpack.c.l.b16 %v1877
    %v1886 = vunpack.c.l.b16 %v1878
    %v1887 = vunpack.c.l.b16 %v1879
    %v1888 = vunpack.c.l.b16 %v1880
    %v1889 = vpack.c.b16 %v1886, %v1885
    %v1890 = vpack.c.b16 %v1888, %v1887
    %v1894 = vsel %vm1405, %v1381, 0
    %1896 = vmatprep.subr.bf16.mxu0 0
    %1897 = vmatpush1.bf16.msra.mxu0 0
    %1898 = vmatprep.subr.bf16.mxu0 0
    %1899 = vmatpush1.bf16.msra.mxu0 0
    %1900 = vmatprep.subr.bf16.mxu0 0
    %1901 = vmatpush1.bf16.msra.mxu0 0
    %1902 = vmatprep.subr.bf16.mxu0 0
    %1903 = vmatpush1.bf16.msra.mxu0 0
    %1904 = vmatprep.subr.bf16.mxu0 0
    %1905 = vmatpush1.bf16.msra.mxu0 0
    %1906 = vmatprep.subr.bf16.mxu0 0
    %1907 = vmatpush1.bf16.msra.mxu0 0
    %1908 = vmatprep.subr.bf16.mxu0 0
    %1909 = vmatpush1.bf16.msra.mxu0 %v1890
    %1910 = vmatprep.subr.bf16.mxu0 0
    %1911 = vmatpush1.bf16.msra.mxu0 %v1889
    %1912 = vmatprep.subr.bf16.mxu0 0
    %1913 = vmatpush2.bf16.msra.mxu0 0
    %1914 = vmatprep.subr.bf16.mxu0 0
    %1915 = vmatpush2.bf16.msra.mxu0 0
    %1916 = vmatprep.subr.bf16.mxu0 0
    %1917 = vmatpush2.bf16.msra.mxu0 0
    %1918 = vmatprep.subr.bf16.mxu0 0
    %1919 = vmatpush2.bf16.msra.mxu0 0
    %1920 = vmatprep.subr.bf16.mxu0 0
    %1921 = vmatpush2.bf16.msra.mxu0 0
    %1922 = vmatprep.subr.bf16.mxu0 0
    %1923 = vmatpush2.bf16.msra.mxu0 0
    %1924 = vmatprep.subr.bf16.mxu0 0
    %1925 = vmatpush2.bf16.msra.mxu0 0
    %1926 = vmatprep.subr.bf16.mxu0 0
    %1927 = vmatpush2.bf16.msra.mxu0 0
    %1928 = vmatprep.mubr.bf16.mxu0 0
    %1929 = vmatmul.mubr.bf16.gmra.mxu0 %v1894
    %v1930 = vpop.f32.mrf.mxu0
    %v1931 = vadd.f32 0.0, %v1930
    %v1932 = vpop.f32.mrf.mxu0
    %v1933 = vpop.f32.mrf.mxu0
    %v1934 = vpop.f32.mrf.mxu0
    %1935 = vdwg.mxu0
    %v1936 = vadd.f32 %v1875, %v1931
    %s1937 = scalar_lea.vmem %s3, 144
    %v1938 = vld [vmem:[%s1937] sm:$0xf]
    %v1939 = vld [vmem:[%s1937 + $0x4] sm:$0xf]
    %v1940 = vld [vmem:[%s1937 + $0x8] sm:$0xf]
    %v1941 = vld [vmem:[%s1937 + $0xc] sm:$0xf]
    %v1943 = vrot.slane %v1381, 1
    %v1948 = vunpack.c.l.b16 %v1938
    %v1949 = vunpack.c.l.b16 %v1939
    %v1950 = vunpack.c.l.b16 %v1940
    %v1951 = vunpack.c.l.b16 %v1941
    %v1952 = vpack.c.b16 %v1949, %v1948
    %v1953 = vpack.c.b16 %v1951, %v1950
    %v1957 = vsel %vm1405, %v1943, 0
    %1959 = vmatprep.subr.bf16.mxu0 0
    %1960 = vmatpush1.bf16.msra.mxu0 0
    %1961 = vmatprep.subr.bf16.mxu0 0
    %1962 = vmatpush1.bf16.msra.mxu0 0
    %1963 = vmatprep.subr.bf16.mxu0 0
    %1964 = vmatpush1.bf16.msra.mxu0 0
    %1965 = vmatprep.subr.bf16.mxu0 0
    %1966 = vmatpush1.bf16.msra.mxu0 0
    %1967 = vmatprep.subr.bf16.mxu0 0
    %1968 = vmatpush1.bf16.msra.mxu0 0
    %1969 = vmatprep.subr.bf16.mxu0 0
    %1970 = vmatpush1.bf16.msra.mxu0 0
    %1971 = vmatprep.subr.bf16.mxu0 0
    %1972 = vmatpush1.bf16.msra.mxu0 %v1953
    %1973 = vmatprep.subr.bf16.mxu0 0
    %1974 = vmatpush1.bf16.msra.mxu0 %v1952
    %1975 = vmatprep.subr.bf16.mxu0 0
    %1976 = vmatpush2.bf16.msra.mxu0 0
    %1977 = vmatprep.subr.bf16.mxu0 0
    %1978 = vmatpush2.bf16.msra.mxu0 0
    %1979 = vmatprep.subr.bf16.mxu0 0
    %1980 = vmatpush2.bf16.msra.mxu0 0
    %1981 = vmatprep.subr.bf16.mxu0 0
    %1982 = vmatpush2.bf16.msra.mxu0 0
    %1983 = vmatprep.subr.bf16.mxu0 0
    %1984 = vmatpush2.bf16.msra.mxu0 0
    %1985 = vmatprep.subr.bf16.mxu0 0
    %1986 = vmatpush2.bf16.msra.mxu0 0
    %1987 = vmatprep.subr.bf16.mxu0 0
    %1988 = vmatpush2.bf16.msra.mxu0 0
    %1989 = vmatprep.subr.bf16.mxu0 0
    %1990 = vmatpush2.bf16.msra.mxu0 0
    %1991 = vmatprep.mubr.bf16.mxu0 0
    %1992 = vmatmul.mubr.bf16.gmra.mxu0 %v1957
    %v1993 = vpop.f32.mrf.mxu0
    %v1994 = vadd.f32 0.0, %v1993
    %v1995 = vpop.f32.mrf.mxu0
    %v1996 = vpop.f32.mrf.mxu0
    %v1997 = vpop.f32.mrf.mxu0
    %1998 = vdwg.mxu0
    %v1999 = vadd.f32 %v1936, %v1994
    %s2000 = scalar_lea.vmem %s3, 160
    %v2001 = vld [vmem:[%s2000] sm:$0xf]
    %v2002 = vld [vmem:[%s2000 + $0x4] sm:$0xf]
    %v2003 = vld [vmem:[%s2000 + $0x8] sm:$0xf]
    %v2004 = vld [vmem:[%s2000 + $0xc] sm:$0xf]
    %v2005 = vrot.slane %v1381, 2
    %v2010 = vunpack.c.l.b16 %v2001
    %v2011 = vunpack.c.l.b16 %v2002
    %v2012 = vunpack.c.l.b16 %v2003
    %v2013 = vunpack.c.l.b16 %v2004
    %v2014 = vpack.c.b16 %v2011, %v2010
    %v2015 = vpack.c.b16 %v2013, %v2012
    %v2019 = vsel %vm1405, %v2005, 0
    %2021 = vmatprep.subr.bf16.mxu0 0
    %2022 = vmatpush1.bf16.msra.mxu0 0
    %2023 = vmatprep.subr.bf16.mxu0 0
    %2024 = vmatpush1.bf16.msra.mxu0 0
    %2025 = vmatprep.subr.bf16.mxu0 0
    %2026 = vmatpush1.bf16.msra.mxu0 0
    %2027 = vmatprep.subr.bf16.mxu0 0
    %2028 = vmatpush1.bf16.msra.mxu0 0
    %2029 = vmatprep.subr.bf16.mxu0 0
    %2030 = vmatpush1.bf16.msra.mxu0 0
    %2031 = vmatprep.subr.bf16.mxu0 0
    %2032 = vmatpush1.bf16.msra.mxu0 0
    %2033 = vmatprep.subr.bf16.mxu0 0
    %2034 = vmatpush1.bf16.msra.mxu0 %v2015
    %2035 = vmatprep.subr.bf16.mxu0 0
    %2036 = vmatpush1.bf16.msra.mxu0 %v2014
    %2037 = vmatprep.subr.bf16.mxu0 0
    %2038 = vmatpush2.bf16.msra.mxu0 0
    %2039 = vmatprep.subr.bf16.mxu0 0
    %2040 = vmatpush2.bf16.msra.mxu0 0
    %2041 = vmatprep.subr.bf16.mxu0 0
    %2042 = vmatpush2.bf16.msra.mxu0 0
    %2043 = vmatprep.subr.bf16.mxu0 0
    %2044 = vmatpush2.bf16.msra.mxu0 0
    %2045 = vmatprep.subr.bf16.mxu0 0
    %2046 = vmatpush2.bf16.msra.mxu0 0
    %2047 = vmatprep.subr.bf16.mxu0 0
    %2048 = vmatpush2.bf16.msra.mxu0 0
    %2049 = vmatprep.subr.bf16.mxu0 0
    %2050 = vmatpush2.bf16.msra.mxu0 0
    %2051 = vmatprep.subr.bf16.mxu0 0
    %2052 = vmatpush2.bf16.msra.mxu0 0
    %2053 = vmatprep.mubr.bf16.mxu0 0
    %2054 = vmatmul.mubr.bf16.gmra.mxu0 %v2019
    %v2055 = vpop.f32.mrf.mxu0
    %v2056 = vadd.f32 0.0, %v2055
    %v2057 = vpop.f32.mrf.mxu0
    %v2058 = vpop.f32.mrf.mxu0
    %v2059 = vpop.f32.mrf.mxu0
    %2060 = vdwg.mxu0
    %v2061 = vadd.f32 %v1999, %v2056
    %s2062 = scalar_lea.vmem %s3, 176
    %v2063 = vld [vmem:[%s2062] sm:$0xf]
    %v2064 = vld [vmem:[%s2062 + $0x4] sm:$0xf]
    %v2065 = vld [vmem:[%s2062 + $0x8] sm:$0xf]
    %v2066 = vld [vmem:[%s2062 + $0xc] sm:$0xf]
    %v2067 = vrot.slane %v1381, 3
    %v2072 = vunpack.c.l.b16 %v2063
    %v2073 = vunpack.c.l.b16 %v2064
    %v2074 = vunpack.c.l.b16 %v2065
    %v2075 = vunpack.c.l.b16 %v2066
    %v2076 = vpack.c.b16 %v2073, %v2072
    %v2077 = vpack.c.b16 %v2075, %v2074
    %v2081 = vsel %vm1405, %v2067, 0
    %2083 = vmatprep.subr.bf16.mxu0 0
    %2084 = vmatpush1.bf16.msra.mxu0 0
    %2085 = vmatprep.subr.bf16.mxu0 0
    %2086 = vmatpush1.bf16.msra.mxu0 0
    %2087 = vmatprep.subr.bf16.mxu0 0
    %2088 = vmatpush1.bf16.msra.mxu0 0
    %2089 = vmatprep.subr.bf16.mxu0 0
    %2090 = vmatpush1.bf16.msra.mxu0 0
    %2091 = vmatprep.subr.bf16.mxu0 0
    %2092 = vmatpush1.bf16.msra.mxu0 0
    %2093 = vmatprep.subr.bf16.mxu0 0
    %2094 = vmatpush1.bf16.msra.mxu0 0
    %2095 = vmatprep.subr.bf16.mxu0 0
    %2096 = vmatpush1.bf16.msra.mxu0 %v2077
    %2097 = vmatprep.subr.bf16.mxu0 0
    %2098 = vmatpush1.bf16.msra.mxu0 %v2076
    %2099 = vmatprep.subr.bf16.mxu0 0
    %2100 = vmatpush2.bf16.msra.mxu0 0
    %2101 = vmatprep.subr.bf16.mxu0 0
    %2102 = vmatpush2.bf16.msra.mxu0 0
    %2103 = vmatprep.subr.bf16.mxu0 0
    %2104 = vmatpush2.bf16.msra.mxu0 0
    %2105 = vmatprep.subr.bf16.mxu0 0
    %2106 = vmatpush2.bf16.msra.mxu0 0
    %2107 = vmatprep.subr.bf16.mxu0 0
    %2108 = vmatpush2.bf16.msra.mxu0 0
    %2109 = vmatprep.subr.bf16.mxu0 0
    %2110 = vmatpush2.bf16.msra.mxu0 0
    %2111 = vmatprep.subr.bf16.mxu0 0
    %2112 = vmatpush2.bf16.msra.mxu0 0
    %2113 = vmatprep.subr.bf16.mxu0 0
    %2114 = vmatpush2.bf16.msra.mxu0 0
    %2115 = vmatprep.mubr.bf16.mxu0 0
    %2116 = vmatmul.mubr.bf16.gmra.mxu0 %v2081
    %v2117 = vpop.f32.mrf.mxu0
    %v2118 = vadd.f32 0.0, %v2117
    %v2119 = vpop.f32.mrf.mxu0
    %v2120 = vpop.f32.mrf.mxu0
    %v2121 = vpop.f32.mrf.mxu0
    %2122 = vdwg.mxu0
    %v2123 = vadd.f32 %v2061, %v2118
    %s2124 = scalar_lea.vmem %s3, 192
    %v2125 = vld [vmem:[%s2124] sm:$0xf]
    %v2126 = vld [vmem:[%s2124 + $0x4] sm:$0xf]
    %v2127 = vld [vmem:[%s2124 + $0x8] sm:$0xf]
    %v2128 = vld [vmem:[%s2124 + $0xc] sm:$0xf]
    %v2129 = vrot.slane %v1381, 4
    %v2134 = vunpack.c.l.b16 %v2125
    %v2135 = vunpack.c.l.b16 %v2126
    %v2136 = vunpack.c.l.b16 %v2127
    %v2137 = vunpack.c.l.b16 %v2128
    %v2138 = vpack.c.b16 %v2135, %v2134
    %v2139 = vpack.c.b16 %v2137, %v2136
    %v2143 = vsel %vm1405, %v2129, 0
    %2145 = vmatprep.subr.bf16.mxu0 0
    %2146 = vmatpush1.bf16.msra.mxu0 0
    %2147 = vmatprep.subr.bf16.mxu0 0
    %2148 = vmatpush1.bf16.msra.mxu0 0
    %2149 = vmatprep.subr.bf16.mxu0 0
    %2150 = vmatpush1.bf16.msra.mxu0 0
    %2151 = vmatprep.subr.bf16.mxu0 0
    %2152 = vmatpush1.bf16.msra.mxu0 0
    %2153 = vmatprep.subr.bf16.mxu0 0
    %2154 = vmatpush1.bf16.msra.mxu0 0
    %2155 = vmatprep.subr.bf16.mxu0 0
    %2156 = vmatpush1.bf16.msra.mxu0 0
    %2157 = vmatprep.subr.bf16.mxu0 0
    %2158 = vmatpush1.bf16.msra.mxu0 %v2139
    %2159 = vmatprep.subr.bf16.mxu0 0
    %2160 = vmatpush1.bf16.msra.mxu0 %v2138
    %2161 = vmatprep.subr.bf16.mxu0 0
    %2162 = vmatpush2.bf16.msra.mxu0 0
    %2163 = vmatprep.subr.bf16.mxu0 0
    %2164 = vmatpush2.bf16.msra.mxu0 0
    %2165 = vmatprep.subr.bf16.mxu0 0
    %2166 = vmatpush2.bf16.msra.mxu0 0
    %2167 = vmatprep.subr.bf16.mxu0 0
    %2168 = vmatpush2.bf16.msra.mxu0 0
    %2169 = vmatprep.subr.bf16.mxu0 0
    %2170 = vmatpush2.bf16.msra.mxu0 0
    %2171 = vmatprep.subr.bf16.mxu0 0
    %2172 = vmatpush2.bf16.msra.mxu0 0
    %2173 = vmatprep.subr.bf16.mxu0 0
    %2174 = vmatpush2.bf16.msra.mxu0 0
    %2175 = vmatprep.subr.bf16.mxu0 0
    %2176 = vmatpush2.bf16.msra.mxu0 0
    %2177 = vmatprep.mubr.bf16.mxu0 0
    %2178 = vmatmul.mubr.bf16.gmra.mxu0 %v2143
    %v2179 = vpop.f32.mrf.mxu0
    %v2180 = vadd.f32 0.0, %v2179
    %v2181 = vpop.f32.mrf.mxu0
    %v2182 = vpop.f32.mrf.mxu0
    %v2183 = vpop.f32.mrf.mxu0
    %2184 = vdwg.mxu0
    %v2185 = vadd.f32 %v2123, %v2180
    %s2186 = scalar_lea.vmem %s3, 208
    %v2187 = vld [vmem:[%s2186] sm:$0xf]
    %v2188 = vld [vmem:[%s2186 + $0x4] sm:$0xf]
    %v2189 = vld [vmem:[%s2186 + $0x8] sm:$0xf]
    %v2190 = vld [vmem:[%s2186 + $0xc] sm:$0xf]
    %v2191 = vrot.slane %v1381, 5
    %v2196 = vunpack.c.l.b16 %v2187
    %v2197 = vunpack.c.l.b16 %v2188
    %v2198 = vunpack.c.l.b16 %v2189
    %v2199 = vunpack.c.l.b16 %v2190
    %v2200 = vpack.c.b16 %v2197, %v2196
    %v2201 = vpack.c.b16 %v2199, %v2198
    %v2205 = vsel %vm1405, %v2191, 0
    %2207 = vmatprep.subr.bf16.mxu0 0
    %2208 = vmatpush1.bf16.msra.mxu0 0
    %2209 = vmatprep.subr.bf16.mxu0 0
    %2210 = vmatpush1.bf16.msra.mxu0 0
    %2211 = vmatprep.subr.bf16.mxu0 0
    %2212 = vmatpush1.bf16.msra.mxu0 0
    %2213 = vmatprep.subr.bf16.mxu0 0
    %2214 = vmatpush1.bf16.msra.mxu0 0
    %2215 = vmatprep.subr.bf16.mxu0 0
    %2216 = vmatpush1.bf16.msra.mxu0 0
    %2217 = vmatprep.subr.bf16.mxu0 0
    %2218 = vmatpush1.bf16.msra.mxu0 0
    %2219 = vmatprep.subr.bf16.mxu0 0
    %2220 = vmatpush1.bf16.msra.mxu0 %v2201
    %2221 = vmatprep.subr.bf16.mxu0 0
    %2222 = vmatpush1.bf16.msra.mxu0 %v2200
    %2223 = vmatprep.subr.bf16.mxu0 0
    %2224 = vmatpush2.bf16.msra.mxu0 0
    %2225 = vmatprep.subr.bf16.mxu0 0
    %2226 = vmatpush2.bf16.msra.mxu0 0
    %2227 = vmatprep.subr.bf16.mxu0 0
    %2228 = vmatpush2.bf16.msra.mxu0 0
    %2229 = vmatprep.subr.bf16.mxu0 0
    %2230 = vmatpush2.bf16.msra.mxu0 0
    %2231 = vmatprep.subr.bf16.mxu0 0
    %2232 = vmatpush2.bf16.msra.mxu0 0
    %2233 = vmatprep.subr.bf16.mxu0 0
    %2234 = vmatpush2.bf16.msra.mxu0 0
    %2235 = vmatprep.subr.bf16.mxu0 0
    %2236 = vmatpush2.bf16.msra.mxu0 0
    %2237 = vmatprep.subr.bf16.mxu0 0
    %2238 = vmatpush2.bf16.msra.mxu0 0
    %2239 = vmatprep.mubr.bf16.mxu0 0
    %2240 = vmatmul.mubr.bf16.gmra.mxu0 %v2205
    %v2241 = vpop.f32.mrf.mxu0
    %v2242 = vadd.f32 0.0, %v2241
    %v2243 = vpop.f32.mrf.mxu0
    %v2244 = vpop.f32.mrf.mxu0
    %v2245 = vpop.f32.mrf.mxu0
    %2246 = vdwg.mxu0
    %v2247 = vadd.f32 %v2185, %v2242
    %s2248 = scalar_lea.vmem %s3, 224
    %v2249 = vld [vmem:[%s2248] sm:$0xf]
    %v2250 = vld [vmem:[%s2248 + $0x4] sm:$0xf]
    %v2251 = vld [vmem:[%s2248 + $0x8] sm:$0xf]
    %v2252 = vld [vmem:[%s2248 + $0xc] sm:$0xf]
    %v2253 = vrot.slane %v1381, 6
    %v2258 = vunpack.c.l.b16 %v2249
    %v2259 = vunpack.c.l.b16 %v2250
    %v2260 = vunpack.c.l.b16 %v2251
    %v2261 = vunpack.c.l.b16 %v2252
    %v2262 = vpack.c.b16 %v2259, %v2258
    %v2263 = vpack.c.b16 %v2261, %v2260
    %v2267 = vsel %vm1405, %v2253, 0
    %2269 = vmatprep.subr.bf16.mxu0 0
    %2270 = vmatpush1.bf16.msra.mxu0 0
    %2271 = vmatprep.subr.bf16.mxu0 0
    %2272 = vmatpush1.bf16.msra.mxu0 0
    %2273 = vmatprep.subr.bf16.mxu0 0
    %2274 = vmatpush1.bf16.msra.mxu0 0
    %2275 = vmatprep.subr.bf16.mxu0 0
    %2276 = vmatpush1.bf16.msra.mxu0 0
    %2277 = vmatprep.subr.bf16.mxu0 0
    %2278 = vmatpush1.bf16.msra.mxu0 0
    %2279 = vmatprep.subr.bf16.mxu0 0
    %2280 = vmatpush1.bf16.msra.mxu0 0
    %2281 = vmatprep.subr.bf16.mxu0 0
    %2282 = vmatpush1.bf16.msra.mxu0 %v2263
    %2283 = vmatprep.subr.bf16.mxu0 0
    %2284 = vmatpush1.bf16.msra.mxu0 %v2262
    %2285 = vmatprep.subr.bf16.mxu0 0
    %2286 = vmatpush2.bf16.msra.mxu0 0
    %2287 = vmatprep.subr.bf16.mxu0 0
    %2288 = vmatpush2.bf16.msra.mxu0 0
    %2289 = vmatprep.subr.bf16.mxu0 0
    %2290 = vmatpush2.bf16.msra.mxu0 0
    %2291 = vmatprep.subr.bf16.mxu0 0
    %2292 = vmatpush2.bf16.msra.mxu0 0
    %2293 = vmatprep.subr.bf16.mxu0 0
    %2294 = vmatpush2.bf16.msra.mxu0 0
    %2295 = vmatprep.subr.bf16.mxu0 0
    %2296 = vmatpush2.bf16.msra.mxu0 0
    %2297 = vmatprep.subr.bf16.mxu0 0
    %2298 = vmatpush2.bf16.msra.mxu0 0
    %2299 = vmatprep.subr.bf16.mxu0 0
    %2300 = vmatpush2.bf16.msra.mxu0 0
    %2301 = vmatprep.mubr.bf16.mxu0 0
    %2302 = vmatmul.mubr.bf16.gmra.mxu0 %v2267
    %v2303 = vpop.f32.mrf.mxu0
    %v2304 = vadd.f32 0.0, %v2303
    %v2305 = vpop.f32.mrf.mxu0
    %v2306 = vpop.f32.mrf.mxu0
    %v2307 = vpop.f32.mrf.mxu0
    %2308 = vdwg.mxu0
    %v2309 = vadd.f32 %v2247, %v2304
    %s2310 = scalar_lea.vmem %s3, 240
    %v2311 = vld [vmem:[%s2310] sm:$0xf]
    %v2312 = vld [vmem:[%s2310 + $0x4] sm:$0xf]
    %v2313 = vld [vmem:[%s2310 + $0x8] sm:$0xf]
    %v2314 = vld [vmem:[%s2310 + $0xc] sm:$0xf]
    %v2315 = vrot.slane %v1381, 7
    %v2320 = vunpack.c.l.b16 %v2311
    %v2321 = vunpack.c.l.b16 %v2312
    %v2322 = vunpack.c.l.b16 %v2313
    %v2323 = vunpack.c.l.b16 %v2314
    %v2324 = vpack.c.b16 %v2321, %v2320
    %v2325 = vpack.c.b16 %v2323, %v2322
    %v2329 = vsel %vm1405, %v2315, 0
    %2331 = vmatprep.subr.bf16.mxu0 0
    %2332 = vmatpush1.bf16.msra.mxu0 0
    %2333 = vmatprep.subr.bf16.mxu0 0
    %2334 = vmatpush1.bf16.msra.mxu0 0
    %2335 = vmatprep.subr.bf16.mxu0 0
    %2336 = vmatpush1.bf16.msra.mxu0 0
    %2337 = vmatprep.subr.bf16.mxu0 0
    %2338 = vmatpush1.bf16.msra.mxu0 0
    %2339 = vmatprep.subr.bf16.mxu0 0
    %2340 = vmatpush1.bf16.msra.mxu0 0
    %2341 = vmatprep.subr.bf16.mxu0 0
    %2342 = vmatpush1.bf16.msra.mxu0 0
    %2343 = vmatprep.subr.bf16.mxu0 0
    %2344 = vmatpush1.bf16.msra.mxu0 %v2325
    %2345 = vmatprep.subr.bf16.mxu0 0
    %2346 = vmatpush1.bf16.msra.mxu0 %v2324
    %2347 = vmatprep.subr.bf16.mxu0 0
    %2348 = vmatpush2.bf16.msra.mxu0 0
    %2349 = vmatprep.subr.bf16.mxu0 0
    %2350 = vmatpush2.bf16.msra.mxu0 0
    %2351 = vmatprep.subr.bf16.mxu0 0
    %2352 = vmatpush2.bf16.msra.mxu0 0
    %2353 = vmatprep.subr.bf16.mxu0 0
    %2354 = vmatpush2.bf16.msra.mxu0 0
    %2355 = vmatprep.subr.bf16.mxu0 0
    %2356 = vmatpush2.bf16.msra.mxu0 0
    %2357 = vmatprep.subr.bf16.mxu0 0
    %2358 = vmatpush2.bf16.msra.mxu0 0
    %2359 = vmatprep.subr.bf16.mxu0 0
    %2360 = vmatpush2.bf16.msra.mxu0 0
    %2361 = vmatprep.subr.bf16.mxu0 0
    %2362 = vmatpush2.bf16.msra.mxu0 0
    %2363 = vmatprep.mubr.bf16.mxu0 0
    %2364 = vmatmul.mubr.bf16.gmra.mxu0 %v2329
    %v2365 = vpop.f32.mrf.mxu0
    %v2366 = vadd.f32 0.0, %v2365
    %v2367 = vpop.f32.mrf.mxu0
    %v2368 = vpop.f32.mrf.mxu0
    %v2369 = vpop.f32.mrf.mxu0
    %2370 = vdwg.mxu0
    %v2371 = vadd.f32 %v2309, %v2366
    %v2372 = vld [vmem:[%s4] sm:$0x1]
    %v2374 = vlaneseq
    %v2375 = vshrl.u32 %v2374, 7
    %v2376 = vsub.s32 0, %v2375
    %v2377 = vrot.slane %v2372, %v2376
    %v2379 = vadd.f32 %v2371, %v2377
    %v2380 = vmax.f32 %v2379, 0.0
    %v2381 = vpack.c.bf16 %v2380, %v2380
    %v2382 = vld [vmem:[%s5] sm:$0xf]
    %v2383 = vld [vmem:[%s5 + $0x4] sm:$0xf]
    %v2384 = vld [vmem:[%s5 + $0x8] sm:$0xf]
    %v2385 = vld [vmem:[%s5 + $0xc] sm:$0xf]
    %v2386 = vld [vmem:[%s5 + $0x10] sm:$0xf]
    %v2387 = vld [vmem:[%s5 + $0x14] sm:$0xf]
    %v2388 = vld [vmem:[%s5 + $0x18] sm:$0xf]
    %v2389 = vld [vmem:[%s5 + $0x1c] sm:$0xf]
    %v2390 = vld [vmem:[%s6] sm:$0x1]
    %v2392 = vlaneseq
    %v2393 = vshrl.u32 %v2392, 7
    %v2394 = vsub.s32 0, %v2393
    %v2395 = vrot.slane %v2390, %v2394
    %v2405 = vunpack.c.l.b16 %v2382
    %v2406 = vunpack.c.l.b16 %v2383
    %v2407 = vunpack.c.l.b16 %v2384
    %v2408 = vunpack.c.l.b16 %v2385
    %v2409 = vunpack.c.l.b16 %v2386
    %v2410 = vunpack.c.l.b16 %v2387
    %v2411 = vunpack.c.l.b16 %v2388
    %v2412 = vunpack.c.l.b16 %v2389
    %v2413 = vpack.c.b16 %v2406, %v2405
    %v2414 = vpack.c.b16 %v2408, %v2407
    %v2415 = vpack.c.b16 %v2410, %v2409
    %v2416 = vpack.c.b16 %v2412, %v2411
    %vm2421 = vcmask 523264
    %v2423 = vsel %vm2421, %v2381, 0
    %2425 = vmatprep.subr.bf16.mxu0 0
    %2426 = vmatpush1.bf16.msra.mxu0 0
    %2427 = vmatprep.subr.bf16.mxu0 0
    %2428 = vmatpush1.bf16.msra.mxu0 0
    %2429 = vmatprep.subr.bf16.mxu0 0
    %2430 = vmatpush1.bf16.msra.mxu0 0
    %2431 = vmatprep.subr.bf16.mxu0 0
    %2432 = vmatpush1.bf16.msra.mxu0 0
    %2433 = vmatprep.subr.bf16.mxu0 0
    %2434 = vmatpush1.bf16.msra.mxu0 %v2416
    %2435 = vmatprep.subr.bf16.mxu0 0
    %2436 = vmatpush1.bf16.msra.mxu0 %v2415
    %2437 = vmatprep.subr.bf16.mxu0 0
    %2438 = vmatpush1.bf16.msra.mxu0 %v2414
    %2439 = vmatprep.subr.bf16.mxu0 0
    %2440 = vmatpush1.bf16.msra.mxu0 %v2413
    %2441 = vmatprep.subr.bf16.mxu0 0
    %2442 = vmatpush2.bf16.msra.mxu0 0
    %2443 = vmatprep.subr.bf16.mxu0 0
    %2444 = vmatpush2.bf16.msra.mxu0 0
    %2445 = vmatprep.subr.bf16.mxu0 0
    %2446 = vmatpush2.bf16.msra.mxu0 0
    %2447 = vmatprep.subr.bf16.mxu0 0
    %2448 = vmatpush2.bf16.msra.mxu0 0
    %2449 = vmatprep.subr.bf16.mxu0 0
    %2450 = vmatpush2.bf16.msra.mxu0 0
    %2451 = vmatprep.subr.bf16.mxu0 0
    %2452 = vmatpush2.bf16.msra.mxu0 0
    %2453 = vmatprep.subr.bf16.mxu0 0
    %2454 = vmatpush2.bf16.msra.mxu0 0
    %2455 = vmatprep.subr.bf16.mxu0 0
    %2456 = vmatpush2.bf16.msra.mxu0 0
    %2457 = vmatprep.mubr.bf16.mxu0 0
    %2458 = vmatmul.mubr.bf16.gmra.mxu0 %v2423
    %v2459 = vpop.f32.mrf.mxu0
    %v2460 = vadd.f32 %v2395, %v2459
    %v2461 = vpop.f32.mrf.mxu0
    %v2462 = vpop.f32.mrf.mxu0
    %v2463 = vpop.f32.mrf.mxu0
    %2464 = vdwg.mxu0
    %v2465 = vmax.f32 %v2460, 0.0
    %v2466 = vpack.c.bf16 %v2465, %v2465
    %v2467 = vld [vmem:[%s7] sm:$0xf]
    %v2468 = vld [vmem:[%s7 + $0x4] sm:$0xf]
    %v2469 = vld [vmem:[%s7 + $0x8] sm:$0xf]
    %v2470 = vld [vmem:[%s7 + $0xc] sm:$0xf]
    %v2471 = vld [vmem:[%s8] sm:$0x1]
    %v2473 = vlaneseq
    %v2474 = vshrl.u32 %v2473, 7
    %v2475 = vsub.s32 0, %v2474
    %v2476 = vrot.slane %v2471, %v2475
    %v2482 = vunpack.c.l.b16 %v2467
    %v2483 = vunpack.c.l.b16 %v2468
    %v2484 = vunpack.c.l.b16 %v2469
    %v2485 = vunpack.c.l.b16 %v2470
    %v2486 = vpack.c.b16 %v2483, %v2482
    %v2487 = vpack.c.b16 %v2485, %v2484
    %v2491 = vsel %vm1405, %v2466, 0
    %2493 = vmatprep.subr.bf16.mxu0 0
    %2494 = vmatpush1.bf16.msra.mxu0 0
    %2495 = vmatprep.subr.bf16.mxu0 0
    %2496 = vmatpush1.bf16.msra.mxu0 0
    %2497 = vmatprep.subr.bf16.mxu0 0
    %2498 = vmatpush1.bf16.msra.mxu0 0
    %2499 = vmatprep.subr.bf16.mxu0 0
    %2500 = vmatpush1.bf16.msra.mxu0 0
    %2501 = vmatprep.subr.bf16.mxu0 0
    %2502 = vmatpush1.bf16.msra.mxu0 0
    %2503 = vmatprep.subr.bf16.mxu0 0
    %2504 = vmatpush1.bf16.msra.mxu0 0
    %2505 = vmatprep.subr.bf16.mxu0 0
    %2506 = vmatpush1.bf16.msra.mxu0 %v2487
    %2507 = vmatprep.subr.bf16.mxu0 0
    %2508 = vmatpush1.bf16.msra.mxu0 %v2486
    %2509 = vmatprep.subr.bf16.mxu0 0
    %2510 = vmatpush2.bf16.msra.mxu0 0
    %2511 = vmatprep.subr.bf16.mxu0 0
    %2512 = vmatpush2.bf16.msra.mxu0 0
    %2513 = vmatprep.subr.bf16.mxu0 0
    %2514 = vmatpush2.bf16.msra.mxu0 0
    %2515 = vmatprep.subr.bf16.mxu0 0
    %2516 = vmatpush2.bf16.msra.mxu0 0
    %2517 = vmatprep.subr.bf16.mxu0 0
    %2518 = vmatpush2.bf16.msra.mxu0 0
    %2519 = vmatprep.subr.bf16.mxu0 0
    %2520 = vmatpush2.bf16.msra.mxu0 0
    %2521 = vmatprep.subr.bf16.mxu0 0
    %2522 = vmatpush2.bf16.msra.mxu0 0
    %2523 = vmatprep.subr.bf16.mxu0 0
    %2524 = vmatpush2.bf16.msra.mxu0 0
    %2525 = vmatprep.mubr.bf16.mxu0 0
    %2526 = vmatmul.mubr.bf16.gmra.mxu0 %v2491
    %v2527 = vpop.f32.mrf.mxu0
    %v2528 = vadd.f32 %v2476, %v2527
    %v2529 = vpop.f32.mrf.mxu0
    %v2530 = vpop.f32.mrf.mxu0
    %v2531 = vpop.f32.mrf.mxu0
    %2532 = vdwg.mxu0
    %vm2533 = vcmask 33792
    %2534 = vst.msk [vmem:[#allocation2] sm:$0x3] %vm2533, %v2528
    // Predicated region
    $region38: #{cnn_forward.5} parent=1 // pred_check
      _
    $region39: #{cnn_forward.5} parent=1 // pred_check_branch
      %2536 = sbr.rel (0) target = $region41
    $region40: #{cnn_forward.5} parent=1 // pred_region
      %s2538 = ssub.s32 32, 32
      %2539 = vsyncadd [#allocation3], %s2538
      %s2541 = sshll.u32 [#allocation2], 4
      %s2542 = int_to_ptr.vmem [resolvable:$true] %s2541
      %2544 = dma.vmem_to_hbm [thread:$0]  %s2542, 32, %s9, [#allocation3]
    $region41: #{cnn_forward.5} parent=1 // pred_fallthru
      _
    // Predicated region
    $region42: #{cnn_forward.5} parent=1 // pred_check
      _
    $region43: #{cnn_forward.5} parent=1 // pred_check_branch
      %2546 = sbr.rel (0) target = $region45
    $region44: #{cnn_forward.5} parent=1 // pred_region
      %2547 = dma.done [#allocation3], 32
    $region45: #{cnn_forward.5} parent=1 // pred_fallthru
      _
    %2548 = vsyncpa [#allocation3], 1

</llo_original>
